<compile_context>
chip_gen: v5e
topology: v5e:2x2
jax: 0.10.0
libtpu: 0.0.40
codegen_flags: <defaults>
</compile_context>

<pallas_src>
import functools
import numpy as np
import jax
import jax.numpy as jnp
from jax import lax
from jax.experimental import pallas as pl
from jax.experimental.pallas import tpu as pltpu


def _decoder_kernel(
    # inputs
    emb_ref, w_ref, b_ref, wlin_ref, blin_ref, h0_ref, c0_ref,
    # outputs
    out_ref, nsteps_ref, hT_ref, cT_ref,
    # scratch
    h_scr, c_scr, logp_scr, nxt_scr, tok_smem, done_smem, cnt_smem,
    *, n_layers, hidden, vocab, eos_id, chunk, max_steps):
  H = hidden
  g = pl.program_id(0)
  # Hoisted once per grid step (JAX does not CSE broadcast/iota); int32 domain.
  iota = lax.broadcasted_iota(jnp.int32, (1, vocab), 1)

  @pl.when(g == 0)
  def _init():
    h_scr[...] = h0_ref[...]
    c_scr[...] = c0_ref[...]
    tok_smem[0] = jnp.int32(0)          # decoder_input = torch.tensor([0])
    done_smem[0] = jnp.int32(0)
    cnt_smem[0] = jnp.int32(0)

  # Rows not produced this chunk (post-EOS / past max_steps) must be zeros so
  # the per-chunk output block never flushes stale buffer contents.
  logp_scr[...] = jnp.zeros_like(logp_scr)

  @pl.when(done_smem[0] == 0)           # skip the whole chunk after EOS
  def _chunk():
    for s in range(chunk):              # static unroll; chunk is small
      step_live = jnp.logical_and(done_smem[0] == 0,
                                  g * chunk + s < max_steps)

      @pl.when(step_live)
      def _step(s=s):
        # ---- embedding: scalar-indexed row read (no one-hot matmul) ----
        tok = tok_smem[0]
        x = emb_ref[tok]                                    # (1, H)

        # ---- stacked LSTM cells: one fused (1,2H)@(2H,4H) dot per layer ----
        for l in range(n_layers):
          h_prev = h_scr[l]                                 # (1, H)
          c_prev = c_scr[l]                                 # (1, H)
          xh = jnp.concatenate([x, h_prev], axis=1)         # (1, 2H)
          gates = jnp.dot(xh, w_ref[l],
                          preferred_element_type=jnp.float32) + b_ref[l]  # (1,4H)
          i_g = jax.nn.sigmoid(gates[:, 0 * H:1 * H])
          f_g = jax.nn.sigmoid(gates[:, 1 * H:2 * H])
          g_g = jnp.tanh(gates[:, 2 * H:3 * H])
          o_g = jax.nn.sigmoid(gates[:, 3 * H:4 * H])
          c_new = f_g * c_prev + i_g * g_g
          h_new = o_g * jnp.tanh(c_new)
          h_scr[l] = h_new
          c_scr[l] = c_new
          x = h_new                                         # input to next layer

        # ---- output projection + LogSoftmax(dim=1) ----
        logits = jnp.dot(x, wlin_ref[...],
                         preferred_element_type=jnp.float32) + blin_ref[...]
        m = jnp.max(logits, axis=1, keepdims=True)
        z = logits - m
        logp = z - jnp.log(jnp.sum(jnp.exp(z), axis=1, keepdims=True))
        logp_scr[pl.ds(s, 1), :] = logp

        # ---- greedy argmax (first max index, int32) -> next token / EOS ----
        best = jnp.max(logp, axis=1, keepdims=True)
        cand = jnp.where(logp >= best, iota, vocab)         # (1, V) int32
        nxt_scr[...] = jnp.min(cand, axis=1, keepdims=True)
        nxt = nxt_scr[0, 0]                                 # scalar int32
        tok_smem[0] = nxt
        done_smem[0] = (nxt == eos_id).astype(jnp.int32)
        cnt_smem[0] = cnt_smem[0] + 1

  # One dense (chunk, V) output block per grid step + resident final state.
  out_ref[...] = logp_scr[...]
  nsteps_ref[...] = jnp.full((1, 1), cnt_smem[0], jnp.int32)
  hT_ref[...] = h_scr[...]
  cT_ref[...] = c_scr[...]


def decoder_forward(params, encoder_hidden, *, max_steps, eos_id, chunk=8):
  emb, w_ih, w_hh, b_ih, b_hh, w_lin, b_lin = params
  h0, c0 = encoder_hidden
  L, _, H = h0.shape
  V = emb.shape[0]

  # ---- trace-time packing: fuse gates, pre-sum biases, row-major embedding ----
  w_x = jnp.concatenate([w_ih[:, k] for k in range(4)], axis=-1)      # (L, H, 4H)
  w_h = jnp.concatenate([w_hh[:, k] for k in range(4)], axis=-1)      # (L, H, 4H)
  w_fused = jnp.concatenate([w_x, w_h], axis=1)                       # (L, 2H, 4H)
  b_sum = b_ih + b_hh                                                 # (L, 4, 1, H)
  b_fused = jnp.concatenate([b_sum[:, k] for k in range(4)], axis=-1) # (L, 1, 4H)
  emb3 = emb.reshape(V, 1, H)     # leading-axis rows for dynamic scalar indexing

  n_chunks = int(pl.cdiv(max_steps, chunk))
  t_pad = n_chunks * chunk

  kernel = functools.partial(
      _decoder_kernel, n_layers=L, hidden=H, vocab=V, eos_id=eos_id,
      chunk=chunk, max_steps=max_steps)

  def full(shape):  # whole-array, grid-resident block
    return pl.BlockSpec(shape, lambda g, n=len(shape): (0,) * n)

  grid_spec = pltpu.PrefetchScalarGridSpec(
      num_scalar_prefetch=0,
      grid=(n_chunks,),
      in_specs=[
          full((V, 1, H)),                    # embedding rows
          full((L, 2 * H, 4 * H)),            # fused LSTM weights
          full((L, 1, 4 * H)),                # fused LSTM bias
          full((H, V)), full((1, V)),         # output projection
          full((L, 1, H)), full((L, 1, H)),   # h0, c0
      ],
      out_specs=[
          pl.BlockSpec((chunk, V), lambda g: (g, 0)),   # per-chunk log-probs
          full((1, 1)),                                 # n_steps (resident)
          full((L, 1, H)), full((L, 1, H)),             # final h, c
      ],
      scratch_shapes=[
          pltpu.VMEM((L, 1, H), jnp.float32),   # h state
          pltpu.VMEM((L, 1, H), jnp.float32),   # c state
          pltpu.VMEM((chunk, V), jnp.float32),  # staged log-probs
          pltpu.VMEM((1, 1), jnp.int32),        # argmax result
          pltpu.SMEM((1,), jnp.int32),          # current token id
          pltpu.SMEM((1,), jnp.int32),          # done (EOS emitted)
          pltpu.SMEM((1,), jnp.int32),          # executed-step count
      ],
  )
  out_shapes = (
      jax.ShapeDtypeStruct((t_pad, V), jnp.float32),
      jax.ShapeDtypeStruct((1, 1), jnp.int32),
      jax.ShapeDtypeStruct((L, 1, H), jnp.float32),
      jax.ShapeDtypeStruct((L, 1, H), jnp.float32),
  )

  resident = sum(int(np.prod(a.shape)) * a.dtype.itemsize
                 for a in (emb3, w_fused, b_fused, w_lin, b_lin, h0, c0))
  vmem_limit = int(min(64 * 1024 * 1024,
                       max(32 * 1024 * 1024, 4 * resident + (2 << 20))))

  logp, n_steps, hT, cT = pl.pallas_call(
      kernel,
      out_shape=out_shapes,
      grid_spec=grid_spec,
      compiler_params=pltpu.CompilerParams(
          dimension_semantics=("arbitrary",),   # strict sequential recurrence
          vmem_limit_bytes=vmem_limit),
  )(emb3, w_fused, b_fused, w_lin, b_lin, h0, c0)

  n = jnp.minimum(n_steps[0, 0], max_steps)
  return logp[:max_steps], n, (hT, cT)


def _reference(params, encoder_hidden, max_steps, eos_id):
  emb, w_ih, w_hh, b_ih, b_hh, w_lin, b_lin = map(np.asarray, params)
  h0, c0 = map(np.asarray, encoder_hidden)
  L, _, H = h0.shape
  V = emb.shape[0]
  sig = lambda x: 1.0 / (1.0 + np.exp(-x))
  h = [h0[l].copy() for l in range(L)]
  c = [c0[l].copy() for l in range(L)]
  tok = 0
  outs = np.zeros((max_steps, V), np.float32)
  n_steps = 0
  for t in range(max_steps):
    x = emb[tok][None, :]
    for l in range(L):
      gts = [x @ w_ih[l, k] + h[l] @ w_hh[l, k] + b_ih[l, k] + b_hh[l, k]
             for k in range(4)]
      i_g, f_g, g_g, o_g = sig(gts[0]), sig(gts[1]), np.tanh(gts[2]), sig(gts[3])
      c[l] = f_g * c[l] + i_g * g_g
      h[l] = o_g * np.tanh(c[l])
      x = h[l]
    logits = x @ w_lin + b_lin
    z = logits - logits.max(axis=1, keepdims=True)
    logp = z - np.log(np.exp(z).sum(axis=1, keepdims=True))
    outs[t] = logp[0]
    n_steps = t + 1
    tok = int(np.argmax(logp[0]))
    if tok == eos_id:
      break
  return outs, n_steps, np.stack(h), np.stack(c)


if __name__ == "__main__":
  H, V, L = 32, 128, 2          # hidden_size, output_vocab_size, n_layers
  EOS_ID = 5
  MAX_STEPS = 16                # torch loops up to 375; kept small for the demo
  CHUNK = 8

  key = jax.random.PRNGKey(0)
  k = jax.random.split(key, 9)
  s = float(1.0 / np.sqrt(H))
  f32 = jnp.float32
  emb   = jax.random.normal(k[0], (V, H), f32) * 0.3
  w_ih  = jax.random.uniform(k[1], (L, 4, H, H), f32, -s, s)
  w_hh  = jax.random.uniform(k[2], (L, 4, H, H), f32, -s, s)
  b_ih  = jax.random.uniform(k[3], (L, 4, 1, H), f32, -s, s)
  b_hh  = jax.random.uniform(k[4], (L, 4, 1, H), f32, -s, s)
  w_lin = jax.random.uniform(k[5], (H, V), f32, -s, s)
  b_lin = jax.random.uniform(k[6], (1, V), f32, -s, s)
  h0    = jax.random.normal(k[7], (L, 1, H), f32) * 0.5
  c0    = jax.random.normal(k[8], (L, 1, H), f32) * 0.5
  params = (emb, w_ih, w_hh, b_ih, b_hh, w_lin, b_lin)

  logp, n_steps, (hT, cT) = decoder_forward(
      params, (h0, c0), max_steps=MAX_STEPS, eos_id=EOS_ID, chunk=CHUNK)
  jax.block_until_ready((logp, n_steps, hT, cT))

  ref_out, ref_n, ref_h, ref_c = _reference(params, (h0, c0), MAX_STEPS, EOS_ID)
  assert int(n_steps) == ref_n, (int(n_steps), ref_n)
  np.testing.assert_allclose(np.asarray(logp), ref_out, atol=1e-3, rtol=1e-3)
  np.testing.assert_allclose(np.asarray(hT), ref_h, atol=1e-3, rtol=1e-3)
  np.testing.assert_allclose(np.asarray(cT), ref_c, atol=1e-3, rtol=1e-3)
  print("KERNEL_OK")
</pallas_src>

<mosaic_0001>
module attributes {stable_mosaic.version = 11 : i64} {
  func.func @_decoder_kernel(%arg0: i32, %arg1: memref<128x1x32xf32, #tpu.memory_space<vmem>>, %arg2: memref<2x64x128xf32, #tpu.memory_space<vmem>>, %arg3: memref<2x1x128xf32, #tpu.memory_space<vmem>>, %arg4: memref<32x128xf32, #tpu.memory_space<vmem>>, %arg5: memref<1x128xf32, #tpu.memory_space<vmem>>, %arg6: memref<2x1x32xf32, #tpu.memory_space<vmem>>, %arg7: memref<2x1x32xf32, #tpu.memory_space<vmem>>, %arg8: memref<8x128xf32, #tpu.memory_space<vmem>>, %arg9: memref<1x1xi32, #tpu.memory_space<vmem>>, %arg10: memref<2x1x32xf32, #tpu.memory_space<vmem>>, %arg11: memref<2x1x32xf32, #tpu.memory_space<vmem>>, %arg12: memref<2x1x32xf32, #tpu.memory_space<vmem>>, %arg13: memref<2x1x32xf32, #tpu.memory_space<vmem>>, %arg14: memref<8x128xf32, #tpu.memory_space<vmem>>, %arg15: memref<1x1xi32, #tpu.memory_space<vmem>>, %arg16: memref<1xi32, #tpu.memory_space<smem>>, %arg17: memref<1xi32, #tpu.memory_space<smem>>, %arg18: memref<1xi32, #tpu.memory_space<smem>>) attributes {dimension_semantics = [#tpu.dimension_semantics<arbitrary>], iteration_bounds = array<i64: 2>, scalar_prefetch = 0 : i64, scratch_operands = 7 : i64, tpu.core_type = #tpu.core_type<tc>, window_params = [{pipeline_mode = #tpu.pipeline_mode<synchronous>, transform_indices = @transform_0, window_bounds = array<i64: 128, 1, 32>}, {pipeline_mode = #tpu.pipeline_mode<synchronous>, transform_indices = @transform_1, window_bounds = array<i64: 2, 64, 128>}, {pipeline_mode = #tpu.pipeline_mode<synchronous>, transform_indices = @transform_2, window_bounds = array<i64: 2, 1, 128>}, {pipeline_mode = #tpu.pipeline_mode<synchronous>, transform_indices = @transform_3, window_bounds = array<i64: 32, 128>}, {pipeline_mode = #tpu.pipeline_mode<synchronous>, transform_indices = @transform_4, window_bounds = array<i64: 1, 128>}, {pipeline_mode = #tpu.pipeline_mode<synchronous>, transform_indices = @transform_5, window_bounds = array<i64: 2, 1, 32>}, {pipeline_mode = #tpu.pipeline_mode<synchronous>, transform_indices = @transform_6, window_bounds = array<i64: 2, 1, 32>}, {transform_indices = @transform_7, window_bounds = array<i64: 8, 128>}, {pipeline_mode = #tpu.pipeline_mode<synchronous>, transform_indices = @transform_8, window_bounds = array<i64: 1, 1>}, {pipeline_mode = #tpu.pipeline_mode<synchronous>, transform_indices = @transform_9, window_bounds = array<i64: 2, 1, 32>}, {pipeline_mode = #tpu.pipeline_mode<synchronous>, transform_indices = @transform_10, window_bounds = array<i64: 2, 1, 32>}]} {
    %0 = tpu.iota {dimensions = array<i32: 1>} : vector<1x128xi32>
    %c0_i32 = arith.constant 0 : i32
    %1 = arith.cmpi eq, %arg0, %c0_i32 : i32
    %2 = arith.extui %1 : i1 to i32
    %c0_i32_0 = arith.constant 0 : i32
    %3 = arith.cmpi ne, %2, %c0_i32_0 : i32
    scf.if %3 {
      %c0_24 = arith.constant 0 : index
      %c0_25 = arith.constant 0 : index
      %c0_26 = arith.constant 0 : index
      %19 = vector.load %arg6[%c0_24, %c0_25, %c0_26] : memref<2x1x32xf32, #tpu.memory_space<vmem>>, vector<2x1x32xf32>
      %c0_27 = arith.constant 0 : index
      %c0_28 = arith.constant 0 : index
      %c0_29 = arith.constant 0 : index
      %20 = vector.load %arg12[%c0_27, %c0_28, %c0_29] : memref<2x1x32xf32, #tpu.memory_space<vmem>>, vector<2x1x32xf32>
      tpu.vector_store %arg12[%c0_27, %c0_28, %c0_29], %19 {strides = array<i32>} : memref<2x1x32xf32, #tpu.memory_space<vmem>>, vector<2x1x32xf32>,
      %c0_30 = arith.constant 0 : index
      %c0_31 = arith.constant 0 : index
      %c0_32 = arith.constant 0 : index
      %21 = vector.load %arg7[%c0_30, %c0_31, %c0_32] : memref<2x1x32xf32, #tpu.memory_space<vmem>>, vector<2x1x32xf32>
      %c0_33 = arith.constant 0 : index
      %c0_34 = arith.constant 0 : index
      %c0_35 = arith.constant 0 : index
      %22 = vector.load %arg13[%c0_33, %c0_34, %c0_35] : memref<2x1x32xf32, #tpu.memory_space<vmem>>, vector<2x1x32xf32>
      tpu.vector_store %arg13[%c0_33, %c0_34, %c0_35], %21 {strides = array<i32>} : memref<2x1x32xf32, #tpu.memory_space<vmem>>, vector<2x1x32xf32>,
      %c0_i32_36 = arith.constant 0 : i32
      %c0_37 = arith.constant 0 : index
      %23 = memref.load %arg16[%c0_37] : memref<1xi32, #tpu.memory_space<smem>>
      memref.store %c0_i32_36, %arg16[%c0_37] : memref<1xi32, #tpu.memory_space<smem>>
      %c0_i32_38 = arith.constant 0 : i32
      %c0_39 = arith.constant 0 : index
      %24 = memref.load %arg17[%c0_39] : memref<1xi32, #tpu.memory_space<smem>>
      memref.store %c0_i32_38, %arg17[%c0_39] : memref<1xi32, #tpu.memory_space<smem>>
      %c0_i32_40 = arith.constant 0 : i32
      %c0_41 = arith.constant 0 : index
      %25 = memref.load %arg18[%c0_41] : memref<1xi32, #tpu.memory_space<smem>>
      memref.store %c0_i32_40, %arg18[%c0_41] : memref<1xi32, #tpu.memory_space<smem>>
    } else {
    }
    %cst = arith.constant 0.000000e+00 : f32
    %4 = vector.broadcast %cst : f32 to vector<8x128xf32>
    %c0 = arith.constant 0 : index
    %c0_1 = arith.constant 0 : index
    %5 = vector.load %arg14[%c0, %c0_1] : memref<8x128xf32, #tpu.memory_space<vmem>>, vector<8x128xf32>
    tpu.vector_store %arg14[%c0, %c0_1], %4 {strides = array<i32>} : memref<8x128xf32, #tpu.memory_space<vmem>>, vector<8x128xf32>,
    %c0_2 = arith.constant 0 : index
    %6 = memref.load %arg17[%c0_2] : memref<1xi32, #tpu.memory_space<smem>>
    %c0_i32_3 = arith.constant 0 : i32
    %7 = arith.cmpi eq, %6, %c0_i32_3 : i32
    %8 = arith.extui %7 : i1 to i32
    %c0_i32_4 = arith.constant 0 : i32
    %9 = arith.cmpi ne, %8, %c0_i32_4 : i32
    scf.if %9 {
      %c0_24 = arith.constant 0 : index
      %19 = memref.load %arg17[%c0_24] : memref<1xi32, #tpu.memory_space<smem>>
      %c0_i32_25 = arith.constant 0 : i32
      %20 = arith.cmpi eq, %19, %c0_i32_25 : i32
      %c8_i32 = arith.constant 8 : i32
      %21 = arith.muli %arg0, %c8_i32 : i32
      %c0_i32_26 = arith.constant 0 : i32
      %22 = arith.addi %21, %c0_i32_26 : i32
      %c16_i32 = arith.constant 16 : i32
      %23 = arith.cmpi slt, %22, %c16_i32 : i32
      %24 = arith.andi %20, %23 : i1
      %25 = arith.extui %24 : i1 to i32
      %c0_i32_27 = arith.constant 0 : i32
      %26 = arith.cmpi ne, %25, %c0_i32_27 : i32
      scf.if %26 {
        %c0_63 = arith.constant 0 : index
        %83 = memref.load %arg16[%c0_63] : memref<1xi32, #tpu.memory_space<smem>>
        %84 = arith.index_cast %83 : i32 to index
        %c0_64 = arith.constant 0 : index
        %c0_65 = arith.constant 0 : index
        %85 = vector.load %arg1[%84, %c0_64, %c0_65] : memref<128x1x32xf32, #tpu.memory_space<vmem>>, vector<1x1x32xf32>
        %86 = vector.shape_cast %85 : vector<1x1x32xf32> to vector<1x32xf32>
        %c0_66 = arith.constant 0 : index
        %c0_67 = arith.constant 0 : index
        %c0_68 = arith.constant 0 : index
        %87 = vector.load %arg12[%c0_66, %c0_67, %c0_68] : memref<2x1x32xf32, #tpu.memory_space<vmem>>, vector<1x1x32xf32>
        %88 = vector.shape_cast %87 : vector<1x1x32xf32> to vector<1x32xf32>
        %c0_69 = arith.constant 0 : index
        %c0_70 = arith.constant 0 : index
        %c0_71 = arith.constant 0 : index
        %89 = vector.load %arg13[%c0_69, %c0_70, %c0_71] : memref<2x1x32xf32, #tpu.memory_space<vmem>>, vector<1x1x32xf32>
        %90 = vector.shape_cast %89 : vector<1x1x32xf32> to vector<1x32xf32>
        %91 = tpu.concatenate %86, %88 in 1 : vector<1x32xf32>, vector<1x32xf32> -> vector<1x64xf32>
        %c0_72 = arith.constant 0 : index
        %c0_73 = arith.constant 0 : index
        %c0_74 = arith.constant 0 : index
        %92 = vector.load %arg2[%c0_72, %c0_73, %c0_74] : memref<2x64x128xf32, #tpu.memory_space<vmem>>, vector<1x64x128xf32>
        %93 = vector.shape_cast %92 : vector<1x64x128xf32> to vector<64x128xf32>
        %cst_75 = arith.constant dense<0.000000e+00> : vector<1x128xf32>
        %94 = tpu.matmul %91, %93, %cst_75 {dimension_numbers = #tpu.dot_dimension_numbers<[1], [0], [0], [1], [0, 0, 1, 1], [], []>} : vector<1x64xf32>, vector<64x128xf32>, vector<1x128xf32> -> vector<1x128xf32>
        %c0_76 = arith.constant 0 : index
        %c0_77 = arith.constant 0 : index
        %c0_78 = arith.constant 0 : index
        %95 = vector.load %arg3[%c0_76, %c0_77, %c0_78] : memref<2x1x128xf32, #tpu.memory_space<vmem>>, vector<1x1x128xf32>
        %96 = vector.shape_cast %95 : vector<1x1x128xf32> to vector<1x128xf32>
        %97 = arith.addf %94, %96 : vector<1x128xf32>
        %98 = vector.extract_strided_slice %97 {offsets = [0, 0], sizes = [1, 32], strides = [1, 1]} : vector<1x128xf32> to vector<1x32xf32>
        %99 = arith.negf %98 : vector<1x32xf32>
        %100 = math.exp %99 : vector<1x32xf32>
        %cst_79 = arith.constant 1.000000e+00 : f32
        %101 = vector.broadcast %cst_79 : f32 to vector<1x32xf32>
        %102 = arith.addf %101, %100 : vector<1x32xf32>
        %103 = arith.divf %101, %102 : vector<1x32xf32>
        %104 = vector.extract_strided_slice %97 {offsets = [0, 32], sizes = [1, 32], strides = [1, 1]} : vector<1x128xf32> to vector<1x32xf32>
        %105 = arith.negf %104 : vector<1x32xf32>
        %106 = math.exp %105 : vector<1x32xf32>
        %cst_80 = arith.constant 1.000000e+00 : f32
        %107 = vector.broadcast %cst_80 : f32 to vector<1x32xf32>
        %108 = arith.addf %107, %106 : vector<1x32xf32>
        %109 = arith.divf %107, %108 : vector<1x32xf32>
        %110 = vector.extract_strided_slice %97 {offsets = [0, 64], sizes = [1, 32], strides = [1, 1]} : vector<1x128xf32> to vector<1x32xf32>
        %111 = math.tanh %110 : vector<1x32xf32>
        %112 = vector.extract_strided_slice %97 {offsets = [0, 96], sizes = [1, 32], strides = [1, 1]} : vector<1x128xf32> to vector<1x32xf32>
        %113 = arith.negf %112 : vector<1x32xf32>
        %114 = math.exp %113 : vector<1x32xf32>
        %cst_81 = arith.constant 1.000000e+00 : f32
        %115 = vector.broadcast %cst_81 : f32 to vector<1x32xf32>
        %116 = arith.addf %115, %114 : vector<1x32xf32>
        %117 = arith.divf %115, %116 : vector<1x32xf32>
        %118 = arith.mulf %109, %90 : vector<1x32xf32>
        %119 = arith.mulf %103, %111 : vector<1x32xf32>
        %120 = arith.addf %118, %119 : vector<1x32xf32>
        %121 = math.tanh %120 : vector<1x32xf32>
        %122 = arith.mulf %117, %121 : vector<1x32xf32>
        %c0_82 = arith.constant 0 : index
        %c0_83 = arith.constant 0 : index
        %c0_84 = arith.constant 0 : index
        %123 = vector.load %arg12[%c0_82, %c0_83, %c0_84] : memref<2x1x32xf32, #tpu.memory_space<vmem>>, vector<1x1x32xf32>
        %124 = vector.shape_cast %123 : vector<1x1x32xf32> to vector<1x32xf32>
        %125 = vector.shape_cast %122 : vector<1x32xf32> to vector<1x1x32xf32>
        tpu.vector_store %arg12[%c0_82, %c0_83, %c0_84], %125 {strides = array<i32>} : memref<2x1x32xf32, #tpu.memory_space<vmem>>, vector<1x1x32xf32>,
        %c0_85 = arith.constant 0 : index
        %c0_86 = arith.constant 0 : index
        %c0_87 = arith.constant 0 : index
        %126 = vector.load %arg13[%c0_85, %c0_86, %c0_87] : memref<2x1x32xf32, #tpu.memory_space<vmem>>, vector<1x1x32xf32>
        %127 = vector.shape_cast %126 : vector<1x1x32xf32> to vector<1x32xf32>
        %128 = vector.shape_cast %120 : vector<1x32xf32> to vector<1x1x32xf32>
        tpu.vector_store %arg13[%c0_85, %c0_86, %c0_87], %128 {strides = array<i32>} : memref<2x1x32xf32, #tpu.memory_space<vmem>>, vector<1x1x32xf32>,
        %c1 = arith.constant 1 : index
        %c0_88 = arith.constant 0 : index
        %c0_89 = arith.constant 0 : index
        %129 = vector.load %arg12[%c1, %c0_88, %c0_89] : memref<2x1x32xf32, #tpu.memory_space<vmem>>, vector<1x1x32xf32>
        %130 = vector.shape_cast %129 : vector<1x1x32xf32> to vector<1x32xf32>
        %c1_90 = arith.constant 1 : index
        %c0_91 = arith.constant 0 : index
        %c0_92 = arith.constant 0 : index
        %131 = vector.load %arg13[%c1_90, %c0_91, %c0_92] : memref<2x1x32xf32, #tpu.memory_space<vmem>>, vector<1x1x32xf32>
        %132 = vector.shape_cast %131 : vector<1x1x32xf32> to vector<1x32xf32>
        %133 = tpu.concatenate %122, %130 in 1 : vector<1x32xf32>, vector<1x32xf32> -> vector<1x64xf32>
        %c1_93 = arith.constant 1 : index
        %c0_94 = arith.constant 0 : index
        %c0_95 = arith.constant 0 : index
        %134 = vector.load %arg2[%c1_93, %c0_94, %c0_95] : memref<2x64x128xf32, #tpu.memory_space<vmem>>, vector<1x64x128xf32>
        %135 = vector.shape_cast %134 : vector<1x64x128xf32> to vector<64x128xf32>
        %cst_96 = arith.constant dense<0.000000e+00> : vector<1x128xf32>
        %136 = tpu.matmul %133, %135, %cst_96 {dimension_numbers = #tpu.dot_dimension_numbers<[1], [0], [0], [1], [0, 0, 1, 1], [], []>} : vector<1x64xf32>, vector<64x128xf32>, vector<1x128xf32> -> vector<1x128xf32>
        %c1_97 = arith.constant 1 : index
        %c0_98 = arith.constant 0 : index
        %c0_99 = arith.constant 0 : index
        %137 = vector.load %arg3[%c1_97, %c0_98, %c0_99] : memref<2x1x128xf32, #tpu.memory_space<vmem>>, vector<1x1x128xf32>
        %138 = vector.shape_cast %137 : vector<1x1x128xf32> to vector<1x128xf32>
        %139 = arith.addf %136, %138 : vector<1x128xf32>
        %140 = vector.extract_strided_slice %139 {offsets = [0, 0], sizes = [1, 32], strides = [1, 1]} : vector<1x128xf32> to vector<1x32xf32>
        %141 = arith.negf %140 : vector<1x32xf32>
        %142 = math.exp %141 : vector<1x32xf32>
        %cst_100 = arith.constant 1.000000e+00 : f32
        %143 = vector.broadcast %cst_100 : f32 to vector<1x32xf32>
        %144 = arith.addf %143, %142 : vector<1x32xf32>
        %145 = arith.divf %143, %144 : vector<1x32xf32>
        %146 = vector.extract_strided_slice %139 {offsets = [0, 32], sizes = [1, 32], strides = [1, 1]} : vector<1x128xf32> to vector<1x32xf32>
        %147 = arith.negf %146 : vector<1x32xf32>
        %148 = math.exp %147 : vector<1x32xf32>
        %cst_101 = arith.constant 1.000000e+00 : f32
        %149 = vector.broadcast %cst_101 : f32 to vector<1x32xf32>
        %150 = arith.addf %149, %148 : vector<1x32xf32>
        %151 = arith.divf %149, %150 : vector<1x32xf32>
        %152 = vector.extract_strided_slice %139 {offsets = [0, 64], sizes = [1, 32], strides = [1, 1]} : vector<1x128xf32> to vector<1x32xf32>
        %153 = math.tanh %152 : vector<1x32xf32>
        %154 = vector.extract_strided_slice %139 {offsets = [0, 96], sizes = [1, 32], strides = [1, 1]} : vector<1x128xf32> to vector<1x32xf32>
        %155 = arith.negf %154 : vector<1x32xf32>
        %156 = math.exp %155 : vector<1x32xf32>
        %cst_102 = arith.constant 1.000000e+00 : f32
        %157 = vector.broadcast %cst_102 : f32 to vector<1x32xf32>
        %158 = arith.addf %157, %156 : vector<1x32xf32>
        %159 = arith.divf %157, %158 : vector<1x32xf32>
        %160 = arith.mulf %151, %132 : vector<1x32xf32>
        %161 = arith.mulf %145, %153 : vector<1x32xf32>
        %162 = arith.addf %160, %161 : vector<1x32xf32>
        %163 = math.tanh %162 : vector<1x32xf32>
        %164 = arith.mulf %159, %163 : vector<1x32xf32>
        %c1_103 = arith.constant 1 : index
        %c0_104 = arith.constant 0 : index
        %c0_105 = arith.constant 0 : index
        %165 = vector.load %arg12[%c1_103, %c0_104, %c0_105] : memref<2x1x32xf32, #tpu.memory_space<vmem>>, vector<1x1x32xf32>
        %166 = vector.shape_cast %165 : vector<1x1x32xf32> to vector<1x32xf32>
        %167 = vector.shape_cast %164 : vector<1x32xf32> to vector<1x1x32xf32>
        tpu.vector_store %arg12[%c1_103, %c0_104, %c0_105], %167 {strides = array<i32>} : memref<2x1x32xf32, #tpu.memory_space<vmem>>, vector<1x1x32xf32>,
        %c1_106 = arith.constant 1 : index
        %c0_107 = arith.constant 0 : index
        %c0_108 = arith.constant 0 : index
        %168 = vector.load %arg13[%c1_106, %c0_107, %c0_108] : memref<2x1x32xf32, #tpu.memory_space<vmem>>, vector<1x1x32xf32>
        %169 = vector.shape_cast %168 : vector<1x1x32xf32> to vector<1x32xf32>
        %170 = vector.shape_cast %162 : vector<1x32xf32> to vector<1x1x32xf32>
        tpu.vector_store %arg13[%c1_106, %c0_107, %c0_108], %170 {strides = array<i32>} : memref<2x1x32xf32, #tpu.memory_space<vmem>>, vector<1x1x32xf32>,
        %c0_109 = arith.constant 0 : index
        %c0_110 = arith.constant 0 : index
        %171 = vector.load %arg4[%c0_109, %c0_110] : memref<32x128xf32, #tpu.memory_space<vmem>>, vector<32x128xf32>
        %cst_111 = arith.constant dense<0.000000e+00> : vector<1x128xf32>
        %172 = tpu.matmul %164, %171, %cst_111 {dimension_numbers = #tpu.dot_dimension_numbers<[1], [0], [0], [1], [0, 0, 1, 1], [], []>} : vector<1x32xf32>, vector<32x128xf32>, vector<1x128xf32> -> vector<1x128xf32>
        %c0_112 = arith.constant 0 : index
        %c0_113 = arith.constant 0 : index
        %173 = vector.load %arg5[%c0_112, %c0_113] : memref<1x128xf32, #tpu.memory_space<vmem>>, vector<1x128xf32>
        %174 = arith.addf %172, %173 : vector<1x128xf32>
        %cst_114 = arith.constant dense<0xFF800000> : vector<1xf32>
        %175 = vector.multi_reduction <maximumf>, %174, %cst_114 [1] : vector<1x128xf32> to vector<1xf32>
        %176 = vector.shape_cast %175 : vector<1xf32> to vector<1x1xf32>
        %177 = vector.broadcast %176 : vector<1x1xf32> to vector<1x128xf32>
        %178 = arith.subf %174, %177 : vector<1x128xf32>
        %179 = math.exp %178 : vector<1x128xf32>
        %cst_115 = arith.constant dense<0.000000e+00> : vector<1xf32>
        %180 = vector.multi_reduction <add>, %179, %cst_115 [1] : vector<1x128xf32> to vector<1xf32>
        %181 = vector.shape_cast %180 : vector<1xf32> to vector<1x1xf32>
        %182 = math.log %181 : vector<1x1xf32>
        %183 = vector.broadcast %182 : vector<1x1xf32> to vector<1x128xf32>
        %184 = arith.subf %178, %183 : vector<1x128xf32>
        %c0_116 = arith.constant 0 : index
        %c0_117 = arith.constant 0 : index
        %185 = vector.load %arg14[%c0_116, %c0_117] : memref<8x128xf32, #tpu.memory_space<vmem>>, vector<1x128xf32>
        tpu.vector_store %arg14[%c0_116, %c0_117], %184 {strides = array<i32>} : memref<8x128xf32, #tpu.memory_space<vmem>>, vector<1x128xf32>,
        %cst_118 = arith.constant dense<0xFF800000> : vector<1xf32>
        %186 = vector.multi_reduction <maximumf>, %184, %cst_118 [1] : vector<1x128xf32> to vector<1xf32>
        %187 = vector.shape_cast %186 : vector<1xf32> to vector<1x1xf32>
        %188 = vector.broadcast %187 : vector<1x1xf32> to vector<1x128xf32>
        %189 = arith.cmpf oge, %184, %188 : vector<1x128xf32>
        %c128_i32 = arith.constant 128 : i32
        %190 = vector.broadcast %c128_i32 : i32 to vector<1x128xi32>
        %191 = arith.select %189, %0, %190 : vector<1x128xi1>, vector<1x128xi32>
        %cst_119 = arith.constant dense<2147483647> : vector<1xi32>
        %192 = vector.multi_reduction <minsi>, %191, %cst_119 [1] : vector<1x128xi32> to vector<1xi32>
        %193 = vector.shape_cast %192 : vector<1xi32> to vector<1x1xi32>
        %c0_120 = arith.constant 0 : index
        %c0_121 = arith.constant 0 : index
        %194 = vector.load %arg15[%c0_120, %c0_121] : memref<1x1xi32, #tpu.memory_space<vmem>>, vector<1x1xi32>
        tpu.vector_store %arg15[%c0_120, %c0_121], %193 {strides = array<i32>} : memref<1x1xi32, #tpu.memory_space<vmem>>, vector<1x1xi32>,
        %c0_122 = arith.constant 0 : index
        %c0_123 = arith.constant 0 : index
        %195 = vector.load %arg15[%c0_122, %c0_123] : memref<1x1xi32, #tpu.memory_space<vmem>>, vector<1x1xi32>
        %196 = vector.extract %195[0, 0] : i32 from vector<1x1xi32>
        %c0_124 = arith.constant 0 : index
        %197 = memref.load %arg16[%c0_124] : memref<1xi32, #tpu.memory_space<smem>>
        memref.store %196, %arg16[%c0_124] : memref<1xi32, #tpu.memory_space<smem>>
        %c5_i32_125 = arith.constant 5 : i32
        %198 = arith.cmpi eq, %196, %c5_i32_125 : i32
        %199 = arith.extui %198 : i1 to i32
        %c0_126 = arith.constant 0 : index
        %200 = memref.load %arg17[%c0_126] : memref<1xi32, #tpu.memory_space<smem>>
        memref.store %199, %arg17[%c0_126] : memref<1xi32, #tpu.memory_space<smem>>
        %c0_127 = arith.constant 0 : index
        %201 = memref.load %arg18[%c0_127] : memref<1xi32, #tpu.memory_space<smem>>
        %c1_i32_128 = arith.constant 1 : i32
        %202 = arith.addi %201, %c1_i32_128 : i32
        %c0_129 = arith.constant 0 : index
        %203 = memref.load %arg18[%c0_129] : memref<1xi32, #tpu.memory_space<smem>>
        memref.store %202, %arg18[%c0_129] : memref<1xi32, #tpu.memory_space<smem>>
      } else {
      }
      %c0_28 = arith.constant 0 : index
      %27 = memref.load %arg17[%c0_28] : memref<1xi32, #tpu.memory_space<smem>>
      %c0_i32_29 = arith.constant 0 : i32
      %28 = arith.cmpi eq, %27, %c0_i32_29 : i32
      %c8_i32_30 = arith.constant 8 : i32
      %29 = arith.muli %arg0, %c8_i32_30 : i32
      %c1_i32 = arith.constant 1 : i32
      %30 = arith.addi %29, %c1_i32 : i32
      %c16_i32_31 = arith.constant 16 : i32
      %31 = arith.cmpi slt, %30, %c16_i32_31 : i32
      %32 = arith.andi %28, %31 : i1
      %33 = arith.extui %32 : i1 to i32
      %c0_i32_32 = arith.constant 0 : i32
      %34 = arith.cmpi ne, %33, %c0_i32_32 : i32
      scf.if %34 {
        %c0_63 = arith.constant 0 : index
        %83 = memref.load %arg16[%c0_63] : memref<1xi32, #tpu.memory_space<smem>>
        %84 = arith.index_cast %83 : i32 to index
        %c0_64 = arith.constant 0 : index
        %c0_65 = arith.constant 0 : index
        %85 = vector.load %arg1[%84, %c0_64, %c0_65] : memref<128x1x32xf32, #tpu.memory_space<vmem>>, vector<1x1x32xf32>
        %86 = vector.shape_cast %85 : vector<1x1x32xf32> to vector<1x32xf32>
        %c0_66 = arith.constant 0 : index
        %c0_67 = arith.constant 0 : index
        %c0_68 = arith.constant 0 : index
        %87 = vector.load %arg12[%c0_66, %c0_67, %c0_68] : memref<2x1x32xf32, #tpu.memory_space<vmem>>, vector<1x1x32xf32>
        %88 = vector.shape_cast %87 : vector<1x1x32xf32> to vector<1x32xf32>
        %c0_69 = arith.constant 0 : index
        %c0_70 = arith.constant 0 : index
        %c0_71 = arith.constant 0 : index
        %89 = vector.load %arg13[%c0_69, %c0_70, %c0_71] : memref<2x1x32xf32, #tpu.memory_space<vmem>>, vector<1x1x32xf32>
        %90 = vector.shape_cast %89 : vector<1x1x32xf32> to vector<1x32xf32>
        %91 = tpu.concatenate %86, %88 in 1 : vector<1x32xf32>, vector<1x32xf32> -> vector<1x64xf32>
        %c0_72 = arith.constant 0 : index
        %c0_73 = arith.constant 0 : index
        %c0_74 = arith.constant 0 : index
        %92 = vector.load %arg2[%c0_72, %c0_73, %c0_74] : memref<2x64x128xf32, #tpu.memory_space<vmem>>, vector<1x64x128xf32>
        %93 = vector.shape_cast %92 : vector<1x64x128xf32> to vector<64x128xf32>
        %cst_75 = arith.constant dense<0.000000e+00> : vector<1x128xf32>
        %94 = tpu.matmul %91, %93, %cst_75 {dimension_numbers = #tpu.dot_dimension_numbers<[1], [0], [0], [1], [0, 0, 1, 1], [], []>} : vector<1x64xf32>, vector<64x128xf32>, vector<1x128xf32> -> vector<1x128xf32>
        %c0_76 = arith.constant 0 : index
        %c0_77 = arith.constant 0 : index
        %c0_78 = arith.constant 0 : index
        %95 = vector.load %arg3[%c0_76, %c0_77, %c0_78] : memref<2x1x128xf32, #tpu.memory_space<vmem>>, vector<1x1x128xf32>
        %96 = vector.shape_cast %95 : vector<1x1x128xf32> to vector<1x128xf32>
        %97 = arith.addf %94, %96 : vector<1x128xf32>
        %98 = vector.extract_strided_slice %97 {offsets = [0, 0], sizes = [1, 32], strides = [1, 1]} : vector<1x128xf32> to vector<1x32xf32>
        %99 = arith.negf %98 : vector<1x32xf32>
        %100 = math.exp %99 : vector<1x32xf32>
        %cst_79 = arith.constant 1.000000e+00 : f32
        %101 = vector.broadcast %cst_79 : f32 to vector<1x32xf32>
        %102 = arith.addf %101, %100 : vector<1x32xf32>
        %103 = arith.divf %101, %102 : vector<1x32xf32>
        %104 = vector.extract_strided_slice %97 {offsets = [0, 32], sizes = [1, 32], strides = [1, 1]} : vector<1x128xf32> to vector<1x32xf32>
        %105 = arith.negf %104 : vector<1x32xf32>
        %106 = math.exp %105 : vector<1x32xf32>
        %cst_80 = arith.constant 1.000000e+00 : f32
        %107 = vector.broadcast %cst_80 : f32 to vector<1x32xf32>
        %108 = arith.addf %107, %106 : vector<1x32xf32>
        %109 = arith.divf %107, %108 : vector<1x32xf32>
        %110 = vector.extract_strided_slice %97 {offsets = [0, 64], sizes = [1, 32], strides = [1, 1]} : vector<1x128xf32> to vector<1x32xf32>
        %111 = math.tanh %110 : vector<1x32xf32>
        %112 = vector.extract_strided_slice %97 {offsets = [0, 96], sizes = [1, 32], strides = [1, 1]} : vector<1x128xf32> to vector<1x32xf32>
        %113 = arith.negf %112 : vector<1x32xf32>
        %114 = math.exp %113 : vector<1x32xf32>
        %cst_81 = arith.constant 1.000000e+00 : f32
        %115 = vector.broadcast %cst_81 : f32 to vector<1x32xf32>
        %116 = arith.addf %115, %114 : vector<1x32xf32>
        %117 = arith.divf %115, %116 : vector<1x32xf32>
        %118 = arith.mulf %109, %90 : vector<1x32xf32>
        %119 = arith.mulf %103, %111 : vector<1x32xf32>
        %120 = arith.addf %118, %119 : vector<1x32xf32>
        %121 = math.tanh %120 : vector<1x32xf32>
        %122 = arith.mulf %117, %121 : vector<1x32xf32>
        %c0_82 = arith.constant 0 : index
        %c0_83 = arith.constant 0 : index
        %c0_84 = arith.constant 0 : index
        %123 = vector.load %arg12[%c0_82, %c0_83, %c0_84] : memref<2x1x32xf32, #tpu.memory_space<vmem>>, vector<1x1x32xf32>
        %124 = vector.shape_cast %123 : vector<1x1x32xf32> to vector<1x32xf32>
        %125 = vector.shape_cast %122 : vector<1x32xf32> to vector<1x1x32xf32>
        tpu.vector_store %arg12[%c0_82, %c0_83, %c0_84], %125 {strides = array<i32>} : memref<2x1x32xf32, #tpu.memory_space<vmem>>, vector<1x1x32xf32>,
        %c0_85 = arith.constant 0 : index
        %c0_86 = arith.constant 0 : index
        %c0_87 = arith.constant 0 : index
        %126 = vector.load %arg13[%c0_85, %c0_86, %c0_87] : memref<2x1x32xf32, #tpu.memory_space<vmem>>, vector<1x1x32xf32>
        %127 = vector.shape_cast %126 : vector<1x1x32xf32> to vector<1x32xf32>
        %128 = vector.shape_cast %120 : vector<1x32xf32> to vector<1x1x32xf32>
        tpu.vector_store %arg13[%c0_85, %c0_86, %c0_87], %128 {strides = array<i32>} : memref<2x1x32xf32, #tpu.memory_space<vmem>>, vector<1x1x32xf32>,
        %c1 = arith.constant 1 : index
        %c0_88 = arith.constant 0 : index
        %c0_89 = arith.constant 0 : index
        %129 = vector.load %arg12[%c1, %c0_88, %c0_89] : memref<2x1x32xf32, #tpu.memory_space<vmem>>, vector<1x1x32xf32>
        %130 = vector.shape_cast %129 : vector<1x1x32xf32> to vector<1x32xf32>
        %c1_90 = arith.constant 1 : index
        %c0_91 = arith.constant 0 : index
        %c0_92 = arith.constant 0 : index
        %131 = vector.load %arg13[%c1_90, %c0_91, %c0_92] : memref<2x1x32xf32, #tpu.memory_space<vmem>>, vector<1x1x32xf32>
        %132 = vector.shape_cast %131 : vector<1x1x32xf32> to vector<1x32xf32>
        %133 = tpu.concatenate %122, %130 in 1 : vector<1x32xf32>, vector<1x32xf32> -> vector<1x64xf32>
        %c1_93 = arith.constant 1 : index
        %c0_94 = arith.constant 0 : index
        %c0_95 = arith.constant 0 : index
        %134 = vector.load %arg2[%c1_93, %c0_94, %c0_95] : memref<2x64x128xf32, #tpu.memory_space<vmem>>, vector<1x64x128xf32>
        %135 = vector.shape_cast %134 : vector<1x64x128xf32> to vector<64x128xf32>
        %cst_96 = arith.constant dense<0.000000e+00> : vector<1x128xf32>
        %136 = tpu.matmul %133, %135, %cst_96 {dimension_numbers = #tpu.dot_dimension_numbers<[1], [0], [0], [1], [0, 0, 1, 1], [], []>} : vector<1x64xf32>, vector<64x128xf32>, vector<1x128xf32> -> vector<1x128xf32>
        %c1_97 = arith.constant 1 : index
        %c0_98 = arith.constant 0 : index
        %c0_99 = arith.constant 0 : index
        %137 = vector.load %arg3[%c1_97, %c0_98, %c0_99] : memref<2x1x128xf32, #tpu.memory_space<vmem>>, vector<1x1x128xf32>
        %138 = vector.shape_cast %137 : vector<1x1x128xf32> to vector<1x128xf32>
        %139 = arith.addf %136, %138 : vector<1x128xf32>
        %140 = vector.extract_strided_slice %139 {offsets = [0, 0], sizes = [1, 32], strides = [1, 1]} : vector<1x128xf32> to vector<1x32xf32>
        %141 = arith.negf %140 : vector<1x32xf32>
        %142 = math.exp %141 : vector<1x32xf32>
        %cst_100 = arith.constant 1.000000e+00 : f32
        %143 = vector.broadcast %cst_100 : f32 to vector<1x32xf32>
        %144 = arith.addf %143, %142 : vector<1x32xf32>
        %145 = arith.divf %143, %144 : vector<1x32xf32>
        %146 = vector.extract_strided_slice %139 {offsets = [0, 32], sizes = [1, 32], strides = [1, 1]} : vector<1x128xf32> to vector<1x32xf32>
        %147 = arith.negf %146 : vector<1x32xf32>
        %148 = math.exp %147 : vector<1x32xf32>
        %cst_101 = arith.constant 1.000000e+00 : f32
        %149 = vector.broadcast %cst_101 : f32 to vector<1x32xf32>
        %150 = arith.addf %149, %148 : vector<1x32xf32>
        %151 = arith.divf %149, %150 : vector<1x32xf32>
        %152 = vector.extract_strided_slice %139 {offsets = [0, 64], sizes = [1, 32], strides = [1, 1]} : vector<1x128xf32> to vector<1x32xf32>
        %153 = math.tanh %152 : vector<1x32xf32>
        %154 = vector.extract_strided_slice %139 {offsets = [0, 96], sizes = [1, 32], strides = [1, 1]} : vector<1x128xf32> to vector<1x32xf32>
        %155 = arith.negf %154 : vector<1x32xf32>
        %156 = math.exp %155 : vector<1x32xf32>
        %cst_102 = arith.constant 1.000000e+00 : f32
        %157 = vector.broadcast %cst_102 : f32 to vector<1x32xf32>
        %158 = arith.addf %157, %156 : vector<1x32xf32>
        %159 = arith.divf %157, %158 : vector<1x32xf32>
        %160 = arith.mulf %151, %132 : vector<1x32xf32>
        %161 = arith.mulf %145, %153 : vector<1x32xf32>
        %162 = arith.addf %160, %161 : vector<1x32xf32>
        %163 = math.tanh %162 : vector<1x32xf32>
        %164 = arith.mulf %159, %163 : vector<1x32xf32>
        %c1_103 = arith.constant 1 : index
        %c0_104 = arith.constant 0 : index
        %c0_105 = arith.constant 0 : index
        %165 = vector.load %arg12[%c1_103, %c0_104, %c0_105] : memref<2x1x32xf32, #tpu.memory_space<vmem>>, vector<1x1x32xf32>
        %166 = vector.shape_cast %165 : vector<1x1x32xf32> to vector<1x32xf32>
        %167 = vector.shape_cast %164 : vector<1x32xf32> to vector<1x1x32xf32>
        tpu.vector_store %arg12[%c1_103, %c0_104, %c0_105], %167 {strides = array<i32>} : memref<2x1x32xf32, #tpu.memory_space<vmem>>, vector<1x1x32xf32>,
        %c1_106 = arith.constant 1 : index
        %c0_107 = arith.constant 0 : index
        %c0_108 = arith.constant 0 : index
        %168 = vector.load %arg13[%c1_106, %c0_107, %c0_108] : memref<2x1x32xf32, #tpu.memory_space<vmem>>, vector<1x1x32xf32>
        %169 = vector.shape_cast %168 : vector<1x1x32xf32> to vector<1x32xf32>
        %170 = vector.shape_cast %162 : vector<1x32xf32> to vector<1x1x32xf32>
        tpu.vector_store %arg13[%c1_106, %c0_107, %c0_108], %170 {strides = array<i32>} : memref<2x1x32xf32, #tpu.memory_space<vmem>>, vector<1x1x32xf32>,
        %c0_109 = arith.constant 0 : index
        %c0_110 = arith.constant 0 : index
        %171 = vector.load %arg4[%c0_109, %c0_110] : memref<32x128xf32, #tpu.memory_space<vmem>>, vector<32x128xf32>
        %cst_111 = arith.constant dense<0.000000e+00> : vector<1x128xf32>
        %172 = tpu.matmul %164, %171, %cst_111 {dimension_numbers = #tpu.dot_dimension_numbers<[1], [0], [0], [1], [0, 0, 1, 1], [], []>} : vector<1x32xf32>, vector<32x128xf32>, vector<1x128xf32> -> vector<1x128xf32>
        %c0_112 = arith.constant 0 : index
        %c0_113 = arith.constant 0 : index
        %173 = vector.load %arg5[%c0_112, %c0_113] : memref<1x128xf32, #tpu.memory_space<vmem>>, vector<1x128xf32>
        %174 = arith.addf %172, %173 : vector<1x128xf32>
        %cst_114 = arith.constant dense<0xFF800000> : vector<1xf32>
        %175 = vector.multi_reduction <maximumf>, %174, %cst_114 [1] : vector<1x128xf32> to vector<1xf32>
        %176 = vector.shape_cast %175 : vector<1xf32> to vector<1x1xf32>
        %177 = vector.broadcast %176 : vector<1x1xf32> to vector<1x128xf32>
        %178 = arith.subf %174, %177 : vector<1x128xf32>
        %179 = math.exp %178 : vector<1x128xf32>
        %cst_115 = arith.constant dense<0.000000e+00> : vector<1xf32>
        %180 = vector.multi_reduction <add>, %179, %cst_115 [1] : vector<1x128xf32> to vector<1xf32>
        %181 = vector.shape_cast %180 : vector<1xf32> to vector<1x1xf32>
        %182 = math.log %181 : vector<1x1xf32>
        %183 = vector.broadcast %182 : vector<1x1xf32> to vector<1x128xf32>
        %184 = arith.subf %178, %183 : vector<1x128xf32>
        %c1_116 = arith.constant 1 : index
        %c0_117 = arith.constant 0 : index
        %185 = vector.load %arg14[%c1_116, %c0_117] : memref<8x128xf32, #tpu.memory_space<vmem>>, vector<1x128xf32>
        tpu.vector_store %arg14[%c1_116, %c0_117], %184 {strides = array<i32>} : memref<8x128xf32, #tpu.memory_space<vmem>>, vector<1x128xf32>,
        %cst_118 = arith.constant dense<0xFF800000> : vector<1xf32>
        %186 = vector.multi_reduction <maximumf>, %184, %cst_118 [1] : vector<1x128xf32> to vector<1xf32>
        %187 = vector.shape_cast %186 : vector<1xf32> to vector<1x1xf32>
        %188 = vector.broadcast %187 : vector<1x1xf32> to vector<1x128xf32>
        %189 = arith.cmpf oge, %184, %188 : vector<1x128xf32>
        %c128_i32 = arith.constant 128 : i32
        %190 = vector.broadcast %c128_i32 : i32 to vector<1x128xi32>
        %191 = arith.select %189, %0, %190 : vector<1x128xi1>, vector<1x128xi32>
        %cst_119 = arith.constant dense<2147483647> : vector<1xi32>
        %192 = vector.multi_reduction <minsi>, %191, %cst_119 [1] : vector<1x128xi32> to vector<1xi32>
        %193 = vector.shape_cast %192 : vector<1xi32> to vector<1x1xi32>
        %c0_120 = arith.constant 0 : index
        %c0_121 = arith.constant 0 : index
        %194 = vector.load %arg15[%c0_120, %c0_121] : memref<1x1xi32, #tpu.memory_space<vmem>>, vector<1x1xi32>
        tpu.vector_store %arg15[%c0_120, %c0_121], %193 {strides = array<i32>} : memref<1x1xi32, #tpu.memory_space<vmem>>, vector<1x1xi32>,
        %c0_122 = arith.constant 0 : index
        %c0_123 = arith.constant 0 : index
        %195 = vector.load %arg15[%c0_122, %c0_123] : memref<1x1xi32, #tpu.memory_space<vmem>>, vector<1x1xi32>
        %196 = vector.extract %195[0, 0] : i32 from vector<1x1xi32>
        %c0_124 = arith.constant 0 : index
        %197 = memref.load %arg16[%c0_124] : memref<1xi32, #tpu.memory_space<smem>>
        memref.store %196, %arg16[%c0_124] : memref<1xi32, #tpu.memory_space<smem>>
        %c5_i32_125 = arith.constant 5 : i32
        %198 = arith.cmpi eq, %196, %c5_i32_125 : i32
        %199 = arith.extui %198 : i1 to i32
        %c0_126 = arith.constant 0 : index
        %200 = memref.load %arg17[%c0_126] : memref<1xi32, #tpu.memory_space<smem>>
        memref.store %199, %arg17[%c0_126] : memref<1xi32, #tpu.memory_space<smem>>
        %c0_127 = arith.constant 0 : index
        %201 = memref.load %arg18[%c0_127] : memref<1xi32, #tpu.memory_space<smem>>
        %c1_i32_128 = arith.constant 1 : i32
        %202 = arith.addi %201, %c1_i32_128 : i32
        %c0_129 = arith.constant 0 : index
        %203 = memref.load %arg18[%c0_129] : memref<1xi32, #tpu.memory_space<smem>>
        memref.store %202, %arg18[%c0_129] : memref<1xi32, #tpu.memory_space<smem>>
      } else {
      }
      %c0_33 = arith.constant 0 : index
      %35 = memref.load %arg17[%c0_33] : memref<1xi32, #tpu.memory_space<smem>>
      %c0_i32_34 = arith.constant 0 : i32
      %36 = arith.cmpi eq, %35, %c0_i32_34 : i32
      %c8_i32_35 = arith.constant 8 : i32
      %37 = arith.muli %arg0, %c8_i32_35 : i32
      %c2_i32 = arith.constant 2 : i32
      %38 = arith.addi %37, %c2_i32 : i32
      %c16_i32_36 = arith.constant 16 : i32
      %39 = arith.cmpi slt, %38, %c16_i32_36 : i32
      %40 = arith.andi %36, %39 : i1
      %41 = arith.extui %40 : i1 to i32
      %c0_i32_37 = arith.constant 0 : i32
      %42 = arith.cmpi ne, %41, %c0_i32_37 : i32
      scf.if %42 {
        %c0_63 = arith.constant 0 : index
        %83 = memref.load %arg16[%c0_63] : memref<1xi32, #tpu.memory_space<smem>>
        %84 = arith.index_cast %83 : i32 to index
        %c0_64 = arith.constant 0 : index
        %c0_65 = arith.constant 0 : index
        %85 = vector.load %arg1[%84, %c0_64, %c0_65] : memref<128x1x32xf32, #tpu.memory_space<vmem>>, vector<1x1x32xf32>
        %86 = vector.shape_cast %85 : vector<1x1x32xf32> to vector<1x32xf32>
        %c0_66 = arith.constant 0 : index
        %c0_67 = arith.constant 0 : index
        %c0_68 = arith.constant 0 : index
        %87 = vector.load %arg12[%c0_66, %c0_67, %c0_68] : memref<2x1x32xf32, #tpu.memory_space<vmem>>, vector<1x1x32xf32>
        %88 = vector.shape_cast %87 : vector<1x1x32xf32> to vector<1x32xf32>
        %c0_69 = arith.constant 0 : index
        %c0_70 = arith.constant 0 : index
        %c0_71 = arith.constant 0 : index
        %89 = vector.load %arg13[%c0_69, %c0_70, %c0_71] : memref<2x1x32xf32, #tpu.memory_space<vmem>>, vector<1x1x32xf32>
        %90 = vector.shape_cast %89 : vector<1x1x32xf32> to vector<1x32xf32>
        %91 = tpu.concatenate %86, %88 in 1 : vector<1x32xf32>, vector<1x32xf32> -> vector<1x64xf32>
        %c0_72 = arith.constant 0 : index
        %c0_73 = arith.constant 0 : index
        %c0_74 = arith.constant 0 : index
        %92 = vector.load %arg2[%c0_72, %c0_73, %c0_74] : memref<2x64x128xf32, #tpu.memory_space<vmem>>, vector<1x64x128xf32>
        %93 = vector.shape_cast %92 : vector<1x64x128xf32> to vector<64x128xf32>
        %cst_75 = arith.constant dense<0.000000e+00> : vector<1x128xf32>
        %94 = tpu.matmul %91, %93, %cst_75 {dimension_numbers = #tpu.dot_dimension_numbers<[1], [0], [0], [1], [0, 0, 1, 1], [], []>} : vector<1x64xf32>, vector<64x128xf32>, vector<1x128xf32> -> vector<1x128xf32>
        %c0_76 = arith.constant 0 : index
        %c0_77 = arith.constant 0 : index
        %c0_78 = arith.constant 0 : index
        %95 = vector.load %arg3[%c0_76, %c0_77, %c0_78] : memref<2x1x128xf32, #tpu.memory_space<vmem>>, vector<1x1x128xf32>
        %96 = vector.shape_cast %95 : vector<1x1x128xf32> to vector<1x128xf32>
        %97 = arith.addf %94, %96 : vector<1x128xf32>
        %98 = vector.extract_strided_slice %97 {offsets = [0, 0], sizes = [1, 32], strides = [1, 1]} : vector<1x128xf32> to vector<1x32xf32>
        %99 = arith.negf %98 : vector<1x32xf32>
        %100 = math.exp %99 : vector<1x32xf32>
        %cst_79 = arith.constant 1.000000e+00 : f32
        %101 = vector.broadcast %cst_79 : f32 to vector<1x32xf32>
        %102 = arith.addf %101, %100 : vector<1x32xf32>
        %103 = arith.divf %101, %102 : vector<1x32xf32>
        %104 = vector.extract_strided_slice %97 {offsets = [0, 32], sizes = [1, 32], strides = [1, 1]} : vector<1x128xf32> to vector<1x32xf32>
        %105 = arith.negf %104 : vector<1x32xf32>
        %106 = math.exp %105 : vector<1x32xf32>
        %cst_80 = arith.constant 1.000000e+00 : f32
        %107 = vector.broadcast %cst_80 : f32 to vector<1x32xf32>
        %108 = arith.addf %107, %106 : vector<1x32xf32>
        %109 = arith.divf %107, %108 : vector<1x32xf32>
        %110 = vector.extract_strided_slice %97 {offsets = [0, 64], sizes = [1, 32], strides = [1, 1]} : vector<1x128xf32> to vector<1x32xf32>
        %111 = math.tanh %110 : vector<1x32xf32>
        %112 = vector.extract_strided_slice %97 {offsets = [0, 96], sizes = [1, 32], strides = [1, 1]} : vector<1x128xf32> to vector<1x32xf32>
        %113 = arith.negf %112 : vector<1x32xf32>
        %114 = math.exp %113 : vector<1x32xf32>
        %cst_81 = arith.constant 1.000000e+00 : f32
        %115 = vector.broadcast %cst_81 : f32 to vector<1x32xf32>
        %116 = arith.addf %115, %114 : vector<1x32xf32>
        %117 = arith.divf %115, %116 : vector<1x32xf32>
        %118 = arith.mulf %109, %90 : vector<1x32xf32>
        %119 = arith.mulf %103, %111 : vector<1x32xf32>
        %120 = arith.addf %118, %119 : vector<1x32xf32>
        %121 = math.tanh %120 : vector<1x32xf32>
        %122 = arith.mulf %117, %121 : vector<1x32xf32>
        %c0_82 = arith.constant 0 : index
        %c0_83 = arith.constant 0 : index
        %c0_84 = arith.constant 0 : index
        %123 = vector.load %arg12[%c0_82, %c0_83, %c0_84] : memref<2x1x32xf32, #tpu.memory_space<vmem>>, vector<1x1x32xf32>
        %124 = vector.shape_cast %123 : vector<1x1x32xf32> to vector<1x32xf32>
        %125 = vector.shape_cast %122 : vector<1x32xf32> to vector<1x1x32xf32>
        tpu.vector_store %arg12[%c0_82, %c0_83, %c0_84], %125 {strides = array<i32>} : memref<2x1x32xf32, #tpu.memory_space<vmem>>, vector<1x1x32xf32>,
        %c0_85 = arith.constant 0 : index
        %c0_86 = arith.constant 0 : index
        %c0_87 = arith.constant 0 : index
        %126 = vector.load %arg13[%c0_85, %c0_86, %c0_87] : memref<2x1x32xf32, #tpu.memory_space<vmem>>, vector<1x1x32xf32>
        %127 = vector.shape_cast %126 : vector<1x1x32xf32> to vector<1x32xf32>
        %128 = vector.shape_cast %120 : vector<1x32xf32> to vector<1x1x32xf32>
        tpu.vector_store %arg13[%c0_85, %c0_86, %c0_87], %128 {strides = array<i32>} : memref<2x1x32xf32, #tpu.memory_space<vmem>>, vector<1x1x32xf32>,
        %c1 = arith.constant 1 : index
        %c0_88 = arith.constant 0 : index
        %c0_89 = arith.constant 0 : index
        %129 = vector.load %arg12[%c1, %c0_88, %c0_89] : memref<2x1x32xf32, #tpu.memory_space<vmem>>, vector<1x1x32xf32>
        %130 = vector.shape_cast %129 : vector<1x1x32xf32> to vector<1x32xf32>
        %c1_90 = arith.constant 1 : index
        %c0_91 = arith.constant 0 : index
        %c0_92 = arith.constant 0 : index
        %131 = vector.load %arg13[%c1_90, %c0_91, %c0_92] : memref<2x1x32xf32, #tpu.memory_space<vmem>>, vector<1x1x32xf32>
        %132 = vector.shape_cast %131 : vector<1x1x32xf32> to vector<1x32xf32>
        %133 = tpu.concatenate %122, %130 in 1 : vector<1x32xf32>, vector<1x32xf32> -> vector<1x64xf32>
        %c1_93 = arith.constant 1 : index
        %c0_94 = arith.constant 0 : index
        %c0_95 = arith.constant 0 : index
        %134 = vector.load %arg2[%c1_93, %c0_94, %c0_95] : memref<2x64x128xf32, #tpu.memory_space<vmem>>, vector<1x64x128xf32>
        %135 = vector.shape_cast %134 : vector<1x64x128xf32> to vector<64x128xf32>
        %cst_96 = arith.constant dense<0.000000e+00> : vector<1x128xf32>
        %136 = tpu.matmul %133, %135, %cst_96 {dimension_numbers = #tpu.dot_dimension_numbers<[1], [0], [0], [1], [0, 0, 1, 1], [], []>} : vector<1x64xf32>, vector<64x128xf32>, vector<1x128xf32> -> vector<1x128xf32>
        %c1_97 = arith.constant 1 : index
        %c0_98 = arith.constant 0 : index
        %c0_99 = arith.constant 0 : index
        %137 = vector.load %arg3[%c1_97, %c0_98, %c0_99] : memref<2x1x128xf32, #tpu.memory_space<vmem>>, vector<1x1x128xf32>
        %138 = vector.shape_cast %137 : vector<1x1x128xf32> to vector<1x128xf32>
        %139 = arith.addf %136, %138 : vector<1x128xf32>
        %140 = vector.extract_strided_slice %139 {offsets = [0, 0], sizes = [1, 32], strides = [1, 1]} : vector<1x128xf32> to vector<1x32xf32>
        %141 = arith.negf %140 : vector<1x32xf32>
        %142 = math.exp %141 : vector<1x32xf32>
        %cst_100 = arith.constant 1.000000e+00 : f32
        %143 = vector.broadcast %cst_100 : f32 to vector<1x32xf32>
        %144 = arith.addf %143, %142 : vector<1x32xf32>
        %145 = arith.divf %143, %144 : vector<1x32xf32>
        %146 = vector.extract_strided_slice %139 {offsets = [0, 32], sizes = [1, 32], strides = [1, 1]} : vector<1x128xf32> to vector<1x32xf32>
        %147 = arith.negf %146 : vector<1x32xf32>
        %148 = math.exp %147 : vector<1x32xf32>
        %cst_101 = arith.constant 1.000000e+00 : f32
        %149 = vector.broadcast %cst_101 : f32 to vector<1x32xf32>
        %150 = arith.addf %149, %148 : vector<1x32xf32>
        %151 = arith.divf %149, %150 : vector<1x32xf32>
        %152 = vector.extract_strided_slice %139 {offsets = [0, 64], sizes = [1, 32], strides = [1, 1]} : vector<1x128xf32> to vector<1x32xf32>
        %153 = math.tanh %152 : vector<1x32xf32>
        %154 = vector.extract_strided_slice %139 {offsets = [0, 96], sizes = [1, 32], strides = [1, 1]} : vector<1x128xf32> to vector<1x32xf32>
        %155 = arith.negf %154 : vector<1x32xf32>
        %156 = math.exp %155 : vector<1x32xf32>
        %cst_102 = arith.constant 1.000000e+00 : f32
        %157 = vector.broadcast %cst_102 : f32 to vector<1x32xf32>
        %158 = arith.addf %157, %156 : vector<1x32xf32>
        %159 = arith.divf %157, %158 : vector<1x32xf32>
        %160 = arith.mulf %151, %132 : vector<1x32xf32>
        %161 = arith.mulf %145, %153 : vector<1x32xf32>
        %162 = arith.addf %160, %161 : vector<1x32xf32>
        %163 = math.tanh %162 : vector<1x32xf32>
        %164 = arith.mulf %159, %163 : vector<1x32xf32>
        %c1_103 = arith.constant 1 : index
        %c0_104 = arith.constant 0 : index
        %c0_105 = arith.constant 0 : index
        %165 = vector.load %arg12[%c1_103, %c0_104, %c0_105] : memref<2x1x32xf32, #tpu.memory_space<vmem>>, vector<1x1x32xf32>
        %166 = vector.shape_cast %165 : vector<1x1x32xf32> to vector<1x32xf32>
        %167 = vector.shape_cast %164 : vector<1x32xf32> to vector<1x1x32xf32>
        tpu.vector_store %arg12[%c1_103, %c0_104, %c0_105], %167 {strides = array<i32>} : memref<2x1x32xf32, #tpu.memory_space<vmem>>, vector<1x1x32xf32>,
        %c1_106 = arith.constant 1 : index
        %c0_107 = arith.constant 0 : index
        %c0_108 = arith.constant 0 : index
        %168 = vector.load %arg13[%c1_106, %c0_107, %c0_108] : memref<2x1x32xf32, #tpu.memory_space<vmem>>, vector<1x1x32xf32>
        %169 = vector.shape_cast %168 : vector<1x1x32xf32> to vector<1x32xf32>
        %170 = vector.shape_cast %162 : vector<1x32xf32> to vector<1x1x32xf32>
        tpu.vector_store %arg13[%c1_106, %c0_107, %c0_108], %170 {strides = array<i32>} : memref<2x1x32xf32, #tpu.memory_space<vmem>>, vector<1x1x32xf32>,
        %c0_109 = arith.constant 0 : index
        %c0_110 = arith.constant 0 : index
        %171 = vector.load %arg4[%c0_109, %c0_110] : memref<32x128xf32, #tpu.memory_space<vmem>>, vector<32x128xf32>
        %cst_111 = arith.constant dense<0.000000e+00> : vector<1x128xf32>
        %172 = tpu.matmul %164, %171, %cst_111 {dimension_numbers = #tpu.dot_dimension_numbers<[1], [0], [0], [1], [0, 0, 1, 1], [], []>} : vector<1x32xf32>, vector<32x128xf32>, vector<1x128xf32> -> vector<1x128xf32>
        %c0_112 = arith.constant 0 : index
        %c0_113 = arith.constant 0 : index
        %173 = vector.load %arg5[%c0_112, %c0_113] : memref<1x128xf32, #tpu.memory_space<vmem>>, vector<1x128xf32>
        %174 = arith.addf %172, %173 : vector<1x128xf32>
        %cst_114 = arith.constant dense<0xFF800000> : vector<1xf32>
        %175 = vector.multi_reduction <maximumf>, %174, %cst_114 [1] : vector<1x128xf32> to vector<1xf32>
        %176 = vector.shape_cast %175 : vector<1xf32> to vector<1x1xf32>
        %177 = vector.broadcast %176 : vector<1x1xf32> to vector<1x128xf32>
        %178 = arith.subf %174, %177 : vector<1x128xf32>
        %179 = math.exp %178 : vector<1x128xf32>
        %cst_115 = arith.constant dense<0.000000e+00> : vector<1xf32>
        %180 = vector.multi_reduction <add>, %179, %cst_115 [1] : vector<1x128xf32> to vector<1xf32>
        %181 = vector.shape_cast %180 : vector<1xf32> to vector<1x1xf32>
        %182 = math.log %181 : vector<1x1xf32>
        %183 = vector.broadcast %182 : vector<1x1xf32> to vector<1x128xf32>
        %184 = arith.subf %178, %183 : vector<1x128xf32>
        %c2 = arith.constant 2 : index
        %c0_116 = arith.constant 0 : index
        %185 = vector.load %arg14[%c2, %c0_116] : memref<8x128xf32, #tpu.memory_space<vmem>>, vector<1x128xf32>
        tpu.vector_store %arg14[%c2, %c0_116], %184 {strides = array<i32>} : memref<8x128xf32, #tpu.memory_space<vmem>>, vector<1x128xf32>,
        %cst_117 = arith.constant dense<0xFF800000> : vector<1xf32>
        %186 = vector.multi_reduction <maximumf>, %184, %cst_117 [1] : vector<1x128xf32> to vector<1xf32>
        %187 = vector.shape_cast %186 : vector<1xf32> to vector<1x1xf32>
        %188 = vector.broadcast %187 : vector<1x1xf32> to vector<1x128xf32>
        %189 = arith.cmpf oge, %184, %188 : vector<1x128xf32>
        %c128_i32 = arith.constant 128 : i32
        %190 = vector.broadcast %c128_i32 : i32 to vector<1x128xi32>
        %191 = arith.select %189, %0, %190 : vector<1x128xi1>, vector<1x128xi32>
        %cst_118 = arith.constant dense<2147483647> : vector<1xi32>
        %192 = vector.multi_reduction <minsi>, %191, %cst_118 [1] : vector<1x128xi32> to vector<1xi32>
        %193 = vector.shape_cast %192 : vector<1xi32> to vector<1x1xi32>
        %c0_119 = arith.constant 0 : index
        %c0_120 = arith.constant 0 : index
        %194 = vector.load %arg15[%c0_119, %c0_120] : memref<1x1xi32, #tpu.memory_space<vmem>>, vector<1x1xi32>
        tpu.vector_store %arg15[%c0_119, %c0_120], %193 {strides = array<i32>} : memref<1x1xi32, #tpu.memory_space<vmem>>, vector<1x1xi32>,
        %c0_121 = arith.constant 0 : index
        %c0_122 = arith.constant 0 : index
        %195 = vector.load %arg15[%c0_121, %c0_122] : memref<1x1xi32, #tpu.memory_space<vmem>>, vector<1x1xi32>
        %196 = vector.extract %195[0, 0] : i32 from vector<1x1xi32>
        %c0_123 = arith.constant 0 : index
        %197 = memref.load %arg16[%c0_123] : memref<1xi32, #tpu.memory_space<smem>>
        memref.store %196, %arg16[%c0_123] : memref<1xi32, #tpu.memory_space<smem>>
        %c5_i32_124 = arith.constant 5 : i32
        %198 = arith.cmpi eq, %196, %c5_i32_124 : i32
        %199 = arith.extui %198 : i1 to i32
        %c0_125 = arith.constant 0 : index
        %200 = memref.load %arg17[%c0_125] : memref<1xi32, #tpu.memory_space<smem>>
        memref.store %199, %arg17[%c0_125] : memref<1xi32, #tpu.memory_space<smem>>
        %c0_126 = arith.constant 0 : index
        %201 = memref.load %arg18[%c0_126] : memref<1xi32, #tpu.memory_space<smem>>
        %c1_i32_127 = arith.constant 1 : i32
        %202 = arith.addi %201, %c1_i32_127 : i32
        %c0_128 = arith.constant 0 : index
        %203 = memref.load %arg18[%c0_128] : memref<1xi32, #tpu.memory_space<smem>>
        memref.store %202, %arg18[%c0_128] : memref<1xi32, #tpu.memory_space<smem>>
      } else {
      }
      %c0_38 = arith.constant 0 : index
      %43 = memref.load %arg17[%c0_38] : memref<1xi32, #tpu.memory_space<smem>>
      %c0_i32_39 = arith.constant 0 : i32
      %44 = arith.cmpi eq, %43, %c0_i32_39 : i32
      %c8_i32_40 = arith.constant 8 : i32
      %45 = arith.muli %arg0, %c8_i32_40 : i32
      %c3_i32 = arith.constant 3 : i32
      %46 = arith.addi %45, %c3_i32 : i32
      %c16_i32_41 = arith.constant 16 : i32
      %47 = arith.cmpi slt, %46, %c16_i32_41 : i32
      %48 = arith.andi %44, %47 : i1
      %49 = arith.extui %48 : i1 to i32
      %c0_i32_42 = arith.constant 0 : i32
      %50 = arith.cmpi ne, %49, %c0_i32_42 : i32
      scf.if %50 {
        %c0_63 = arith.constant 0 : index
        %83 = memref.load %arg16[%c0_63] : memref<1xi32, #tpu.memory_space<smem>>
        %84 = arith.index_cast %83 : i32 to index
        %c0_64 = arith.constant 0 : index
        %c0_65 = arith.constant 0 : index
        %85 = vector.load %arg1[%84, %c0_64, %c0_65] : memref<128x1x32xf32, #tpu.memory_space<vmem>>, vector<1x1x32xf32>
        %86 = vector.shape_cast %85 : vector<1x1x32xf32> to vector<1x32xf32>
        %c0_66 = arith.constant 0 : index
        %c0_67 = arith.constant 0 : index
        %c0_68 = arith.constant 0 : index
        %87 = vector.load %arg12[%c0_66, %c0_67, %c0_68] : memref<2x1x32xf32, #tpu.memory_space<vmem>>, vector<1x1x32xf32>
        %88 = vector.shape_cast %87 : vector<1x1x32xf32> to vector<1x32xf32>
        %c0_69 = arith.constant 0 : index
        %c0_70 = arith.constant 0 : index
        %c0_71 = arith.constant 0 : index
        %89 = vector.load %arg13[%c0_69, %c0_70, %c0_71] : memref<2x1x32xf32, #tpu.memory_space<vmem>>, vector<1x1x32xf32>
        %90 = vector.shape_cast %89 : vector<1x1x32xf32> to vector<1x32xf32>
        %91 = tpu.concatenate %86, %88 in 1 : vector<1x32xf32>, vector<1x32xf32> -> vector<1x64xf32>
        %c0_72 = arith.constant 0 : index
        %c0_73 = arith.constant 0 : index
        %c0_74 = arith.constant 0 : index
        %92 = vector.load %arg2[%c0_72, %c0_73, %c0_74] : memref<2x64x128xf32, #tpu.memory_space<vmem>>, vector<1x64x128xf32>
        %93 = vector.shape_cast %92 : vector<1x64x128xf32> to vector<64x128xf32>
        %cst_75 = arith.constant dense<0.000000e+00> : vector<1x128xf32>
        %94 = tpu.matmul %91, %93, %cst_75 {dimension_numbers = #tpu.dot_dimension_numbers<[1], [0], [0], [1], [0, 0, 1, 1], [], []>} : vector<1x64xf32>, vector<64x128xf32>, vector<1x128xf32> -> vector<1x128xf32>
        %c0_76 = arith.constant 0 : index
        %c0_77 = arith.constant 0 : index
        %c0_78 = arith.constant 0 : index
        %95 = vector.load %arg3[%c0_76, %c0_77, %c0_78] : memref<2x1x128xf32, #tpu.memory_space<vmem>>, vector<1x1x128xf32>
        %96 = vector.shape_cast %95 : vector<1x1x128xf32> to vector<1x128xf32>
        %97 = arith.addf %94, %96 : vector<1x128xf32>
        %98 = vector.extract_strided_slice %97 {offsets = [0, 0], sizes = [1, 32], strides = [1, 1]} : vector<1x128xf32> to vector<1x32xf32>
        %99 = arith.negf %98 : vector<1x32xf32>
        %100 = math.exp %99 : vector<1x32xf32>
        %cst_79 = arith.constant 1.000000e+00 : f32
        %101 = vector.broadcast %cst_79 : f32 to vector<1x32xf32>
        %102 = arith.addf %101, %100 : vector<1x32xf32>
        %103 = arith.divf %101, %102 : vector<1x32xf32>
        %104 = vector.extract_strided_slice %97 {offsets = [0, 32], sizes = [1, 32], strides = [1, 1]} : vector<1x128xf32> to vector<1x32xf32>
        %105 = arith.negf %104 : vector<1x32xf32>
        %106 = math.exp %105 : vector<1x32xf32>
        %cst_80 = arith.constant 1.000000e+00 : f32
        %107 = vector.broadcast %cst_80 : f32 to vector<1x32xf32>
        %108 = arith.addf %107, %106 : vector<1x32xf32>
        %109 = arith.divf %107, %108 : vector<1x32xf32>
        %110 = vector.extract_strided_slice %97 {offsets = [0, 64], sizes = [1, 32], strides = [1, 1]} : vector<1x128xf32> to vector<1x32xf32>
        %111 = math.tanh %110 : vector<1x32xf32>
        %112 = vector.extract_strided_slice %97 {offsets = [0, 96], sizes = [1, 32], strides = [1, 1]} : vector<1x128xf32> to vector<1x32xf32>
        %113 = arith.negf %112 : vector<1x32xf32>
        %114 = math.exp %113 : vector<1x32xf32>
        %cst_81 = arith.constant 1.000000e+00 : f32
        %115 = vector.broadcast %cst_81 : f32 to vector<1x32xf32>
        %116 = arith.addf %115, %114 : vector<1x32xf32>
        %117 = arith.divf %115, %116 : vector<1x32xf32>
        %118 = arith.mulf %109, %90 : vector<1x32xf32>
        %119 = arith.mulf %103, %111 : vector<1x32xf32>
        %120 = arith.addf %118, %119 : vector<1x32xf32>
        %121 = math.tanh %120 : vector<1x32xf32>
        %122 = arith.mulf %117, %121 : vector<1x32xf32>
        %c0_82 = arith.constant 0 : index
        %c0_83 = arith.constant 0 : index
        %c0_84 = arith.constant 0 : index
        %123 = vector.load %arg12[%c0_82, %c0_83, %c0_84] : memref<2x1x32xf32, #tpu.memory_space<vmem>>, vector<1x1x32xf32>
        %124 = vector.shape_cast %123 : vector<1x1x32xf32> to vector<1x32xf32>
        %125 = vector.shape_cast %122 : vector<1x32xf32> to vector<1x1x32xf32>
        tpu.vector_store %arg12[%c0_82, %c0_83, %c0_84], %125 {strides = array<i32>} : memref<2x1x32xf32, #tpu.memory_space<vmem>>, vector<1x1x32xf32>,
        %c0_85 = arith.constant 0 : index
        %c0_86 = arith.constant 0 : index
        %c0_87 = arith.constant 0 : index
        %126 = vector.load %arg13[%c0_85, %c0_86, %c0_87] : memref<2x1x32xf32, #tpu.memory_space<vmem>>, vector<1x1x32xf32>
        %127 = vector.shape_cast %126 : vector<1x1x32xf32> to vector<1x32xf32>
        %128 = vector.shape_cast %120 : vector<1x32xf32> to vector<1x1x32xf32>
        tpu.vector_store %arg13[%c0_85, %c0_86, %c0_87], %128 {strides = array<i32>} : memref<2x1x32xf32, #tpu.memory_space<vmem>>, vector<1x1x32xf32>,
        %c1 = arith.constant 1 : index
        %c0_88 = arith.constant 0 : index
        %c0_89 = arith.constant 0 : index
        %129 = vector.load %arg12[%c1, %c0_88, %c0_89] : memref<2x1x32xf32, #tpu.memory_space<vmem>>, vector<1x1x32xf32>
        %130 = vector.shape_cast %129 : vector<1x1x32xf32> to vector<1x32xf32>
        %c1_90 = arith.constant 1 : index
        %c0_91 = arith.constant 0 : index
        %c0_92 = arith.constant 0 : index
        %131 = vector.load %arg13[%c1_90, %c0_91, %c0_92] : memref<2x1x32xf32, #tpu.memory_space<vmem>>, vector<1x1x32xf32>
        %132 = vector.shape_cast %131 : vector<1x1x32xf32> to vector<1x32xf32>
        %133 = tpu.concatenate %122, %130 in 1 : vector<1x32xf32>, vector<1x32xf32> -> vector<1x64xf32>
        %c1_93 = arith.constant 1 : index
        %c0_94 = arith.constant 0 : index
        %c0_95 = arith.constant 0 : index
        %134 = vector.load %arg2[%c1_93, %c0_94, %c0_95] : memref<2x64x128xf32, #tpu.memory_space<vmem>>, vector<1x64x128xf32>
        %135 = vector.shape_cast %134 : vector<1x64x128xf32> to vector<64x128xf32>
        %cst_96 = arith.constant dense<0.000000e+00> : vector<1x128xf32>
        %136 = tpu.matmul %133, %135, %cst_96 {dimension_numbers = #tpu.dot_dimension_numbers<[1], [0], [0], [1], [0, 0, 1, 1], [], []>} : vector<1x64xf32>, vector<64x128xf32>, vector<1x128xf32> -> vector<1x128xf32>
        %c1_97 = arith.constant 1 : index
        %c0_98 = arith.constant 0 : index
        %c0_99 = arith.constant 0 : index
        %137 = vector.load %arg3[%c1_97, %c0_98, %c0_99] : memref<2x1x128xf32, #tpu.memory_space<vmem>>, vector<1x1x128xf32>
        %138 = vector.shape_cast %137 : vector<1x1x128xf32> to vector<1x128xf32>
        %139 = arith.addf %136, %138 : vector<1x128xf32>
        %140 = vector.extract_strided_slice %139 {offsets = [0, 0], sizes = [1, 32], strides = [1, 1]} : vector<1x128xf32> to vector<1x32xf32>
        %141 = arith.negf %140 : vector<1x32xf32>
        %142 = math.exp %141 : vector<1x32xf32>
        %cst_100 = arith.constant 1.000000e+00 : f32
        %143 = vector.broadcast %cst_100 : f32 to vector<1x32xf32>
        %144 = arith.addf %143, %142 : vector<1x32xf32>
        %145 = arith.divf %143, %144 : vector<1x32xf32>
        %146 = vector.extract_strided_slice %139 {offsets = [0, 32], sizes = [1, 32], strides = [1, 1]} : vector<1x128xf32> to vector<1x32xf32>
        %147 = arith.negf %146 : vector<1x32xf32>
        %148 = math.exp %147 : vector<1x32xf32>
        %cst_101 = arith.constant 1.000000e+00 : f32
        %149 = vector.broadcast %cst_101 : f32 to vector<1x32xf32>
        %150 = arith.addf %149, %148 : vector<1x32xf32>
        %151 = arith.divf %149, %150 : vector<1x32xf32>
        %152 = vector.extract_strided_slice %139 {offsets = [0, 64], sizes = [1, 32], strides = [1, 1]} : vector<1x128xf32> to vector<1x32xf32>
        %153 = math.tanh %152 : vector<1x32xf32>
        %154 = vector.extract_strided_slice %139 {offsets = [0, 96], sizes = [1, 32], strides = [1, 1]} : vector<1x128xf32> to vector<1x32xf32>
        %155 = arith.negf %154 : vector<1x32xf32>
        %156 = math.exp %155 : vector<1x32xf32>
        %cst_102 = arith.constant 1.000000e+00 : f32
        %157 = vector.broadcast %cst_102 : f32 to vector<1x32xf32>
        %158 = arith.addf %157, %156 : vector<1x32xf32>
        %159 = arith.divf %157, %158 : vector<1x32xf32>
        %160 = arith.mulf %151, %132 : vector<1x32xf32>
        %161 = arith.mulf %145, %153 : vector<1x32xf32>
        %162 = arith.addf %160, %161 : vector<1x32xf32>
        %163 = math.tanh %162 : vector<1x32xf32>
        %164 = arith.mulf %159, %163 : vector<1x32xf32>
        %c1_103 = arith.constant 1 : index
        %c0_104 = arith.constant 0 : index
        %c0_105 = arith.constant 0 : index
        %165 = vector.load %arg12[%c1_103, %c0_104, %c0_105] : memref<2x1x32xf32, #tpu.memory_space<vmem>>, vector<1x1x32xf32>
        %166 = vector.shape_cast %165 : vector<1x1x32xf32> to vector<1x32xf32>
        %167 = vector.shape_cast %164 : vector<1x32xf32> to vector<1x1x32xf32>
        tpu.vector_store %arg12[%c1_103, %c0_104, %c0_105], %167 {strides = array<i32>} : memref<2x1x32xf32, #tpu.memory_space<vmem>>, vector<1x1x32xf32>,
        %c1_106 = arith.constant 1 : index
        %c0_107 = arith.constant 0 : index
        %c0_108 = arith.constant 0 : index
        %168 = vector.load %arg13[%c1_106, %c0_107, %c0_108] : memref<2x1x32xf32, #tpu.memory_space<vmem>>, vector<1x1x32xf32>
        %169 = vector.shape_cast %168 : vector<1x1x32xf32> to vector<1x32xf32>
        %170 = vector.shape_cast %162 : vector<1x32xf32> to vector<1x1x32xf32>
        tpu.vector_store %arg13[%c1_106, %c0_107, %c0_108], %170 {strides = array<i32>} : memref<2x1x32xf32, #tpu.memory_space<vmem>>, vector<1x1x32xf32>,
        %c0_109 = arith.constant 0 : index
        %c0_110 = arith.constant 0 : index
        %171 = vector.load %arg4[%c0_109, %c0_110] : memref<32x128xf32, #tpu.memory_space<vmem>>, vector<32x128xf32>
        %cst_111 = arith.constant dense<0.000000e+00> : vector<1x128xf32>
        %172 = tpu.matmul %164, %171, %cst_111 {dimension_numbers = #tpu.dot_dimension_numbers<[1], [0], [0], [1], [0, 0, 1, 1], [], []>} : vector<1x32xf32>, vector<32x128xf32>, vector<1x128xf32> -> vector<1x128xf32>
        %c0_112 = arith.constant 0 : index
        %c0_113 = arith.constant 0 : index
        %173 = vector.load %arg5[%c0_112, %c0_113] : memref<1x128xf32, #tpu.memory_space<vmem>>, vector<1x128xf32>
        %174 = arith.addf %172, %173 : vector<1x128xf32>
        %cst_114 = arith.constant dense<0xFF800000> : vector<1xf32>
        %175 = vector.multi_reduction <maximumf>, %174, %cst_114 [1] : vector<1x128xf32> to vector<1xf32>
        %176 = vector.shape_cast %175 : vector<1xf32> to vector<1x1xf32>
        %177 = vector.broadcast %176 : vector<1x1xf32> to vector<1x128xf32>
        %178 = arith.subf %174, %177 : vector<1x128xf32>
        %179 = math.exp %178 : vector<1x128xf32>
        %cst_115 = arith.constant dense<0.000000e+00> : vector<1xf32>
        %180 = vector.multi_reduction <add>, %179, %cst_115 [1] : vector<1x128xf32> to vector<1xf32>
        %181 = vector.shape_cast %180 : vector<1xf32> to vector<1x1xf32>
        %182 = math.log %181 : vector<1x1xf32>
        %183 = vector.broadcast %182 : vector<1x1xf32> to vector<1x128xf32>
        %184 = arith.subf %178, %183 : vector<1x128xf32>
        %c3 = arith.constant 3 : index
        %c0_116 = arith.constant 0 : index
        %185 = vector.load %arg14[%c3, %c0_116] : memref<8x128xf32, #tpu.memory_space<vmem>>, vector<1x128xf32>
        tpu.vector_store %arg14[%c3, %c0_116], %184 {strides = array<i32>} : memref<8x128xf32, #tpu.memory_space<vmem>>, vector<1x128xf32>,
        %cst_117 = arith.constant dense<0xFF800000> : vector<1xf32>
        %186 = vector.multi_reduction <maximumf>, %184, %cst_117 [1] : vector<1x128xf32> to vector<1xf32>
        %187 = vector.shape_cast %186 : vector<1xf32> to vector<1x1xf32>
        %188 = vector.broadcast %187 : vector<1x1xf32> to vector<1x128xf32>
        %189 = arith.cmpf oge, %184, %188 : vector<1x128xf32>
        %c128_i32 = arith.constant 128 : i32
        %190 = vector.broadcast %c128_i32 : i32 to vector<1x128xi32>
        %191 = arith.select %189, %0, %190 : vector<1x128xi1>, vector<1x128xi32>
        %cst_118 = arith.constant dense<2147483647> : vector<1xi32>
        %192 = vector.multi_reduction <minsi>, %191, %cst_118 [1] : vector<1x128xi32> to vector<1xi32>
        %193 = vector.shape_cast %192 : vector<1xi32> to vector<1x1xi32>
        %c0_119 = arith.constant 0 : index
        %c0_120 = arith.constant 0 : index
        %194 = vector.load %arg15[%c0_119, %c0_120] : memref<1x1xi32, #tpu.memory_space<vmem>>, vector<1x1xi32>
        tpu.vector_store %arg15[%c0_119, %c0_120], %193 {strides = array<i32>} : memref<1x1xi32, #tpu.memory_space<vmem>>, vector<1x1xi32>,
        %c0_121 = arith.constant 0 : index
        %c0_122 = arith.constant 0 : index
        %195 = vector.load %arg15[%c0_121, %c0_122] : memref<1x1xi32, #tpu.memory_space<vmem>>, vector<1x1xi32>
        %196 = vector.extract %195[0, 0] : i32 from vector<1x1xi32>
        %c0_123 = arith.constant 0 : index
        %197 = memref.load %arg16[%c0_123] : memref<1xi32, #tpu.memory_space<smem>>
        memref.store %196, %arg16[%c0_123] : memref<1xi32, #tpu.memory_space<smem>>
        %c5_i32_124 = arith.constant 5 : i32
        %198 = arith.cmpi eq, %196, %c5_i32_124 : i32
        %199 = arith.extui %198 : i1 to i32
        %c0_125 = arith.constant 0 : index
        %200 = memref.load %arg17[%c0_125] : memref<1xi32, #tpu.memory_space<smem>>
        memref.store %199, %arg17[%c0_125] : memref<1xi32, #tpu.memory_space<smem>>
        %c0_126 = arith.constant 0 : index
        %201 = memref.load %arg18[%c0_126] : memref<1xi32, #tpu.memory_space<smem>>
        %c1_i32_127 = arith.constant 1 : i32
        %202 = arith.addi %201, %c1_i32_127 : i32
        %c0_128 = arith.constant 0 : index
        %203 = memref.load %arg18[%c0_128] : memref<1xi32, #tpu.memory_space<smem>>
        memref.store %202, %arg18[%c0_128] : memref<1xi32, #tpu.memory_space<smem>>
      } else {
      }
      %c0_43 = arith.constant 0 : index
      %51 = memref.load %arg17[%c0_43] : memref<1xi32, #tpu.memory_space<smem>>
      %c0_i32_44 = arith.constant 0 : i32
      %52 = arith.cmpi eq, %51, %c0_i32_44 : i32
      %c8_i32_45 = arith.constant 8 : i32
      %53 = arith.muli %arg0, %c8_i32_45 : i32
      %c4_i32 = arith.constant 4 : i32
      %54 = arith.addi %53, %c4_i32 : i32
      %c16_i32_46 = arith.constant 16 : i32
      %55 = arith.cmpi slt, %54, %c16_i32_46 : i32
      %56 = arith.andi %52, %55 : i1
      %57 = arith.extui %56 : i1 to i32
      %c0_i32_47 = arith.constant 0 : i32
      %58 = arith.cmpi ne, %57, %c0_i32_47 : i32
      scf.if %58 {
        %c0_63 = arith.constant 0 : index
        %83 = memref.load %arg16[%c0_63] : memref<1xi32, #tpu.memory_space<smem>>
        %84 = arith.index_cast %83 : i32 to index
        %c0_64 = arith.constant 0 : index
        %c0_65 = arith.constant 0 : index
        %85 = vector.load %arg1[%84, %c0_64, %c0_65] : memref<128x1x32xf32, #tpu.memory_space<vmem>>, vector<1x1x32xf32>
        %86 = vector.shape_cast %85 : vector<1x1x32xf32> to vector<1x32xf32>
        %c0_66 = arith.constant 0 : index
        %c0_67 = arith.constant 0 : index
        %c0_68 = arith.constant 0 : index
        %87 = vector.load %arg12[%c0_66, %c0_67, %c0_68] : memref<2x1x32xf32, #tpu.memory_space<vmem>>, vector<1x1x32xf32>
        %88 = vector.shape_cast %87 : vector<1x1x32xf32> to vector<1x32xf32>
        %c0_69 = arith.constant 0 : index
        %c0_70 = arith.constant 0 : index
        %c0_71 = arith.constant 0 : index
        %89 = vector.load %arg13[%c0_69, %c0_70, %c0_71] : memref<2x1x32xf32, #tpu.memory_space<vmem>>, vector<1x1x32xf32>
        %90 = vector.shape_cast %89 : vector<1x1x32xf32> to vector<1x32xf32>
        %91 = tpu.concatenate %86, %88 in 1 : vector<1x32xf32>, vector<1x32xf32> -> vector<1x64xf32>
        %c0_72 = arith.constant 0 : index
        %c0_73 = arith.constant 0 : index
        %c0_74 = arith.constant 0 : index
        %92 = vector.load %arg2[%c0_72, %c0_73, %c0_74] : memref<2x64x128xf32, #tpu.memory_space<vmem>>, vector<1x64x128xf32>
        %93 = vector.shape_cast %92 : vector<1x64x128xf32> to vector<64x128xf32>
        %cst_75 = arith.constant dense<0.000000e+00> : vector<1x128xf32>
        %94 = tpu.matmul %91, %93, %cst_75 {dimension_numbers = #tpu.dot_dimension_numbers<[1], [0], [0], [1], [0, 0, 1, 1], [], []>} : vector<1x64xf32>, vector<64x128xf32>, vector<1x128xf32> -> vector<1x128xf32>
        %c0_76 = arith.constant 0 : index
        %c0_77 = arith.constant 0 : index
        %c0_78 = arith.constant 0 : index
        %95 = vector.load %arg3[%c0_76, %c0_77, %c0_78] : memref<2x1x128xf32, #tpu.memory_space<vmem>>, vector<1x1x128xf32>
        %96 = vector.shape_cast %95 : vector<1x1x128xf32> to vector<1x128xf32>
        %97 = arith.addf %94, %96 : vector<1x128xf32>
        %98 = vector.extract_strided_slice %97 {offsets = [0, 0], sizes = [1, 32], strides = [1, 1]} : vector<1x128xf32> to vector<1x32xf32>
        %99 = arith.negf %98 : vector<1x32xf32>
        %100 = math.exp %99 : vector<1x32xf32>
        %cst_79 = arith.constant 1.000000e+00 : f32
        %101 = vector.broadcast %cst_79 : f32 to vector<1x32xf32>
        %102 = arith.addf %101, %100 : vector<1x32xf32>
        %103 = arith.divf %101, %102 : vector<1x32xf32>
        %104 = vector.extract_strided_slice %97 {offsets = [0, 32], sizes = [1, 32], strides = [1, 1]} : vector<1x128xf32> to vector<1x32xf32>
        %105 = arith.negf %104 : vector<1x32xf32>
        %106 = math.exp %105 : vector<1x32xf32>
        %cst_80 = arith.constant 1.000000e+00 : f32
        %107 = vector.broadcast %cst_80 : f32 to vector<1x32xf32>
        %108 = arith.addf %107, %106 : vector<1x32xf32>
        %109 = arith.divf %107, %108 : vector<1x32xf32>
        %110 = vector.extract_strided_slice %97 {offsets = [0, 64], sizes = [1, 32], strides = [1, 1]} : vector<1x128xf32> to vector<1x32xf32>
        %111 = math.tanh %110 : vector<1x32xf32>
        %112 = vector.extract_strided_slice %97 {offsets = [0, 96], sizes = [1, 32], strides = [1, 1]} : vector<1x128xf32> to vector<1x32xf32>
        %113 = arith.negf %112 : vector<1x32xf32>
        %114 = math.exp %113 : vector<1x32xf32>
        %cst_81 = arith.constant 1.000000e+00 : f32
        %115 = vector.broadcast %cst_81 : f32 to vector<1x32xf32>
        %116 = arith.addf %115, %114 : vector<1x32xf32>
        %117 = arith.divf %115, %116 : vector<1x32xf32>
        %118 = arith.mulf %109, %90 : vector<1x32xf32>
        %119 = arith.mulf %103, %111 : vector<1x32xf32>
        %120 = arith.addf %118, %119 : vector<1x32xf32>
        %121 = math.tanh %120 : vector<1x32xf32>
        %122 = arith.mulf %117, %121 : vector<1x32xf32>
        %c0_82 = arith.constant 0 : index
        %c0_83 = arith.constant 0 : index
        %c0_84 = arith.constant 0 : index
        %123 = vector.load %arg12[%c0_82, %c0_83, %c0_84] : memref<2x1x32xf32, #tpu.memory_space<vmem>>, vector<1x1x32xf32>
        %124 = vector.shape_cast %123 : vector<1x1x32xf32> to vector<1x32xf32>
        %125 = vector.shape_cast %122 : vector<1x32xf32> to vector<1x1x32xf32>
        tpu.vector_store %arg12[%c0_82, %c0_83, %c0_84], %125 {strides = array<i32>} : memref<2x1x32xf32, #tpu.memory_space<vmem>>, vector<1x1x32xf32>,
        %c0_85 = arith.constant 0 : index
        %c0_86 = arith.constant 0 : index
        %c0_87 = arith.constant 0 : index
        %126 = vector.load %arg13[%c0_85, %c0_86, %c0_87] : memref<2x1x32xf32, #tpu.memory_space<vmem>>, vector<1x1x32xf32>
        %127 = vector.shape_cast %126 : vector<1x1x32xf32> to vector<1x32xf32>
        %128 = vector.shape_cast %120 : vector<1x32xf32> to vector<1x1x32xf32>
        tpu.vector_store %arg13[%c0_85, %c0_86, %c0_87], %128 {strides = array<i32>} : memref<2x1x32xf32, #tpu.memory_space<vmem>>, vector<1x1x32xf32>,
        %c1 = arith.constant 1 : index
        %c0_88 = arith.constant 0 : index
        %c0_89 = arith.constant 0 : index
        %129 = vector.load %arg12[%c1, %c0_88, %c0_89] : memref<2x1x32xf32, #tpu.memory_space<vmem>>, vector<1x1x32xf32>
        %130 = vector.shape_cast %129 : vector<1x1x32xf32> to vector<1x32xf32>
        %c1_90 = arith.constant 1 : index
        %c0_91 = arith.constant 0 : index
        %c0_92 = arith.constant 0 : index
        %131 = vector.load %arg13[%c1_90, %c0_91, %c0_92] : memref<2x1x32xf32, #tpu.memory_space<vmem>>, vector<1x1x32xf32>
        %132 = vector.shape_cast %131 : vector<1x1x32xf32> to vector<1x32xf32>
        %133 = tpu.concatenate %122, %130 in 1 : vector<1x32xf32>, vector<1x32xf32> -> vector<1x64xf32>
        %c1_93 = arith.constant 1 : index
        %c0_94 = arith.constant 0 : index
        %c0_95 = arith.constant 0 : index
        %134 = vector.load %arg2[%c1_93, %c0_94, %c0_95] : memref<2x64x128xf32, #tpu.memory_space<vmem>>, vector<1x64x128xf32>
        %135 = vector.shape_cast %134 : vector<1x64x128xf32> to vector<64x128xf32>
        %cst_96 = arith.constant dense<0.000000e+00> : vector<1x128xf32>
        %136 = tpu.matmul %133, %135, %cst_96 {dimension_numbers = #tpu.dot_dimension_numbers<[1], [0], [0], [1], [0, 0, 1, 1], [], []>} : vector<1x64xf32>, vector<64x128xf32>, vector<1x128xf32> -> vector<1x128xf32>
        %c1_97 = arith.constant 1 : index
        %c0_98 = arith.constant 0 : index
        %c0_99 = arith.constant 0 : index
        %137 = vector.load %arg3[%c1_97, %c0_98, %c0_99] : memref<2x1x128xf32, #tpu.memory_space<vmem>>, vector<1x1x128xf32>
        %138 = vector.shape_cast %137 : vector<1x1x128xf32> to vector<1x128xf32>
        %139 = arith.addf %136, %138 : vector<1x128xf32>
        %140 = vector.extract_strided_slice %139 {offsets = [0, 0], sizes = [1, 32], strides = [1, 1]} : vector<1x128xf32> to vector<1x32xf32>
        %141 = arith.negf %140 : vector<1x32xf32>
        %142 = math.exp %141 : vector<1x32xf32>
        %cst_100 = arith.constant 1.000000e+00 : f32
        %143 = vector.broadcast %cst_100 : f32 to vector<1x32xf32>
        %144 = arith.addf %143, %142 : vector<1x32xf32>
        %145 = arith.divf %143, %144 : vector<1x32xf32>
        %146 = vector.extract_strided_slice %139 {offsets = [0, 32], sizes = [1, 32], strides = [1, 1]} : vector<1x128xf32> to vector<1x32xf32>
        %147 = arith.negf %146 : vector<1x32xf32>
        %148 = math.exp %147 : vector<1x32xf32>
        %cst_101 = arith.constant 1.000000e+00 : f32
        %149 = vector.broadcast %cst_101 : f32 to vector<1x32xf32>
        %150 = arith.addf %149, %148 : vector<1x32xf32>
        %151 = arith.divf %149, %150 : vector<1x32xf32>
        %152 = vector.extract_strided_slice %139 {offsets = [0, 64], sizes = [1, 32], strides = [1, 1]} : vector<1x128xf32> to vector<1x32xf32>
        %153 = math.tanh %152 : vector<1x32xf32>
        %154 = vector.extract_strided_slice %139 {offsets = [0, 96], sizes = [1, 32], strides = [1, 1]} : vector<1x128xf32> to vector<1x32xf32>
        %155 = arith.negf %154 : vector<1x32xf32>
        %156 = math.exp %155 : vector<1x32xf32>
        %cst_102 = arith.constant 1.000000e+00 : f32
        %157 = vector.broadcast %cst_102 : f32 to vector<1x32xf32>
        %158 = arith.addf %157, %156 : vector<1x32xf32>
        %159 = arith.divf %157, %158 : vector<1x32xf32>
        %160 = arith.mulf %151, %132 : vector<1x32xf32>
        %161 = arith.mulf %145, %153 : vector<1x32xf32>
        %162 = arith.addf %160, %161 : vector<1x32xf32>
        %163 = math.tanh %162 : vector<1x32xf32>
        %164 = arith.mulf %159, %163 : vector<1x32xf32>
        %c1_103 = arith.constant 1 : index
        %c0_104 = arith.constant 0 : index
        %c0_105 = arith.constant 0 : index
        %165 = vector.load %arg12[%c1_103, %c0_104, %c0_105] : memref<2x1x32xf32, #tpu.memory_space<vmem>>, vector<1x1x32xf32>
        %166 = vector.shape_cast %165 : vector<1x1x32xf32> to vector<1x32xf32>
        %167 = vector.shape_cast %164 : vector<1x32xf32> to vector<1x1x32xf32>
        tpu.vector_store %arg12[%c1_103, %c0_104, %c0_105], %167 {strides = array<i32>} : memref<2x1x32xf32, #tpu.memory_space<vmem>>, vector<1x1x32xf32>,
        %c1_106 = arith.constant 1 : index
        %c0_107 = arith.constant 0 : index
        %c0_108 = arith.constant 0 : index
        %168 = vector.load %arg13[%c1_106, %c0_107, %c0_108] : memref<2x1x32xf32, #tpu.memory_space<vmem>>, vector<1x1x32xf32>
        %169 = vector.shape_cast %168 : vector<1x1x32xf32> to vector<1x32xf32>
        %170 = vector.shape_cast %162 : vector<1x32xf32> to vector<1x1x32xf32>
        tpu.vector_store %arg13[%c1_106, %c0_107, %c0_108], %170 {strides = array<i32>} : memref<2x1x32xf32, #tpu.memory_space<vmem>>, vector<1x1x32xf32>,
        %c0_109 = arith.constant 0 : index
        %c0_110 = arith.constant 0 : index
        %171 = vector.load %arg4[%c0_109, %c0_110] : memref<32x128xf32, #tpu.memory_space<vmem>>, vector<32x128xf32>
        %cst_111 = arith.constant dense<0.000000e+00> : vector<1x128xf32>
        %172 = tpu.matmul %164, %171, %cst_111 {dimension_numbers = #tpu.dot_dimension_numbers<[1], [0], [0], [1], [0, 0, 1, 1], [], []>} : vector<1x32xf32>, vector<32x128xf32>, vector<1x128xf32> -> vector<1x128xf32>
        %c0_112 = arith.constant 0 : index
        %c0_113 = arith.constant 0 : index
        %173 = vector.load %arg5[%c0_112, %c0_113] : memref<1x128xf32, #tpu.memory_space<vmem>>, vector<1x128xf32>
        %174 = arith.addf %172, %173 : vector<1x128xf32>
        %cst_114 = arith.constant dense<0xFF800000> : vector<1xf32>
        %175 = vector.multi_reduction <maximumf>, %174, %cst_114 [1] : vector<1x128xf32> to vector<1xf32>
        %176 = vector.shape_cast %175 : vector<1xf32> to vector<1x1xf32>
        %177 = vector.broadcast %176 : vector<1x1xf32> to vector<1x128xf32>
        %178 = arith.subf %174, %177 : vector<1x128xf32>
        %179 = math.exp %178 : vector<1x128xf32>
        %cst_115 = arith.constant dense<0.000000e+00> : vector<1xf32>
        %180 = vector.multi_reduction <add>, %179, %cst_115 [1] : vector<1x128xf32> to vector<1xf32>
        %181 = vector.shape_cast %180 : vector<1xf32> to vector<1x1xf32>
        %182 = math.log %181 : vector<1x1xf32>
        %183 = vector.broadcast %182 : vector<1x1xf32> to vector<1x128xf32>
        %184 = arith.subf %178, %183 : vector<1x128xf32>
        %c4 = arith.constant 4 : index
        %c0_116 = arith.constant 0 : index
        %185 = vector.load %arg14[%c4, %c0_116] : memref<8x128xf32, #tpu.memory_space<vmem>>, vector<1x128xf32>
        tpu.vector_store %arg14[%c4, %c0_116], %184 {strides = array<i32>} : memref<8x128xf32, #tpu.memory_space<vmem>>, vector<1x128xf32>,
        %cst_117 = arith.constant dense<0xFF800000> : vector<1xf32>
        %186 = vector.multi_reduction <maximumf>, %184, %cst_117 [1] : vector<1x128xf32> to vector<1xf32>
        %187 = vector.shape_cast %186 : vector<1xf32> to vector<1x1xf32>
        %188 = vector.broadcast %187 : vector<1x1xf32> to vector<1x128xf32>
        %189 = arith.cmpf oge, %184, %188 : vector<1x128xf32>
        %c128_i32 = arith.constant 128 : i32
        %190 = vector.broadcast %c128_i32 : i32 to vector<1x128xi32>
        %191 = arith.select %189, %0, %190 : vector<1x128xi1>, vector<1x128xi32>
        %cst_118 = arith.constant dense<2147483647> : vector<1xi32>
        %192 = vector.multi_reduction <minsi>, %191, %cst_118 [1] : vector<1x128xi32> to vector<1xi32>
        %193 = vector.shape_cast %192 : vector<1xi32> to vector<1x1xi32>
        %c0_119 = arith.constant 0 : index
        %c0_120 = arith.constant 0 : index
        %194 = vector.load %arg15[%c0_119, %c0_120] : memref<1x1xi32, #tpu.memory_space<vmem>>, vector<1x1xi32>
        tpu.vector_store %arg15[%c0_119, %c0_120], %193 {strides = array<i32>} : memref<1x1xi32, #tpu.memory_space<vmem>>, vector<1x1xi32>,
        %c0_121 = arith.constant 0 : index
        %c0_122 = arith.constant 0 : index
        %195 = vector.load %arg15[%c0_121, %c0_122] : memref<1x1xi32, #tpu.memory_space<vmem>>, vector<1x1xi32>
        %196 = vector.extract %195[0, 0] : i32 from vector<1x1xi32>
        %c0_123 = arith.constant 0 : index
        %197 = memref.load %arg16[%c0_123] : memref<1xi32, #tpu.memory_space<smem>>
        memref.store %196, %arg16[%c0_123] : memref<1xi32, #tpu.memory_space<smem>>
        %c5_i32_124 = arith.constant 5 : i32
        %198 = arith.cmpi eq, %196, %c5_i32_124 : i32
        %199 = arith.extui %198 : i1 to i32
        %c0_125 = arith.constant 0 : index
        %200 = memref.load %arg17[%c0_125] : memref<1xi32, #tpu.memory_space<smem>>
        memref.store %199, %arg17[%c0_125] : memref<1xi32, #tpu.memory_space<smem>>
        %c0_126 = arith.constant 0 : index
        %201 = memref.load %arg18[%c0_126] : memref<1xi32, #tpu.memory_space<smem>>
        %c1_i32_127 = arith.constant 1 : i32
        %202 = arith.addi %201, %c1_i32_127 : i32
        %c0_128 = arith.constant 0 : index
        %203 = memref.load %arg18[%c0_128] : memref<1xi32, #tpu.memory_space<smem>>
        memref.store %202, %arg18[%c0_128] : memref<1xi32, #tpu.memory_space<smem>>
      } else {
      }
      %c0_48 = arith.constant 0 : index
      %59 = memref.load %arg17[%c0_48] : memref<1xi32, #tpu.memory_space<smem>>
      %c0_i32_49 = arith.constant 0 : i32
      %60 = arith.cmpi eq, %59, %c0_i32_49 : i32
      %c8_i32_50 = arith.constant 8 : i32
      %61 = arith.muli %arg0, %c8_i32_50 : i32
      %c5_i32 = arith.constant 5 : i32
      %62 = arith.addi %61, %c5_i32 : i32
      %c16_i32_51 = arith.constant 16 : i32
      %63 = arith.cmpi slt, %62, %c16_i32_51 : i32
      %64 = arith.andi %60, %63 : i1
      %65 = arith.extui %64 : i1 to i32
      %c0_i32_52 = arith.constant 0 : i32
      %66 = arith.cmpi ne, %65, %c0_i32_52 : i32
      scf.if %66 {
        %c0_63 = arith.constant 0 : index
        %83 = memref.load %arg16[%c0_63] : memref<1xi32, #tpu.memory_space<smem>>
        %84 = arith.index_cast %83 : i32 to index
        %c0_64 = arith.constant 0 : index
        %c0_65 = arith.constant 0 : index
        %85 = vector.load %arg1[%84, %c0_64, %c0_65] : memref<128x1x32xf32, #tpu.memory_space<vmem>>, vector<1x1x32xf32>
        %86 = vector.shape_cast %85 : vector<1x1x32xf32> to vector<1x32xf32>
        %c0_66 = arith.constant 0 : index
        %c0_67 = arith.constant 0 : index
        %c0_68 = arith.constant 0 : index
        %87 = vector.load %arg12[%c0_66, %c0_67, %c0_68] : memref<2x1x32xf32, #tpu.memory_space<vmem>>, vector<1x1x32xf32>
        %88 = vector.shape_cast %87 : vector<1x1x32xf32> to vector<1x32xf32>
        %c0_69 = arith.constant 0 : index
        %c0_70 = arith.constant 0 : index
        %c0_71 = arith.constant 0 : index
        %89 = vector.load %arg13[%c0_69, %c0_70, %c0_71] : memref<2x1x32xf32, #tpu.memory_space<vmem>>, vector<1x1x32xf32>
        %90 = vector.shape_cast %89 : vector<1x1x32xf32> to vector<1x32xf32>
        %91 = tpu.concatenate %86, %88 in 1 : vector<1x32xf32>, vector<1x32xf32> -> vector<1x64xf32>
        %c0_72 = arith.constant 0 : index
        %c0_73 = arith.constant 0 : index
        %c0_74 = arith.constant 0 : index
        %92 = vector.load %arg2[%c0_72, %c0_73, %c0_74] : memref<2x64x128xf32, #tpu.memory_space<vmem>>, vector<1x64x128xf32>
        %93 = vector.shape_cast %92 : vector<1x64x128xf32> to vector<64x128xf32>
        %cst_75 = arith.constant dense<0.000000e+00> : vector<1x128xf32>
        %94 = tpu.matmul %91, %93, %cst_75 {dimension_numbers = #tpu.dot_dimension_numbers<[1], [0], [0], [1], [0, 0, 1, 1], [], []>} : vector<1x64xf32>, vector<64x128xf32>, vector<1x128xf32> -> vector<1x128xf32>
        %c0_76 = arith.constant 0 : index
        %c0_77 = arith.constant 0 : index
        %c0_78 = arith.constant 0 : index
        %95 = vector.load %arg3[%c0_76, %c0_77, %c0_78] : memref<2x1x128xf32, #tpu.memory_space<vmem>>, vector<1x1x128xf32>
        %96 = vector.shape_cast %95 : vector<1x1x128xf32> to vector<1x128xf32>
        %97 = arith.addf %94, %96 : vector<1x128xf32>
        %98 = vector.extract_strided_slice %97 {offsets = [0, 0], sizes = [1, 32], strides = [1, 1]} : vector<1x128xf32> to vector<1x32xf32>
        %99 = arith.negf %98 : vector<1x32xf32>
        %100 = math.exp %99 : vector<1x32xf32>
        %cst_79 = arith.constant 1.000000e+00 : f32
        %101 = vector.broadcast %cst_79 : f32 to vector<1x32xf32>
        %102 = arith.addf %101, %100 : vector<1x32xf32>
        %103 = arith.divf %101, %102 : vector<1x32xf32>
        %104 = vector.extract_strided_slice %97 {offsets = [0, 32], sizes = [1, 32], strides = [1, 1]} : vector<1x128xf32> to vector<1x32xf32>
        %105 = arith.negf %104 : vector<1x32xf32>
        %106 = math.exp %105 : vector<1x32xf32>
        %cst_80 = arith.constant 1.000000e+00 : f32
        %107 = vector.broadcast %cst_80 : f32 to vector<1x32xf32>
        %108 = arith.addf %107, %106 : vector<1x32xf32>
        %109 = arith.divf %107, %108 : vector<1x32xf32>
        %110 = vector.extract_strided_slice %97 {offsets = [0, 64], sizes = [1, 32], strides = [1, 1]} : vector<1x128xf32> to vector<1x32xf32>
        %111 = math.tanh %110 : vector<1x32xf32>
        %112 = vector.extract_strided_slice %97 {offsets = [0, 96], sizes = [1, 32], strides = [1, 1]} : vector<1x128xf32> to vector<1x32xf32>
        %113 = arith.negf %112 : vector<1x32xf32>
        %114 = math.exp %113 : vector<1x32xf32>
        %cst_81 = arith.constant 1.000000e+00 : f32
        %115 = vector.broadcast %cst_81 : f32 to vector<1x32xf32>
        %116 = arith.addf %115, %114 : vector<1x32xf32>
        %117 = arith.divf %115, %116 : vector<1x32xf32>
        %118 = arith.mulf %109, %90 : vector<1x32xf32>
        %119 = arith.mulf %103, %111 : vector<1x32xf32>
        %120 = arith.addf %118, %119 : vector<1x32xf32>
        %121 = math.tanh %120 : vector<1x32xf32>
        %122 = arith.mulf %117, %121 : vector<1x32xf32>
        %c0_82 = arith.constant 0 : index
        %c0_83 = arith.constant 0 : index
        %c0_84 = arith.constant 0 : index
        %123 = vector.load %arg12[%c0_82, %c0_83, %c0_84] : memref<2x1x32xf32, #tpu.memory_space<vmem>>, vector<1x1x32xf32>
        %124 = vector.shape_cast %123 : vector<1x1x32xf32> to vector<1x32xf32>
        %125 = vector.shape_cast %122 : vector<1x32xf32> to vector<1x1x32xf32>
        tpu.vector_store %arg12[%c0_82, %c0_83, %c0_84], %125 {strides = array<i32>} : memref<2x1x32xf32, #tpu.memory_space<vmem>>, vector<1x1x32xf32>,
        %c0_85 = arith.constant 0 : index
        %c0_86 = arith.constant 0 : index
        %c0_87 = arith.constant 0 : index
        %126 = vector.load %arg13[%c0_85, %c0_86, %c0_87] : memref<2x1x32xf32, #tpu.memory_space<vmem>>, vector<1x1x32xf32>
        %127 = vector.shape_cast %126 : vector<1x1x32xf32> to vector<1x32xf32>
        %128 = vector.shape_cast %120 : vector<1x32xf32> to vector<1x1x32xf32>
        tpu.vector_store %arg13[%c0_85, %c0_86, %c0_87], %128 {strides = array<i32>} : memref<2x1x32xf32, #tpu.memory_space<vmem>>, vector<1x1x32xf32>,
        %c1 = arith.constant 1 : index
        %c0_88 = arith.constant 0 : index
        %c0_89 = arith.constant 0 : index
        %129 = vector.load %arg12[%c1, %c0_88, %c0_89] : memref<2x1x32xf32, #tpu.memory_space<vmem>>, vector<1x1x32xf32>
        %130 = vector.shape_cast %129 : vector<1x1x32xf32> to vector<1x32xf32>
        %c1_90 = arith.constant 1 : index
        %c0_91 = arith.constant 0 : index
        %c0_92 = arith.constant 0 : index
        %131 = vector.load %arg13[%c1_90, %c0_91, %c0_92] : memref<2x1x32xf32, #tpu.memory_space<vmem>>, vector<1x1x32xf32>
        %132 = vector.shape_cast %131 : vector<1x1x32xf32> to vector<1x32xf32>
        %133 = tpu.concatenate %122, %130 in 1 : vector<1x32xf32>, vector<1x32xf32> -> vector<1x64xf32>
        %c1_93 = arith.constant 1 : index
        %c0_94 = arith.constant 0 : index
        %c0_95 = arith.constant 0 : index
        %134 = vector.load %arg2[%c1_93, %c0_94, %c0_95] : memref<2x64x128xf32, #tpu.memory_space<vmem>>, vector<1x64x128xf32>
        %135 = vector.shape_cast %134 : vector<1x64x128xf32> to vector<64x128xf32>
        %cst_96 = arith.constant dense<0.000000e+00> : vector<1x128xf32>
        %136 = tpu.matmul %133, %135, %cst_96 {dimension_numbers = #tpu.dot_dimension_numbers<[1], [0], [0], [1], [0, 0, 1, 1], [], []>} : vector<1x64xf32>, vector<64x128xf32>, vector<1x128xf32> -> vector<1x128xf32>
        %c1_97 = arith.constant 1 : index
        %c0_98 = arith.constant 0 : index
        %c0_99 = arith.constant 0 : index
        %137 = vector.load %arg3[%c1_97, %c0_98, %c0_99] : memref<2x1x128xf32, #tpu.memory_space<vmem>>, vector<1x1x128xf32>
        %138 = vector.shape_cast %137 : vector<1x1x128xf32> to vector<1x128xf32>
        %139 = arith.addf %136, %138 : vector<1x128xf32>
        %140 = vector.extract_strided_slice %139 {offsets = [0, 0], sizes = [1, 32], strides = [1, 1]} : vector<1x128xf32> to vector<1x32xf32>
        %141 = arith.negf %140 : vector<1x32xf32>
        %142 = math.exp %141 : vector<1x32xf32>
        %cst_100 = arith.constant 1.000000e+00 : f32
        %143 = vector.broadcast %cst_100 : f32 to vector<1x32xf32>
        %144 = arith.addf %143, %142 : vector<1x32xf32>
        %145 = arith.divf %143, %144 : vector<1x32xf32>
        %146 = vector.extract_strided_slice %139 {offsets = [0, 32], sizes = [1, 32], strides = [1, 1]} : vector<1x128xf32> to vector<1x32xf32>
        %147 = arith.negf %146 : vector<1x32xf32>
        %148 = math.exp %147 : vector<1x32xf32>
        %cst_101 = arith.constant 1.000000e+00 : f32
        %149 = vector.broadcast %cst_101 : f32 to vector<1x32xf32>
        %150 = arith.addf %149, %148 : vector<1x32xf32>
        %151 = arith.divf %149, %150 : vector<1x32xf32>
        %152 = vector.extract_strided_slice %139 {offsets = [0, 64], sizes = [1, 32], strides = [1, 1]} : vector<1x128xf32> to vector<1x32xf32>
        %153 = math.tanh %152 : vector<1x32xf32>
        %154 = vector.extract_strided_slice %139 {offsets = [0, 96], sizes = [1, 32], strides = [1, 1]} : vector<1x128xf32> to vector<1x32xf32>
        %155 = arith.negf %154 : vector<1x32xf32>
        %156 = math.exp %155 : vector<1x32xf32>
        %cst_102 = arith.constant 1.000000e+00 : f32
        %157 = vector.broadcast %cst_102 : f32 to vector<1x32xf32>
        %158 = arith.addf %157, %156 : vector<1x32xf32>
        %159 = arith.divf %157, %158 : vector<1x32xf32>
        %160 = arith.mulf %151, %132 : vector<1x32xf32>
        %161 = arith.mulf %145, %153 : vector<1x32xf32>
        %162 = arith.addf %160, %161 : vector<1x32xf32>
        %163 = math.tanh %162 : vector<1x32xf32>
        %164 = arith.mulf %159, %163 : vector<1x32xf32>
        %c1_103 = arith.constant 1 : index
        %c0_104 = arith.constant 0 : index
        %c0_105 = arith.constant 0 : index
        %165 = vector.load %arg12[%c1_103, %c0_104, %c0_105] : memref<2x1x32xf32, #tpu.memory_space<vmem>>, vector<1x1x32xf32>
        %166 = vector.shape_cast %165 : vector<1x1x32xf32> to vector<1x32xf32>
        %167 = vector.shape_cast %164 : vector<1x32xf32> to vector<1x1x32xf32>
        tpu.vector_store %arg12[%c1_103, %c0_104, %c0_105], %167 {strides = array<i32>} : memref<2x1x32xf32, #tpu.memory_space<vmem>>, vector<1x1x32xf32>,
        %c1_106 = arith.constant 1 : index
        %c0_107 = arith.constant 0 : index
        %c0_108 = arith.constant 0 : index
        %168 = vector.load %arg13[%c1_106, %c0_107, %c0_108] : memref<2x1x32xf32, #tpu.memory_space<vmem>>, vector<1x1x32xf32>
        %169 = vector.shape_cast %168 : vector<1x1x32xf32> to vector<1x32xf32>
        %170 = vector.shape_cast %162 : vector<1x32xf32> to vector<1x1x32xf32>
        tpu.vector_store %arg13[%c1_106, %c0_107, %c0_108], %170 {strides = array<i32>} : memref<2x1x32xf32, #tpu.memory_space<vmem>>, vector<1x1x32xf32>,
        %c0_109 = arith.constant 0 : index
        %c0_110 = arith.constant 0 : index
        %171 = vector.load %arg4[%c0_109, %c0_110] : memref<32x128xf32, #tpu.memory_space<vmem>>, vector<32x128xf32>
        %cst_111 = arith.constant dense<0.000000e+00> : vector<1x128xf32>
        %172 = tpu.matmul %164, %171, %cst_111 {dimension_numbers = #tpu.dot_dimension_numbers<[1], [0], [0], [1], [0, 0, 1, 1], [], []>} : vector<1x32xf32>, vector<32x128xf32>, vector<1x128xf32> -> vector<1x128xf32>
        %c0_112 = arith.constant 0 : index
        %c0_113 = arith.constant 0 : index
        %173 = vector.load %arg5[%c0_112, %c0_113] : memref<1x128xf32, #tpu.memory_space<vmem>>, vector<1x128xf32>
        %174 = arith.addf %172, %173 : vector<1x128xf32>
        %cst_114 = arith.constant dense<0xFF800000> : vector<1xf32>
        %175 = vector.multi_reduction <maximumf>, %174, %cst_114 [1] : vector<1x128xf32> to vector<1xf32>
        %176 = vector.shape_cast %175 : vector<1xf32> to vector<1x1xf32>
        %177 = vector.broadcast %176 : vector<1x1xf32> to vector<1x128xf32>
        %178 = arith.subf %174, %177 : vector<1x128xf32>
        %179 = math.exp %178 : vector<1x128xf32>
        %cst_115 = arith.constant dense<0.000000e+00> : vector<1xf32>
        %180 = vector.multi_reduction <add>, %179, %cst_115 [1] : vector<1x128xf32> to vector<1xf32>
        %181 = vector.shape_cast %180 : vector<1xf32> to vector<1x1xf32>
        %182 = math.log %181 : vector<1x1xf32>
        %183 = vector.broadcast %182 : vector<1x1xf32> to vector<1x128xf32>
        %184 = arith.subf %178, %183 : vector<1x128xf32>
        %c5 = arith.constant 5 : index
        %c0_116 = arith.constant 0 : index
        %185 = vector.load %arg14[%c5, %c0_116] : memref<8x128xf32, #tpu.memory_space<vmem>>, vector<1x128xf32>
        tpu.vector_store %arg14[%c5, %c0_116], %184 {strides = array<i32>} : memref<8x128xf32, #tpu.memory_space<vmem>>, vector<1x128xf32>,
        %cst_117 = arith.constant dense<0xFF800000> : vector<1xf32>
        %186 = vector.multi_reduction <maximumf>, %184, %cst_117 [1] : vector<1x128xf32> to vector<1xf32>
        %187 = vector.shape_cast %186 : vector<1xf32> to vector<1x1xf32>
        %188 = vector.broadcast %187 : vector<1x1xf32> to vector<1x128xf32>
        %189 = arith.cmpf oge, %184, %188 : vector<1x128xf32>
        %c128_i32 = arith.constant 128 : i32
        %190 = vector.broadcast %c128_i32 : i32 to vector<1x128xi32>
        %191 = arith.select %189, %0, %190 : vector<1x128xi1>, vector<1x128xi32>
        %cst_118 = arith.constant dense<2147483647> : vector<1xi32>
        %192 = vector.multi_reduction <minsi>, %191, %cst_118 [1] : vector<1x128xi32> to vector<1xi32>
        %193 = vector.shape_cast %192 : vector<1xi32> to vector<1x1xi32>
        %c0_119 = arith.constant 0 : index
        %c0_120 = arith.constant 0 : index
        %194 = vector.load %arg15[%c0_119, %c0_120] : memref<1x1xi32, #tpu.memory_space<vmem>>, vector<1x1xi32>
        tpu.vector_store %arg15[%c0_119, %c0_120], %193 {strides = array<i32>} : memref<1x1xi32, #tpu.memory_space<vmem>>, vector<1x1xi32>,
        %c0_121 = arith.constant 0 : index
        %c0_122 = arith.constant 0 : index
        %195 = vector.load %arg15[%c0_121, %c0_122] : memref<1x1xi32, #tpu.memory_space<vmem>>, vector<1x1xi32>
        %196 = vector.extract %195[0, 0] : i32 from vector<1x1xi32>
        %c0_123 = arith.constant 0 : index
        %197 = memref.load %arg16[%c0_123] : memref<1xi32, #tpu.memory_space<smem>>
        memref.store %196, %arg16[%c0_123] : memref<1xi32, #tpu.memory_space<smem>>
        %c5_i32_124 = arith.constant 5 : i32
        %198 = arith.cmpi eq, %196, %c5_i32_124 : i32
        %199 = arith.extui %198 : i1 to i32
        %c0_125 = arith.constant 0 : index
        %200 = memref.load %arg17[%c0_125] : memref<1xi32, #tpu.memory_space<smem>>
        memref.store %199, %arg17[%c0_125] : memref<1xi32, #tpu.memory_space<smem>>
        %c0_126 = arith.constant 0 : index
        %201 = memref.load %arg18[%c0_126] : memref<1xi32, #tpu.memory_space<smem>>
        %c1_i32_127 = arith.constant 1 : i32
        %202 = arith.addi %201, %c1_i32_127 : i32
        %c0_128 = arith.constant 0 : index
        %203 = memref.load %arg18[%c0_128] : memref<1xi32, #tpu.memory_space<smem>>
        memref.store %202, %arg18[%c0_128] : memref<1xi32, #tpu.memory_space<smem>>
      } else {
      }
      %c0_53 = arith.constant 0 : index
      %67 = memref.load %arg17[%c0_53] : memref<1xi32, #tpu.memory_space<smem>>
      %c0_i32_54 = arith.constant 0 : i32
      %68 = arith.cmpi eq, %67, %c0_i32_54 : i32
      %c8_i32_55 = arith.constant 8 : i32
      %69 = arith.muli %arg0, %c8_i32_55 : i32
      %c6_i32 = arith.constant 6 : i32
      %70 = arith.addi %69, %c6_i32 : i32
      %c16_i32_56 = arith.constant 16 : i32
      %71 = arith.cmpi slt, %70, %c16_i32_56 : i32
      %72 = arith.andi %68, %71 : i1
      %73 = arith.extui %72 : i1 to i32
      %c0_i32_57 = arith.constant 0 : i32
      %74 = arith.cmpi ne, %73, %c0_i32_57 : i32
      scf.if %74 {
        %c0_63 = arith.constant 0 : index
        %83 = memref.load %arg16[%c0_63] : memref<1xi32, #tpu.memory_space<smem>>
        %84 = arith.index_cast %83 : i32 to index
        %c0_64 = arith.constant 0 : index
        %c0_65 = arith.constant 0 : index
        %85 = vector.load %arg1[%84, %c0_64, %c0_65] : memref<128x1x32xf32, #tpu.memory_space<vmem>>, vector<1x1x32xf32>
        %86 = vector.shape_cast %85 : vector<1x1x32xf32> to vector<1x32xf32>
        %c0_66 = arith.constant 0 : index
        %c0_67 = arith.constant 0 : index
        %c0_68 = arith.constant 0 : index
        %87 = vector.load %arg12[%c0_66, %c0_67, %c0_68] : memref<2x1x32xf32, #tpu.memory_space<vmem>>, vector<1x1x32xf32>
        %88 = vector.shape_cast %87 : vector<1x1x32xf32> to vector<1x32xf32>
        %c0_69 = arith.constant 0 : index
        %c0_70 = arith.constant 0 : index
        %c0_71 = arith.constant 0 : index
        %89 = vector.load %arg13[%c0_69, %c0_70, %c0_71] : memref<2x1x32xf32, #tpu.memory_space<vmem>>, vector<1x1x32xf32>
        %90 = vector.shape_cast %89 : vector<1x1x32xf32> to vector<1x32xf32>
        %91 = tpu.concatenate %86, %88 in 1 : vector<1x32xf32>, vector<1x32xf32> -> vector<1x64xf32>
        %c0_72 = arith.constant 0 : index
        %c0_73 = arith.constant 0 : index
        %c0_74 = arith.constant 0 : index
        %92 = vector.load %arg2[%c0_72, %c0_73, %c0_74] : memref<2x64x128xf32, #tpu.memory_space<vmem>>, vector<1x64x128xf32>
        %93 = vector.shape_cast %92 : vector<1x64x128xf32> to vector<64x128xf32>
        %cst_75 = arith.constant dense<0.000000e+00> : vector<1x128xf32>
        %94 = tpu.matmul %91, %93, %cst_75 {dimension_numbers = #tpu.dot_dimension_numbers<[1], [0], [0], [1], [0, 0, 1, 1], [], []>} : vector<1x64xf32>, vector<64x128xf32>, vector<1x128xf32> -> vector<1x128xf32>
        %c0_76 = arith.constant 0 : index
        %c0_77 = arith.constant 0 : index
        %c0_78 = arith.constant 0 : index
        %95 = vector.load %arg3[%c0_76, %c0_77, %c0_78] : memref<2x1x128xf32, #tpu.memory_space<vmem>>, vector<1x1x128xf32>
        %96 = vector.shape_cast %95 : vector<1x1x128xf32> to vector<1x128xf32>
        %97 = arith.addf %94, %96 : vector<1x128xf32>
        %98 = vector.extract_strided_slice %97 {offsets = [0, 0], sizes = [1, 32], strides = [1, 1]} : vector<1x128xf32> to vector<1x32xf32>
        %99 = arith.negf %98 : vector<1x32xf32>
        %100 = math.exp %99 : vector<1x32xf32>
        %cst_79 = arith.constant 1.000000e+00 : f32
        %101 = vector.broadcast %cst_79 : f32 to vector<1x32xf32>
        %102 = arith.addf %101, %100 : vector<1x32xf32>
        %103 = arith.divf %101, %102 : vector<1x32xf32>
        %104 = vector.extract_strided_slice %97 {offsets = [0, 32], sizes = [1, 32], strides = [1, 1]} : vector<1x128xf32> to vector<1x32xf32>
        %105 = arith.negf %104 : vector<1x32xf32>
        %106 = math.exp %105 : vector<1x32xf32>
        %cst_80 = arith.constant 1.000000e+00 : f32
        %107 = vector.broadcast %cst_80 : f32 to vector<1x32xf32>
        %108 = arith.addf %107, %106 : vector<1x32xf32>
        %109 = arith.divf %107, %108 : vector<1x32xf32>
        %110 = vector.extract_strided_slice %97 {offsets = [0, 64], sizes = [1, 32], strides = [1, 1]} : vector<1x128xf32> to vector<1x32xf32>
        %111 = math.tanh %110 : vector<1x32xf32>
        %112 = vector.extract_strided_slice %97 {offsets = [0, 96], sizes = [1, 32], strides = [1, 1]} : vector<1x128xf32> to vector<1x32xf32>
        %113 = arith.negf %112 : vector<1x32xf32>
        %114 = math.exp %113 : vector<1x32xf32>
        %cst_81 = arith.constant 1.000000e+00 : f32
        %115 = vector.broadcast %cst_81 : f32 to vector<1x32xf32>
        %116 = arith.addf %115, %114 : vector<1x32xf32>
        %117 = arith.divf %115, %116 : vector<1x32xf32>
        %118 = arith.mulf %109, %90 : vector<1x32xf32>
        %119 = arith.mulf %103, %111 : vector<1x32xf32>
        %120 = arith.addf %118, %119 : vector<1x32xf32>
        %121 = math.tanh %120 : vector<1x32xf32>
        %122 = arith.mulf %117, %121 : vector<1x32xf32>
        %c0_82 = arith.constant 0 : index
        %c0_83 = arith.constant 0 : index
        %c0_84 = arith.constant 0 : index
        %123 = vector.load %arg12[%c0_82, %c0_83, %c0_84] : memref<2x1x32xf32, #tpu.memory_space<vmem>>, vector<1x1x32xf32>
        %124 = vector.shape_cast %123 : vector<1x1x32xf32> to vector<1x32xf32>
        %125 = vector.shape_cast %122 : vector<1x32xf32> to vector<1x1x32xf32>
        tpu.vector_store %arg12[%c0_82, %c0_83, %c0_84], %125 {strides = array<i32>} : memref<2x1x32xf32, #tpu.memory_space<vmem>>, vector<1x1x32xf32>,
        %c0_85 = arith.constant 0 : index
        %c0_86 = arith.constant 0 : index
        %c0_87 = arith.constant 0 : index
        %126 = vector.load %arg13[%c0_85, %c0_86, %c0_87] : memref<2x1x32xf32, #tpu.memory_space<vmem>>, vector<1x1x32xf32>
        %127 = vector.shape_cast %126 : vector<1x1x32xf32> to vector<1x32xf32>
        %128 = vector.shape_cast %120 : vector<1x32xf32> to vector<1x1x32xf32>
        tpu.vector_store %arg13[%c0_85, %c0_86, %c0_87], %128 {strides = array<i32>} : memref<2x1x32xf32, #tpu.memory_space<vmem>>, vector<1x1x32xf32>,
        %c1 = arith.constant 1 : index
        %c0_88 = arith.constant 0 : index
        %c0_89 = arith.constant 0 : index
        %129 = vector.load %arg12[%c1, %c0_88, %c0_89] : memref<2x1x32xf32, #tpu.memory_space<vmem>>, vector<1x1x32xf32>
        %130 = vector.shape_cast %129 : vector<1x1x32xf32> to vector<1x32xf32>
        %c1_90 = arith.constant 1 : index
        %c0_91 = arith.constant 0 : index
        %c0_92 = arith.constant 0 : index
        %131 = vector.load %arg13[%c1_90, %c0_91, %c0_92] : memref<2x1x32xf32, #tpu.memory_space<vmem>>, vector<1x1x32xf32>
        %132 = vector.shape_cast %131 : vector<1x1x32xf32> to vector<1x32xf32>
        %133 = tpu.concatenate %122, %130 in 1 : vector<1x32xf32>, vector<1x32xf32> -> vector<1x64xf32>
        %c1_93 = arith.constant 1 : index
        %c0_94 = arith.constant 0 : index
        %c0_95 = arith.constant 0 : index
        %134 = vector.load %arg2[%c1_93, %c0_94, %c0_95] : memref<2x64x128xf32, #tpu.memory_space<vmem>>, vector<1x64x128xf32>
        %135 = vector.shape_cast %134 : vector<1x64x128xf32> to vector<64x128xf32>
        %cst_96 = arith.constant dense<0.000000e+00> : vector<1x128xf32>
        %136 = tpu.matmul %133, %135, %cst_96 {dimension_numbers = #tpu.dot_dimension_numbers<[1], [0], [0], [1], [0, 0, 1, 1], [], []>} : vector<1x64xf32>, vector<64x128xf32>, vector<1x128xf32> -> vector<1x128xf32>
        %c1_97 = arith.constant 1 : index
        %c0_98 = arith.constant 0 : index
        %c0_99 = arith.constant 0 : index
        %137 = vector.load %arg3[%c1_97, %c0_98, %c0_99] : memref<2x1x128xf32, #tpu.memory_space<vmem>>, vector<1x1x128xf32>
        %138 = vector.shape_cast %137 : vector<1x1x128xf32> to vector<1x128xf32>
        %139 = arith.addf %136, %138 : vector<1x128xf32>
        %140 = vector.extract_strided_slice %139 {offsets = [0, 0], sizes = [1, 32], strides = [1, 1]} : vector<1x128xf32> to vector<1x32xf32>
        %141 = arith.negf %140 : vector<1x32xf32>
        %142 = math.exp %141 : vector<1x32xf32>
        %cst_100 = arith.constant 1.000000e+00 : f32
        %143 = vector.broadcast %cst_100 : f32 to vector<1x32xf32>
        %144 = arith.addf %143, %142 : vector<1x32xf32>
        %145 = arith.divf %143, %144 : vector<1x32xf32>
        %146 = vector.extract_strided_slice %139 {offsets = [0, 32], sizes = [1, 32], strides = [1, 1]} : vector<1x128xf32> to vector<1x32xf32>
        %147 = arith.negf %146 : vector<1x32xf32>
        %148 = math.exp %147 : vector<1x32xf32>
        %cst_101 = arith.constant 1.000000e+00 : f32
        %149 = vector.broadcast %cst_101 : f32 to vector<1x32xf32>
        %150 = arith.addf %149, %148 : vector<1x32xf32>
        %151 = arith.divf %149, %150 : vector<1x32xf32>
        %152 = vector.extract_strided_slice %139 {offsets = [0, 64], sizes = [1, 32], strides = [1, 1]} : vector<1x128xf32> to vector<1x32xf32>
        %153 = math.tanh %152 : vector<1x32xf32>
        %154 = vector.extract_strided_slice %139 {offsets = [0, 96], sizes = [1, 32], strides = [1, 1]} : vector<1x128xf32> to vector<1x32xf32>
        %155 = arith.negf %154 : vector<1x32xf32>
        %156 = math.exp %155 : vector<1x32xf32>
        %cst_102 = arith.constant 1.000000e+00 : f32
        %157 = vector.broadcast %cst_102 : f32 to vector<1x32xf32>
        %158 = arith.addf %157, %156 : vector<1x32xf32>
        %159 = arith.divf %157, %158 : vector<1x32xf32>
        %160 = arith.mulf %151, %132 : vector<1x32xf32>
        %161 = arith.mulf %145, %153 : vector<1x32xf32>
        %162 = arith.addf %160, %161 : vector<1x32xf32>
        %163 = math.tanh %162 : vector<1x32xf32>
        %164 = arith.mulf %159, %163 : vector<1x32xf32>
        %c1_103 = arith.constant 1 : index
        %c0_104 = arith.constant 0 : index
        %c0_105 = arith.constant 0 : index
        %165 = vector.load %arg12[%c1_103, %c0_104, %c0_105] : memref<2x1x32xf32, #tpu.memory_space<vmem>>, vector<1x1x32xf32>
        %166 = vector.shape_cast %165 : vector<1x1x32xf32> to vector<1x32xf32>
        %167 = vector.shape_cast %164 : vector<1x32xf32> to vector<1x1x32xf32>
        tpu.vector_store %arg12[%c1_103, %c0_104, %c0_105], %167 {strides = array<i32>} : memref<2x1x32xf32, #tpu.memory_space<vmem>>, vector<1x1x32xf32>,
        %c1_106 = arith.constant 1 : index
        %c0_107 = arith.constant 0 : index
        %c0_108 = arith.constant 0 : index
        %168 = vector.load %arg13[%c1_106, %c0_107, %c0_108] : memref<2x1x32xf32, #tpu.memory_space<vmem>>, vector<1x1x32xf32>
        %169 = vector.shape_cast %168 : vector<1x1x32xf32> to vector<1x32xf32>
        %170 = vector.shape_cast %162 : vector<1x32xf32> to vector<1x1x32xf32>
        tpu.vector_store %arg13[%c1_106, %c0_107, %c0_108], %170 {strides = array<i32>} : memref<2x1x32xf32, #tpu.memory_space<vmem>>, vector<1x1x32xf32>,
        %c0_109 = arith.constant 0 : index
        %c0_110 = arith.constant 0 : index
        %171 = vector.load %arg4[%c0_109, %c0_110] : memref<32x128xf32, #tpu.memory_space<vmem>>, vector<32x128xf32>
        %cst_111 = arith.constant dense<0.000000e+00> : vector<1x128xf32>
        %172 = tpu.matmul %164, %171, %cst_111 {dimension_numbers = #tpu.dot_dimension_numbers<[1], [0], [0], [1], [0, 0, 1, 1], [], []>} : vector<1x32xf32>, vector<32x128xf32>, vector<1x128xf32> -> vector<1x128xf32>
        %c0_112 = arith.constant 0 : index
        %c0_113 = arith.constant 0 : index
        %173 = vector.load %arg5[%c0_112, %c0_113] : memref<1x128xf32, #tpu.memory_space<vmem>>, vector<1x128xf32>
        %174 = arith.addf %172, %173 : vector<1x128xf32>
        %cst_114 = arith.constant dense<0xFF800000> : vector<1xf32>
        %175 = vector.multi_reduction <maximumf>, %174, %cst_114 [1] : vector<1x128xf32> to vector<1xf32>
        %176 = vector.shape_cast %175 : vector<1xf32> to vector<1x1xf32>
        %177 = vector.broadcast %176 : vector<1x1xf32> to vector<1x128xf32>
        %178 = arith.subf %174, %177 : vector<1x128xf32>
        %179 = math.exp %178 : vector<1x128xf32>
        %cst_115 = arith.constant dense<0.000000e+00> : vector<1xf32>
        %180 = vector.multi_reduction <add>, %179, %cst_115 [1] : vector<1x128xf32> to vector<1xf32>
        %181 = vector.shape_cast %180 : vector<1xf32> to vector<1x1xf32>
        %182 = math.log %181 : vector<1x1xf32>
        %183 = vector.broadcast %182 : vector<1x1xf32> to vector<1x128xf32>
        %184 = arith.subf %178, %183 : vector<1x128xf32>
        %c6 = arith.constant 6 : index
        %c0_116 = arith.constant 0 : index
        %185 = vector.load %arg14[%c6, %c0_116] : memref<8x128xf32, #tpu.memory_space<vmem>>, vector<1x128xf32>
        tpu.vector_store %arg14[%c6, %c0_116], %184 {strides = array<i32>} : memref<8x128xf32, #tpu.memory_space<vmem>>, vector<1x128xf32>,
        %cst_117 = arith.constant dense<0xFF800000> : vector<1xf32>
        %186 = vector.multi_reduction <maximumf>, %184, %cst_117 [1] : vector<1x128xf32> to vector<1xf32>
        %187 = vector.shape_cast %186 : vector<1xf32> to vector<1x1xf32>
        %188 = vector.broadcast %187 : vector<1x1xf32> to vector<1x128xf32>
        %189 = arith.cmpf oge, %184, %188 : vector<1x128xf32>
        %c128_i32 = arith.constant 128 : i32
        %190 = vector.broadcast %c128_i32 : i32 to vector<1x128xi32>
        %191 = arith.select %189, %0, %190 : vector<1x128xi1>, vector<1x128xi32>
        %cst_118 = arith.constant dense<2147483647> : vector<1xi32>
        %192 = vector.multi_reduction <minsi>, %191, %cst_118 [1] : vector<1x128xi32> to vector<1xi32>
        %193 = vector.shape_cast %192 : vector<1xi32> to vector<1x1xi32>
        %c0_119 = arith.constant 0 : index
        %c0_120 = arith.constant 0 : index
        %194 = vector.load %arg15[%c0_119, %c0_120] : memref<1x1xi32, #tpu.memory_space<vmem>>, vector<1x1xi32>
        tpu.vector_store %arg15[%c0_119, %c0_120], %193 {strides = array<i32>} : memref<1x1xi32, #tpu.memory_space<vmem>>, vector<1x1xi32>,
        %c0_121 = arith.constant 0 : index
        %c0_122 = arith.constant 0 : index
        %195 = vector.load %arg15[%c0_121, %c0_122] : memref<1x1xi32, #tpu.memory_space<vmem>>, vector<1x1xi32>
        %196 = vector.extract %195[0, 0] : i32 from vector<1x1xi32>
        %c0_123 = arith.constant 0 : index
        %197 = memref.load %arg16[%c0_123] : memref<1xi32, #tpu.memory_space<smem>>
        memref.store %196, %arg16[%c0_123] : memref<1xi32, #tpu.memory_space<smem>>
        %c5_i32_124 = arith.constant 5 : i32
        %198 = arith.cmpi eq, %196, %c5_i32_124 : i32
        %199 = arith.extui %198 : i1 to i32
        %c0_125 = arith.constant 0 : index
        %200 = memref.load %arg17[%c0_125] : memref<1xi32, #tpu.memory_space<smem>>
        memref.store %199, %arg17[%c0_125] : memref<1xi32, #tpu.memory_space<smem>>
        %c0_126 = arith.constant 0 : index
        %201 = memref.load %arg18[%c0_126] : memref<1xi32, #tpu.memory_space<smem>>
        %c1_i32_127 = arith.constant 1 : i32
        %202 = arith.addi %201, %c1_i32_127 : i32
        %c0_128 = arith.constant 0 : index
        %203 = memref.load %arg18[%c0_128] : memref<1xi32, #tpu.memory_space<smem>>
        memref.store %202, %arg18[%c0_128] : memref<1xi32, #tpu.memory_space<smem>>
      } else {
      }
      %c0_58 = arith.constant 0 : index
      %75 = memref.load %arg17[%c0_58] : memref<1xi32, #tpu.memory_space<smem>>
      %c0_i32_59 = arith.constant 0 : i32
      %76 = arith.cmpi eq, %75, %c0_i32_59 : i32
      %c8_i32_60 = arith.constant 8 : i32
      %77 = arith.muli %arg0, %c8_i32_60 : i32
      %c7_i32 = arith.constant 7 : i32
      %78 = arith.addi %77, %c7_i32 : i32
      %c16_i32_61 = arith.constant 16 : i32
      %79 = arith.cmpi slt, %78, %c16_i32_61 : i32
      %80 = arith.andi %76, %79 : i1
      %81 = arith.extui %80 : i1 to i32
      %c0_i32_62 = arith.constant 0 : i32
      %82 = arith.cmpi ne, %81, %c0_i32_62 : i32
      scf.if %82 {
        %c0_63 = arith.constant 0 : index
        %83 = memref.load %arg16[%c0_63] : memref<1xi32, #tpu.memory_space<smem>>
        %84 = arith.index_cast %83 : i32 to index
        %c0_64 = arith.constant 0 : index
        %c0_65 = arith.constant 0 : index
        %85 = vector.load %arg1[%84, %c0_64, %c0_65] : memref<128x1x32xf32, #tpu.memory_space<vmem>>, vector<1x1x32xf32>
        %86 = vector.shape_cast %85 : vector<1x1x32xf32> to vector<1x32xf32>
        %c0_66 = arith.constant 0 : index
        %c0_67 = arith.constant 0 : index
        %c0_68 = arith.constant 0 : index
        %87 = vector.load %arg12[%c0_66, %c0_67, %c0_68] : memref<2x1x32xf32, #tpu.memory_space<vmem>>, vector<1x1x32xf32>
        %88 = vector.shape_cast %87 : vector<1x1x32xf32> to vector<1x32xf32>
        %c0_69 = arith.constant 0 : index
        %c0_70 = arith.constant 0 : index
        %c0_71 = arith.constant 0 : index
        %89 = vector.load %arg13[%c0_69, %c0_70, %c0_71] : memref<2x1x32xf32, #tpu.memory_space<vmem>>, vector<1x1x32xf32>
        %90 = vector.shape_cast %89 : vector<1x1x32xf32> to vector<1x32xf32>
        %91 = tpu.concatenate %86, %88 in 1 : vector<1x32xf32>, vector<1x32xf32> -> vector<1x64xf32>
        %c0_72 = arith.constant 0 : index
        %c0_73 = arith.constant 0 : index
        %c0_74 = arith.constant 0 : index
        %92 = vector.load %arg2[%c0_72, %c0_73, %c0_74] : memref<2x64x128xf32, #tpu.memory_space<vmem>>, vector<1x64x128xf32>
        %93 = vector.shape_cast %92 : vector<1x64x128xf32> to vector<64x128xf32>
        %cst_75 = arith.constant dense<0.000000e+00> : vector<1x128xf32>
        %94 = tpu.matmul %91, %93, %cst_75 {dimension_numbers = #tpu.dot_dimension_numbers<[1], [0], [0], [1], [0, 0, 1, 1], [], []>} : vector<1x64xf32>, vector<64x128xf32>, vector<1x128xf32> -> vector<1x128xf32>
        %c0_76 = arith.constant 0 : index
        %c0_77 = arith.constant 0 : index
        %c0_78 = arith.constant 0 : index
        %95 = vector.load %arg3[%c0_76, %c0_77, %c0_78] : memref<2x1x128xf32, #tpu.memory_space<vmem>>, vector<1x1x128xf32>
        %96 = vector.shape_cast %95 : vector<1x1x128xf32> to vector<1x128xf32>
        %97 = arith.addf %94, %96 : vector<1x128xf32>
        %98 = vector.extract_strided_slice %97 {offsets = [0, 0], sizes = [1, 32], strides = [1, 1]} : vector<1x128xf32> to vector<1x32xf32>
        %99 = arith.negf %98 : vector<1x32xf32>
        %100 = math.exp %99 : vector<1x32xf32>
        %cst_79 = arith.constant 1.000000e+00 : f32
        %101 = vector.broadcast %cst_79 : f32 to vector<1x32xf32>
        %102 = arith.addf %101, %100 : vector<1x32xf32>
        %103 = arith.divf %101, %102 : vector<1x32xf32>
        %104 = vector.extract_strided_slice %97 {offsets = [0, 32], sizes = [1, 32], strides = [1, 1]} : vector<1x128xf32> to vector<1x32xf32>
        %105 = arith.negf %104 : vector<1x32xf32>
        %106 = math.exp %105 : vector<1x32xf32>
        %cst_80 = arith.constant 1.000000e+00 : f32
        %107 = vector.broadcast %cst_80 : f32 to vector<1x32xf32>
        %108 = arith.addf %107, %106 : vector<1x32xf32>
        %109 = arith.divf %107, %108 : vector<1x32xf32>
        %110 = vector.extract_strided_slice %97 {offsets = [0, 64], sizes = [1, 32], strides = [1, 1]} : vector<1x128xf32> to vector<1x32xf32>
        %111 = math.tanh %110 : vector<1x32xf32>
        %112 = vector.extract_strided_slice %97 {offsets = [0, 96], sizes = [1, 32], strides = [1, 1]} : vector<1x128xf32> to vector<1x32xf32>
        %113 = arith.negf %112 : vector<1x32xf32>
        %114 = math.exp %113 : vector<1x32xf32>
        %cst_81 = arith.constant 1.000000e+00 : f32
        %115 = vector.broadcast %cst_81 : f32 to vector<1x32xf32>
        %116 = arith.addf %115, %114 : vector<1x32xf32>
        %117 = arith.divf %115, %116 : vector<1x32xf32>
        %118 = arith.mulf %109, %90 : vector<1x32xf32>
        %119 = arith.mulf %103, %111 : vector<1x32xf32>
        %120 = arith.addf %118, %119 : vector<1x32xf32>
        %121 = math.tanh %120 : vector<1x32xf32>
        %122 = arith.mulf %117, %121 : vector<1x32xf32>
        %c0_82 = arith.constant 0 : index
        %c0_83 = arith.constant 0 : index
        %c0_84 = arith.constant 0 : index
        %123 = vector.load %arg12[%c0_82, %c0_83, %c0_84] : memref<2x1x32xf32, #tpu.memory_space<vmem>>, vector<1x1x32xf32>
        %124 = vector.shape_cast %123 : vector<1x1x32xf32> to vector<1x32xf32>
        %125 = vector.shape_cast %122 : vector<1x32xf32> to vector<1x1x32xf32>
        tpu.vector_store %arg12[%c0_82, %c0_83, %c0_84], %125 {strides = array<i32>} : memref<2x1x32xf32, #tpu.memory_space<vmem>>, vector<1x1x32xf32>,
        %c0_85 = arith.constant 0 : index
        %c0_86 = arith.constant 0 : index
        %c0_87 = arith.constant 0 : index
        %126 = vector.load %arg13[%c0_85, %c0_86, %c0_87] : memref<2x1x32xf32, #tpu.memory_space<vmem>>, vector<1x1x32xf32>
        %127 = vector.shape_cast %126 : vector<1x1x32xf32> to vector<1x32xf32>
        %128 = vector.shape_cast %120 : vector<1x32xf32> to vector<1x1x32xf32>
        tpu.vector_store %arg13[%c0_85, %c0_86, %c0_87], %128 {strides = array<i32>} : memref<2x1x32xf32, #tpu.memory_space<vmem>>, vector<1x1x32xf32>,
        %c1 = arith.constant 1 : index
        %c0_88 = arith.constant 0 : index
        %c0_89 = arith.constant 0 : index
        %129 = vector.load %arg12[%c1, %c0_88, %c0_89] : memref<2x1x32xf32, #tpu.memory_space<vmem>>, vector<1x1x32xf32>
        %130 = vector.shape_cast %129 : vector<1x1x32xf32> to vector<1x32xf32>
        %c1_90 = arith.constant 1 : index
        %c0_91 = arith.constant 0 : index
        %c0_92 = arith.constant 0 : index
        %131 = vector.load %arg13[%c1_90, %c0_91, %c0_92] : memref<2x1x32xf32, #tpu.memory_space<vmem>>, vector<1x1x32xf32>
        %132 = vector.shape_cast %131 : vector<1x1x32xf32> to vector<1x32xf32>
        %133 = tpu.concatenate %122, %130 in 1 : vector<1x32xf32>, vector<1x32xf32> -> vector<1x64xf32>
        %c1_93 = arith.constant 1 : index
        %c0_94 = arith.constant 0 : index
        %c0_95 = arith.constant 0 : index
        %134 = vector.load %arg2[%c1_93, %c0_94, %c0_95] : memref<2x64x128xf32, #tpu.memory_space<vmem>>, vector<1x64x128xf32>
        %135 = vector.shape_cast %134 : vector<1x64x128xf32> to vector<64x128xf32>
        %cst_96 = arith.constant dense<0.000000e+00> : vector<1x128xf32>
        %136 = tpu.matmul %133, %135, %cst_96 {dimension_numbers = #tpu.dot_dimension_numbers<[1], [0], [0], [1], [0, 0, 1, 1], [], []>} : vector<1x64xf32>, vector<64x128xf32>, vector<1x128xf32> -> vector<1x128xf32>
        %c1_97 = arith.constant 1 : index
        %c0_98 = arith.constant 0 : index
        %c0_99 = arith.constant 0 : index
        %137 = vector.load %arg3[%c1_97, %c0_98, %c0_99] : memref<2x1x128xf32, #tpu.memory_space<vmem>>, vector<1x1x128xf32>
        %138 = vector.shape_cast %137 : vector<1x1x128xf32> to vector<1x128xf32>
        %139 = arith.addf %136, %138 : vector<1x128xf32>
        %140 = vector.extract_strided_slice %139 {offsets = [0, 0], sizes = [1, 32], strides = [1, 1]} : vector<1x128xf32> to vector<1x32xf32>
        %141 = arith.negf %140 : vector<1x32xf32>
        %142 = math.exp %141 : vector<1x32xf32>
        %cst_100 = arith.constant 1.000000e+00 : f32
        %143 = vector.broadcast %cst_100 : f32 to vector<1x32xf32>
        %144 = arith.addf %143, %142 : vector<1x32xf32>
        %145 = arith.divf %143, %144 : vector<1x32xf32>
        %146 = vector.extract_strided_slice %139 {offsets = [0, 32], sizes = [1, 32], strides = [1, 1]} : vector<1x128xf32> to vector<1x32xf32>
        %147 = arith.negf %146 : vector<1x32xf32>
        %148 = math.exp %147 : vector<1x32xf32>
        %cst_101 = arith.constant 1.000000e+00 : f32
        %149 = vector.broadcast %cst_101 : f32 to vector<1x32xf32>
        %150 = arith.addf %149, %148 : vector<1x32xf32>
        %151 = arith.divf %149, %150 : vector<1x32xf32>
        %152 = vector.extract_strided_slice %139 {offsets = [0, 64], sizes = [1, 32], strides = [1, 1]} : vector<1x128xf32> to vector<1x32xf32>
        %153 = math.tanh %152 : vector<1x32xf32>
        %154 = vector.extract_strided_slice %139 {offsets = [0, 96], sizes = [1, 32], strides = [1, 1]} : vector<1x128xf32> to vector<1x32xf32>
        %155 = arith.negf %154 : vector<1x32xf32>
        %156 = math.exp %155 : vector<1x32xf32>
        %cst_102 = arith.constant 1.000000e+00 : f32
        %157 = vector.broadcast %cst_102 : f32 to vector<1x32xf32>
        %158 = arith.addf %157, %156 : vector<1x32xf32>
        %159 = arith.divf %157, %158 : vector<1x32xf32>
        %160 = arith.mulf %151, %132 : vector<1x32xf32>
        %161 = arith.mulf %145, %153 : vector<1x32xf32>
        %162 = arith.addf %160, %161 : vector<1x32xf32>
        %163 = math.tanh %162 : vector<1x32xf32>
        %164 = arith.mulf %159, %163 : vector<1x32xf32>
        %c1_103 = arith.constant 1 : index
        %c0_104 = arith.constant 0 : index
        %c0_105 = arith.constant 0 : index
        %165 = vector.load %arg12[%c1_103, %c0_104, %c0_105] : memref<2x1x32xf32, #tpu.memory_space<vmem>>, vector<1x1x32xf32>
        %166 = vector.shape_cast %165 : vector<1x1x32xf32> to vector<1x32xf32>
        %167 = vector.shape_cast %164 : vector<1x32xf32> to vector<1x1x32xf32>
        tpu.vector_store %arg12[%c1_103, %c0_104, %c0_105], %167 {strides = array<i32>} : memref<2x1x32xf32, #tpu.memory_space<vmem>>, vector<1x1x32xf32>,
        %c1_106 = arith.constant 1 : index
        %c0_107 = arith.constant 0 : index
        %c0_108 = arith.constant 0 : index
        %168 = vector.load %arg13[%c1_106, %c0_107, %c0_108] : memref<2x1x32xf32, #tpu.memory_space<vmem>>, vector<1x1x32xf32>
        %169 = vector.shape_cast %168 : vector<1x1x32xf32> to vector<1x32xf32>
        %170 = vector.shape_cast %162 : vector<1x32xf32> to vector<1x1x32xf32>
        tpu.vector_store %arg13[%c1_106, %c0_107, %c0_108], %170 {strides = array<i32>} : memref<2x1x32xf32, #tpu.memory_space<vmem>>, vector<1x1x32xf32>,
        %c0_109 = arith.constant 0 : index
        %c0_110 = arith.constant 0 : index
        %171 = vector.load %arg4[%c0_109, %c0_110] : memref<32x128xf32, #tpu.memory_space<vmem>>, vector<32x128xf32>
        %cst_111 = arith.constant dense<0.000000e+00> : vector<1x128xf32>
        %172 = tpu.matmul %164, %171, %cst_111 {dimension_numbers = #tpu.dot_dimension_numbers<[1], [0], [0], [1], [0, 0, 1, 1], [], []>} : vector<1x32xf32>, vector<32x128xf32>, vector<1x128xf32> -> vector<1x128xf32>
        %c0_112 = arith.constant 0 : index
        %c0_113 = arith.constant 0 : index
        %173 = vector.load %arg5[%c0_112, %c0_113] : memref<1x128xf32, #tpu.memory_space<vmem>>, vector<1x128xf32>
        %174 = arith.addf %172, %173 : vector<1x128xf32>
        %cst_114 = arith.constant dense<0xFF800000> : vector<1xf32>
        %175 = vector.multi_reduction <maximumf>, %174, %cst_114 [1] : vector<1x128xf32> to vector<1xf32>
        %176 = vector.shape_cast %175 : vector<1xf32> to vector<1x1xf32>
        %177 = vector.broadcast %176 : vector<1x1xf32> to vector<1x128xf32>
        %178 = arith.subf %174, %177 : vector<1x128xf32>
        %179 = math.exp %178 : vector<1x128xf32>
        %cst_115 = arith.constant dense<0.000000e+00> : vector<1xf32>
        %180 = vector.multi_reduction <add>, %179, %cst_115 [1] : vector<1x128xf32> to vector<1xf32>
        %181 = vector.shape_cast %180 : vector<1xf32> to vector<1x1xf32>
        %182 = math.log %181 : vector<1x1xf32>
        %183 = vector.broadcast %182 : vector<1x1xf32> to vector<1x128xf32>
        %184 = arith.subf %178, %183 : vector<1x128xf32>
        %c7 = arith.constant 7 : index
        %c0_116 = arith.constant 0 : index
        %185 = vector.load %arg14[%c7, %c0_116] : memref<8x128xf32, #tpu.memory_space<vmem>>, vector<1x128xf32>
        tpu.vector_store %arg14[%c7, %c0_116], %184 {strides = array<i32>} : memref<8x128xf32, #tpu.memory_space<vmem>>, vector<1x128xf32>,
        %cst_117 = arith.constant dense<0xFF800000> : vector<1xf32>
        %186 = vector.multi_reduction <maximumf>, %184, %cst_117 [1] : vector<1x128xf32> to vector<1xf32>
        %187 = vector.shape_cast %186 : vector<1xf32> to vector<1x1xf32>
        %188 = vector.broadcast %187 : vector<1x1xf32> to vector<1x128xf32>
        %189 = arith.cmpf oge, %184, %188 : vector<1x128xf32>
        %c128_i32 = arith.constant 128 : i32
        %190 = vector.broadcast %c128_i32 : i32 to vector<1x128xi32>
        %191 = arith.select %189, %0, %190 : vector<1x128xi1>, vector<1x128xi32>
        %cst_118 = arith.constant dense<2147483647> : vector<1xi32>
        %192 = vector.multi_reduction <minsi>, %191, %cst_118 [1] : vector<1x128xi32> to vector<1xi32>
        %193 = vector.shape_cast %192 : vector<1xi32> to vector<1x1xi32>
        %c0_119 = arith.constant 0 : index
        %c0_120 = arith.constant 0 : index
        %194 = vector.load %arg15[%c0_119, %c0_120] : memref<1x1xi32, #tpu.memory_space<vmem>>, vector<1x1xi32>
        tpu.vector_store %arg15[%c0_119, %c0_120], %193 {strides = array<i32>} : memref<1x1xi32, #tpu.memory_space<vmem>>, vector<1x1xi32>,
        %c0_121 = arith.constant 0 : index
        %c0_122 = arith.constant 0 : index
        %195 = vector.load %arg15[%c0_121, %c0_122] : memref<1x1xi32, #tpu.memory_space<vmem>>, vector<1x1xi32>
        %196 = vector.extract %195[0, 0] : i32 from vector<1x1xi32>
        %c0_123 = arith.constant 0 : index
        %197 = memref.load %arg16[%c0_123] : memref<1xi32, #tpu.memory_space<smem>>
        memref.store %196, %arg16[%c0_123] : memref<1xi32, #tpu.memory_space<smem>>
        %c5_i32_124 = arith.constant 5 : i32
        %198 = arith.cmpi eq, %196, %c5_i32_124 : i32
        %199 = arith.extui %198 : i1 to i32
        %c0_125 = arith.constant 0 : index
        %200 = memref.load %arg17[%c0_125] : memref<1xi32, #tpu.memory_space<smem>>
        memref.store %199, %arg17[%c0_125] : memref<1xi32, #tpu.memory_space<smem>>
        %c0_126 = arith.constant 0 : index
        %201 = memref.load %arg18[%c0_126] : memref<1xi32, #tpu.memory_space<smem>>
        %c1_i32_127 = arith.constant 1 : i32
        %202 = arith.addi %201, %c1_i32_127 : i32
        %c0_128 = arith.constant 0 : index
        %203 = memref.load %arg18[%c0_128] : memref<1xi32, #tpu.memory_space<smem>>
        memref.store %202, %arg18[%c0_128] : memref<1xi32, #tpu.memory_space<smem>>
      } else {
      }
    } else {
    }
    %c0_5 = arith.constant 0 : index
    %c0_6 = arith.constant 0 : index
    %10 = vector.load %arg14[%c0_5, %c0_6] : memref<8x128xf32, #tpu.memory_space<vmem>>, vector<8x128xf32>
    %c0_7 = arith.constant 0 : index
    %c0_8 = arith.constant 0 : index
    %11 = vector.load %arg8[%c0_7, %c0_8] : memref<8x128xf32, #tpu.memory_space<vmem>>, vector<8x128xf32>
    tpu.vector_store %arg8[%c0_7, %c0_8], %10 {strides = array<i32>} : memref<8x128xf32, #tpu.memory_space<vmem>>, vector<8x128xf32>,
    %c0_9 = arith.constant 0 : index
    %12 = memref.load %arg18[%c0_9] : memref<1xi32, #tpu.memory_space<smem>>
    %13 = vector.broadcast %12 : i32 to vector<1x1xi32>
    %c0_10 = arith.constant 0 : index
    %c0_11 = arith.constant 0 : index
    %14 = vector.load %arg9[%c0_10, %c0_11] : memref<1x1xi32, #tpu.memory_space<vmem>>, vector<1x1xi32>
    tpu.vector_store %arg9[%c0_10, %c0_11], %13 {strides = array<i32>} : memref<1x1xi32, #tpu.memory_space<vmem>>, vector<1x1xi32>,
    %c0_12 = arith.constant 0 : index
    %c0_13 = arith.constant 0 : index
    %c0_14 = arith.constant 0 : index
    %15 = vector.load %arg12[%c0_12, %c0_13, %c0_14] : memref<2x1x32xf32, #tpu.memory_space<vmem>>, vector<2x1x32xf32>
    %c0_15 = arith.constant 0 : index
    %c0_16 = arith.constant 0 : index
    %c0_17 = arith.constant 0 : index
    %16 = vector.load %arg10[%c0_15, %c0_16, %c0_17] : memref<2x1x32xf32, #tpu.memory_space<vmem>>, vector<2x1x32xf32>
    tpu.vector_store %arg10[%c0_15, %c0_16, %c0_17], %15 {strides = array<i32>} : memref<2x1x32xf32, #tpu.memory_space<vmem>>, vector<2x1x32xf32>,
    %c0_18 = arith.constant 0 : index
    %c0_19 = arith.constant 0 : index
    %c0_20 = arith.constant 0 : index
    %17 = vector.load %arg13[%c0_18, %c0_19, %c0_20] : memref<2x1x32xf32, #tpu.memory_space<vmem>>, vector<2x1x32xf32>
    %c0_21 = arith.constant 0 : index
    %c0_22 = arith.constant 0 : index
    %c0_23 = arith.constant 0 : index
    %18 = vector.load %arg11[%c0_21, %c0_22, %c0_23] : memref<2x1x32xf32, #tpu.memory_space<vmem>>, vector<2x1x32xf32>
    tpu.vector_store %arg11[%c0_21, %c0_22, %c0_23], %17 {strides = array<i32>} : memref<2x1x32xf32, #tpu.memory_space<vmem>>, vector<2x1x32xf32>,
    return
  }
  func.func @transform_0(%arg0: i32) -> (i32, i32, i32) {
    %c0_i32 = arith.constant 0 : i32
    %c0_i32_0 = arith.constant 0 : i32
    %c0_i32_1 = arith.constant 0 : i32
    %c0_i32_2 = arith.constant 0 : i32
    return %c0_i32, %c0_i32_0, %c0_i32_1 : i32, i32, i32
  }
  func.func @transform_1(%arg0: i32) -> (i32, i32, i32) {
    %c0_i32 = arith.constant 0 : i32
    %c0_i32_0 = arith.constant 0 : i32
    %c0_i32_1 = arith.constant 0 : i32
    %c0_i32_2 = arith.constant 0 : i32
    return %c0_i32, %c0_i32_0, %c0_i32_1 : i32, i32, i32
  }
  func.func @transform_2(%arg0: i32) -> (i32, i32, i32) {
    %c0_i32 = arith.constant 0 : i32
    %c0_i32_0 = arith.constant 0 : i32
    %c0_i32_1 = arith.constant 0 : i32
    %c0_i32_2 = arith.constant 0 : i32
    return %c0_i32, %c0_i32_0, %c0_i32_1 : i32, i32, i32
  }
  func.func @transform_3(%arg0: i32) -> (i32, i32) {
    %c0_i32 = arith.constant 0 : i32
    %c0_i32_0 = arith.constant 0 : i32
    %c0_i32_1 = arith.constant 0 : i32
    return %c0_i32, %c0_i32_0 : i32, i32
  }
  func.func @transform_4(%arg0: i32) -> (i32, i32) {
    %c0_i32 = arith.constant 0 : i32
    %c0_i32_0 = arith.constant 0 : i32
    %c0_i32_1 = arith.constant 0 : i32
    return %c0_i32, %c0_i32_0 : i32, i32
  }
  func.func @transform_5(%arg0: i32) -> (i32, i32, i32) {
    %c0_i32 = arith.constant 0 : i32
    %c0_i32_0 = arith.constant 0 : i32
    %c0_i32_1 = arith.constant 0 : i32
    %c0_i32_2 = arith.constant 0 : i32
    return %c0_i32, %c0_i32_0, %c0_i32_1 : i32, i32, i32
  }
  func.func @transform_6(%arg0: i32) -> (i32, i32, i32) {
    %c0_i32 = arith.constant 0 : i32
    %c0_i32_0 = arith.constant 0 : i32
    %c0_i32_1 = arith.constant 0 : i32
    %c0_i32_2 = arith.constant 0 : i32
    return %c0_i32, %c0_i32_0, %c0_i32_1 : i32, i32, i32
  }
  func.func @transform_7(%arg0: i32) -> (i32, i32) {
    %c0_i32 = arith.constant 0 : i32
    %c0_i32_0 = arith.constant 0 : i32
    return %arg0, %c0_i32 : i32, i32
  }
  func.func @transform_8(%arg0: i32) -> (i32, i32) {
    %c0_i32 = arith.constant 0 : i32
    %c0_i32_0 = arith.constant 0 : i32
    %c0_i32_1 = arith.constant 0 : i32
    return %c0_i32, %c0_i32_0 : i32, i32
  }
  func.func @transform_9(%arg0: i32) -> (i32, i32, i32) {
    %c0_i32 = arith.constant 0 : i32
    %c0_i32_0 = arith.constant 0 : i32
    %c0_i32_1 = arith.constant 0 : i32
    %c0_i32_2 = arith.constant 0 : i32
    return %c0_i32, %c0_i32_0, %c0_i32_1 : i32, i32, i32
  }
  func.func @transform_10(%arg0: i32) -> (i32, i32, i32) {
    %c0_i32 = arith.constant 0 : i32
    %c0_i32_0 = arith.constant 0 : i32
    %c0_i32_1 = arith.constant 0 : i32
    %c0_i32_2 = arith.constant 0 : i32
    return %c0_i32, %c0_i32_0, %c0_i32_1 : i32, i32, i32
  }
}

</mosaic_0001>

<llo_original>
// kernel: tpu_custom_call.1
$region0: #{tpu_custom_call.1}
  #allocation0 [shape = 'u32[]', space=smem, size = 0x4, offset = 0x4, fixed_abs, tag = 'smem constant byte address 0x4 - core index']
  #allocation1 [shape = 'u32[72,128]{1,0:T(1,128)}', space=vmem, size = 0x9000, scoped, tag = 'internal scratch']
  #allocation2 [shape = 'f32[2,1,32]{2,1,0:T(1,128)}', space=vmem, size = 0x400, scoped, tag = 'scratch operand']
  #allocation3 [shape = 'f32[2,1,32]{2,1,0:T(1,128)}', space=vmem, size = 0x400, scoped, tag = 'scratch operand']
  #allocation4 [shape = 'f32[8,128]{1,0:T(8,128)}', space=vmem, size = 0x1000, scoped, tag = 'scratch operand']
  #allocation5 [shape = 's32[1,1]{1,0:T(1,128)}', space=vmem, size = 0x200, scoped, tag = 'scratch operand']
  #allocation6 [shape = 's32[1]{0:T(128)}', space=smem, size = 0x200, scoped, tag = 'scratch operand']
  #allocation7 [shape = 's32[1]{0:T(128)}', space=smem, size = 0x200, scoped, tag = 'scratch operand']
  #allocation8 [shape = 's32[1]{0:T(128)}', space=smem, size = 0x200, scoped, tag = 'scratch operand']
  %s0 = inlined_call_operand.vmem [shape: f32[128,1,32], index: 0, kind: input, shape index: {}]
  %s1 = inlined_call_operand.vmem [shape: f32[2,64,128], index: 1, kind: input, shape index: {}]
  %s2 = inlined_call_operand.hbm [shape: f32[2,1,128], index: 2, kind: input, shape index: {}]
  %s3 = inlined_call_operand.vmem [shape: f32[32,128], index: 3, kind: input, shape index: {}]
  %s4 = inlined_call_operand.vmem [shape: f32[1,128], index: 4, kind: input, shape index: {}]
  %s5 = inlined_call_operand.vmem [shape: f32[2,1,32], index: 5, kind: input, shape index: {}]
  %s6 = inlined_call_operand.vmem [shape: f32[2,1,32], index: 6, kind: input, shape index: {}]
  %s7 = inlined_call_operand.hbm [shape: f32[16,128], index: 7, kind: output, shape index: {0}]
  %s8 = inlined_call_operand.hbm [shape: s32[1,1], index: 8, kind: output, shape index: {1}]
  %s9 = inlined_call_operand.hbm [shape: f32[2,1,32], index: 9, kind: output, shape index: {2}]
  %s10 = inlined_call_operand.hbm [shape: f32[2,1,32], index: 10, kind: output, shape index: {3}]
  %11 = xla_tuple %s7, %s8, %s9, %s10
  %s12 = sld [smem:[#allocation0]]
  $region129: #{tpu_custom_call.1} parent=0
    _
  %s14 = ssub.s32 1, %s12
  %s15 = scalar_select 0, %s14, %s12
  $region1: #{tpu_custom_call.1} parent=0
    #allocation9 [shape = 'u8[1024]{0}', space=vmem, size = 0x400, scoped, tag = 'input window, operand 2, single buffered']
    #allocation10 [shape = 's32[2]{0}', space=sflag, size = 0x8, scoped, tag = 'scoped memory for tpu_custom_call.1']
    #allocation11 [shape = 's32[2]{0}', space=sflag, size = 0x8, scoped, tag = 'scoped memory for tpu_custom_call.1']
    #allocation12 [shape = 'u8[8192]{0}', space=vmem, size = 0x2000, scoped, tag = 'output window, operand 0']
    #allocation13 [shape = 'u8[512]{0}', space=vmem, size = 0x400, scoped, tag = 'output window, operand 1, single buffered']
    #allocation14 [shape = 's32[1]{0}', space=sflag, size = 0x4, scoped, tag = 'scoped memory for tpu_custom_call.1']
    #allocation15 [shape = 'u8[1024]{0}', space=vmem, size = 0x400, scoped, tag = 'output window, operand 2, single buffered']
    #allocation16 [shape = 'u8[1024]{0}', space=vmem, size = 0x400, scoped, tag = 'output window, operand 3, single buffered']
    #allocation17 [shape = 's32[1]{0}', space=sflag, size = 0x4, scoped, tag = 'scoped memory for tpu_custom_call.1']
    %16 = vsyncpa [#allocation10], 0
    %17 = vsyncpa [#allocation11], 0
    %s18 = scalar_lea.sflag [#allocation11], 1
    %19 = vsyncpa %s18, 0
    %20 = vsyncpa [#allocation14], 0
    %21 = vsyncpa [#allocation17], 0
    loop: start=0, step=1, limit=4
    $region2: #{tpu_custom_call.1} parent=1 // loop_pre_header
      _
    $region3: #{tpu_custom_call.1} parent=1 // loop_header
      %s23 = sphi 0, %s27
      %p24 = scmp.ge.s32.totalorder %s23, 4
      %s31 = sphi 0, %s31
      %s33 = sphi 0, %s31
      %s34 = sphi 0, %s33
      %s48 = sphi 0, %s34
      %s52 = sphi 0, %s52
      %s54 = sphi 0, %s52
      %s55 = sphi 0, %s54
      %s69 = sphi 0, %s55
      %s73 = sphi 0, %s73
      %s75 = sphi 0, %s73
      %s76 = sphi 0, %s75
      %s90 = sphi 0, %s76
      %s94 = sphi 0, %s94
      %s96 = sphi 0, %s94
      %s97 = sphi 0, %s96
      %s111 = sphi 0, %s97
      %s115 = sphi 0, %s115
      %s117 = sphi 0, %s115
      %s118 = sphi 0, %s117
      %s132 = sphi 0, %s118
      %s136 = sphi 0, %s136
      %s138 = sphi 0, %s136
      %s139 = sphi 0, %s138
      %s153 = sphi 0, %s139
      %s157 = sphi 0, %s157
      %s159 = sphi 0, %s157
      %s160 = sphi 0, %s159
      %s174 = sphi 0, %s160
      %s180 = sphi 0, %s182
      %s183 = sphi 0, %s180
      %s184 = sphi 0, %s183
      %s200 = sphi 0, %s184
      %s204 = sphi 0, %s204
      %s206 = sphi 0, %s204
      %s207 = sphi 0, %s206
      %s221 = sphi 0, %s207
      %s225 = sphi 0, %s225
      %s227 = sphi 0, %s225
      %s228 = sphi 0, %s227
      %s242 = sphi 0, %s228
      %s246 = sphi 0, %s246
      %s248 = sphi 0, %s246
      %s249 = sphi 0, %s248
      %s263 = sphi 0, %s249
    $region4: #{tpu_custom_call.1} parent=1 // loop_header_branch
      %26 = sbr.rel (%p24) target = $region8
    $region5: #{tpu_custom_call.1} parent=1 // loop_body
      %s28 = ssub.s32 %s23, 1
      %s29 = ssub.s32 %s23, 2
      %s30 = sadd.s32 %s23, 1
      %s32 = sadd.s32 %s31, 1
      %p35 = scmp.eq.s32.totalorder %s23, 1
      %p36 = scmp.ne.s32.totalorder %s31, %s33
      %p37 = scmp.eq.s32.totalorder %s23, 0
      %p38 = por %p36, %p37
      %p39 = scmp.ne.s32.totalorder %s31, %s33
      %p40 = scmp.eq.s32.totalorder %s28, 1
      %p41 = por %p39, %p40
      %p42 = scmp.ne.s32.totalorder %s33, %s34
      %p43 = scmp.eq.s32.totalorder %s28, 0
      %p44 = por %p42, %p43
      %p45 = scmp.ne.s32.totalorder %s33, %s34
      %p46 = scmp.eq.s32.totalorder %s29, 1
      %p47 = por %p45, %p46
      %p49 = scmp.ne.s32.totalorder %s34, %s48
      %p50 = scmp.eq.s32.totalorder %s29, 0
      %p51 = por %p49, %p50
      %s53 = sadd.s32 %s52, 1
      %p56 = scmp.eq.s32.totalorder %s23, 1
      %p57 = scmp.ne.s32.totalorder %s52, %s54
      %p58 = scmp.eq.s32.totalorder %s23, 0
      %p59 = por %p57, %p58
      %p60 = scmp.ne.s32.totalorder %s52, %s54
      %p61 = scmp.eq.s32.totalorder %s28, 1
      %p62 = por %p60, %p61
      %p63 = scmp.ne.s32.totalorder %s54, %s55
      %p64 = scmp.eq.s32.totalorder %s28, 0
      %p65 = por %p63, %p64
      %p66 = scmp.ne.s32.totalorder %s54, %s55
      %p67 = scmp.eq.s32.totalorder %s29, 1
      %p68 = por %p66, %p67
      %p70 = scmp.ne.s32.totalorder %s55, %s69
      %p71 = scmp.eq.s32.totalorder %s29, 0
      %p72 = por %p70, %p71
      %s74 = sadd.s32 %s73, 1
      %p77 = scmp.eq.s32.totalorder %s23, 1
      %p78 = scmp.ne.s32.totalorder %s73, %s75
      %p79 = scmp.eq.s32.totalorder %s23, 0
      %p80 = por %p78, %p79
      %p81 = scmp.ne.s32.totalorder %s73, %s75
      %p82 = scmp.eq.s32.totalorder %s28, 1
      %p83 = por %p81, %p82
      %p84 = scmp.ne.s32.totalorder %s75, %s76
      %p85 = scmp.eq.s32.totalorder %s28, 0
      %p86 = por %p84, %p85
      %p87 = scmp.ne.s32.totalorder %s75, %s76
      %p88 = scmp.eq.s32.totalorder %s29, 1
      %p89 = por %p87, %p88
      %p91 = scmp.ne.s32.totalorder %s76, %s90
      %p92 = scmp.eq.s32.totalorder %s29, 0
      %p93 = por %p91, %p92
      %s95 = sadd.s32 %s94, 1
      %p98 = scmp.eq.s32.totalorder %s23, 1
      %p99 = scmp.ne.s32.totalorder %s94, %s96
      %p100 = scmp.eq.s32.totalorder %s23, 0
      %p101 = por %p99, %p100
      %p102 = scmp.ne.s32.totalorder %s94, %s96
      %p103 = scmp.eq.s32.totalorder %s28, 1
      %p104 = por %p102, %p103
      %p105 = scmp.ne.s32.totalorder %s96, %s97
      %p106 = scmp.eq.s32.totalorder %s28, 0
      %p107 = por %p105, %p106
      %p108 = scmp.ne.s32.totalorder %s96, %s97
      %p109 = scmp.eq.s32.totalorder %s29, 1
      %p110 = por %p108, %p109
      %p112 = scmp.ne.s32.totalorder %s97, %s111
      %p113 = scmp.eq.s32.totalorder %s29, 0
      %p114 = por %p112, %p113
      %s116 = sadd.s32 %s115, 1
      %p119 = scmp.eq.s32.totalorder %s23, 1
      %p120 = scmp.ne.s32.totalorder %s115, %s117
      %p121 = scmp.eq.s32.totalorder %s23, 0
      %p122 = por %p120, %p121
      %p123 = scmp.ne.s32.totalorder %s115, %s117
      %p124 = scmp.eq.s32.totalorder %s28, 1
      %p125 = por %p123, %p124
      %p126 = scmp.ne.s32.totalorder %s117, %s118
      %p127 = scmp.eq.s32.totalorder %s28, 0
      %p128 = por %p126, %p127
      %p129 = scmp.ne.s32.totalorder %s117, %s118
      %p130 = scmp.eq.s32.totalorder %s29, 1
      %p131 = por %p129, %p130
      %p133 = scmp.ne.s32.totalorder %s118, %s132
      %p134 = scmp.eq.s32.totalorder %s29, 0
      %p135 = por %p133, %p134
      %s137 = sadd.s32 %s136, 1
      %p140 = scmp.eq.s32.totalorder %s23, 1
      %p141 = scmp.ne.s32.totalorder %s136, %s138
      %p142 = scmp.eq.s32.totalorder %s23, 0
      %p143 = por %p141, %p142
      %p144 = scmp.ne.s32.totalorder %s136, %s138
      %p145 = scmp.eq.s32.totalorder %s28, 1
      %p146 = por %p144, %p145
      %p147 = scmp.ne.s32.totalorder %s138, %s139
      %p148 = scmp.eq.s32.totalorder %s28, 0
      %p149 = por %p147, %p148
      %p150 = scmp.ne.s32.totalorder %s138, %s139
      %p151 = scmp.eq.s32.totalorder %s29, 1
      %p152 = por %p150, %p151
      %p154 = scmp.ne.s32.totalorder %s139, %s153
      %p155 = scmp.eq.s32.totalorder %s29, 0
      %p156 = por %p154, %p155
      %s158 = sadd.s32 %s157, 1
      %p161 = scmp.eq.s32.totalorder %s23, 1
      %p162 = scmp.ne.s32.totalorder %s157, %s159
      %p163 = scmp.eq.s32.totalorder %s23, 0
      %p164 = por %p162, %p163
      %p165 = scmp.ne.s32.totalorder %s157, %s159
      %p166 = scmp.eq.s32.totalorder %s28, 1
      %p167 = por %p165, %p166
      %p168 = scmp.ne.s32.totalorder %s159, %s160
      %p169 = scmp.eq.s32.totalorder %s28, 0
      %p170 = por %p168, %p169
      %p171 = scmp.ne.s32.totalorder %s159, %s160
      %p172 = scmp.eq.s32.totalorder %s29, 1
      %p173 = por %p171, %p172
      %p175 = scmp.ne.s32.totalorder %s160, %s174
      %p176 = scmp.eq.s32.totalorder %s29, 0
      %p177 = por %p175, %p176
      %s178 = ssub.s32 %s23, %s30
      %p179 = scmp.eq.s32.totalorder %s178, 0
      %s181 = sadd.s32 %s180, 1
      %s182 = scalar_select %p179, %s180, %s181
      %p185 = pneg %p179
      %p186 = scmp.eq.s32.totalorder %s23, 1
      %p187 = por %p185, %p186
      %p188 = scmp.ne.s32.totalorder %s180, %s183
      %p189 = scmp.eq.s32.totalorder %s23, 0
      %p190 = por %p188, %p189
      %p191 = scmp.ne.s32.totalorder %s180, %s183
      %p192 = scmp.eq.s32.totalorder %s28, 1
      %p193 = por %p191, %p192
      %p194 = scmp.ne.s32.totalorder %s183, %s184
      %p195 = scmp.eq.s32.totalorder %s28, 0
      %p196 = por %p194, %p195
      %p197 = scmp.ne.s32.totalorder %s183, %s184
      %p198 = scmp.eq.s32.totalorder %s29, 1
      %p199 = por %p197, %p198
      %p201 = scmp.ne.s32.totalorder %s184, %s200
      %p202 = scmp.eq.s32.totalorder %s29, 0
      %p203 = por %p201, %p202
      %s205 = sadd.s32 %s204, 1
      %p208 = scmp.eq.s32.totalorder %s23, 1
      %p209 = scmp.ne.s32.totalorder %s204, %s206
      %p210 = scmp.eq.s32.totalorder %s23, 0
      %p211 = por %p209, %p210
      %p212 = scmp.ne.s32.totalorder %s204, %s206
      %p213 = scmp.eq.s32.totalorder %s28, 1
      %p214 = por %p212, %p213
      %p215 = scmp.ne.s32.totalorder %s206, %s207
      %p216 = scmp.eq.s32.totalorder %s28, 0
      %p217 = por %p215, %p216
      %p218 = scmp.ne.s32.totalorder %s206, %s207
      %p219 = scmp.eq.s32.totalorder %s29, 1
      %p220 = por %p218, %p219
      %p222 = scmp.ne.s32.totalorder %s207, %s221
      %p223 = scmp.eq.s32.totalorder %s29, 0
      %p224 = por %p222, %p223
      %s226 = sadd.s32 %s225, 1
      %p229 = scmp.eq.s32.totalorder %s23, 1
      %p230 = scmp.ne.s32.totalorder %s225, %s227
      %p231 = scmp.eq.s32.totalorder %s23, 0
      %p232 = por %p230, %p231
      %p233 = scmp.ne.s32.totalorder %s225, %s227
      %p234 = scmp.eq.s32.totalorder %s28, 1
      %p235 = por %p233, %p234
      %p236 = scmp.ne.s32.totalorder %s227, %s228
      %p237 = scmp.eq.s32.totalorder %s28, 0
      %p238 = por %p236, %p237
      %p239 = scmp.ne.s32.totalorder %s227, %s228
      %p240 = scmp.eq.s32.totalorder %s29, 1
      %p241 = por %p239, %p240
      %p243 = scmp.ne.s32.totalorder %s228, %s242
      %p244 = scmp.eq.s32.totalorder %s29, 0
      %p245 = por %p243, %p244
      %s247 = sadd.s32 %s246, 1
      %p250 = scmp.eq.s32.totalorder %s23, 1
      %p251 = scmp.ne.s32.totalorder %s246, %s248
      %p252 = scmp.eq.s32.totalorder %s23, 0
      %p253 = por %p251, %p252
      %p254 = scmp.ne.s32.totalorder %s246, %s248
      %p255 = scmp.eq.s32.totalorder %s28, 1
      %p256 = por %p254, %p255
      %p257 = scmp.ne.s32.totalorder %s248, %s249
      %p258 = scmp.eq.s32.totalorder %s28, 0
      %p259 = por %p257, %p258
      %p260 = scmp.ne.s32.totalorder %s248, %s249
      %p261 = scmp.eq.s32.totalorder %s29, 1
      %p262 = por %p260, %p261
      %p264 = scmp.ne.s32.totalorder %s249, %s263
      %p265 = scmp.eq.s32.totalorder %s29, 0
      %p266 = por %p264, %p265
      %p267 = scmp.le.s32.totalorder 1, %s23
      %p268 = scmp.lt.s32.totalorder %s23, 3
      %p269 = pnand %p267, %p268
      %p270 = pneg %p269
      // Predicated region
      $region9: #{tpu_custom_call.1} parent=5 // pred_check
        _
      $region10: #{tpu_custom_call.1} parent=5 // pred_check_branch
        %272 = sbr.rel (%p269) target = $region12
      $region11: #{tpu_custom_call.1} parent=5 // pred_region
        %s273 = ssub.s32 %s23, 1
        // Predicated region
        $region13: #{tpu_custom_call.1} parent=11 // pred_check
          %p274 = pneg %p44
        $region14: #{tpu_custom_call.1} parent=11 // pred_check_branch
          %276 = sbr.rel (%p274) target = $region16
        $region15: #{tpu_custom_call.1} parent=11 // pred_region
          _
        $region16: #{tpu_custom_call.1} parent=11 // pred_fallthru
          _
        // Predicated region
        $region17: #{tpu_custom_call.1} parent=11 // pred_check
          %p277 = pneg %p65
        $region18: #{tpu_custom_call.1} parent=11 // pred_check_branch
          %279 = sbr.rel (%p277) target = $region20
        $region19: #{tpu_custom_call.1} parent=11 // pred_region
          _
        $region20: #{tpu_custom_call.1} parent=11 // pred_fallthru
          _
        // Predicated region
        $region21: #{tpu_custom_call.1} parent=11 // pred_check
          %p280 = pneg %p86
        $region22: #{tpu_custom_call.1} parent=11 // pred_check_branch
          %282 = sbr.rel (%p280) target = $region24
        $region23: #{tpu_custom_call.1} parent=11 // pred_region
          %284 = vsyncadd [#allocation10], 0
          %s285 = sshll.u32 %s2, 4
          %s286 = int_to_ptr.hbm [resolvable:$true] %s285
          %s287 = sshll.u32 [#allocation9], 4
          %s288 = int_to_ptr.vmem [resolvable:$true] %s287
          %293 = dma.hbm_to_vmem [thread:$0]  %s286, 32, %s288, [#allocation10], 16, 16, 1
        $region24: #{tpu_custom_call.1} parent=11 // pred_fallthru
          _
        // Predicated region
        $region25: #{tpu_custom_call.1} parent=11 // pred_check
          %p294 = pneg %p107
        $region26: #{tpu_custom_call.1} parent=11 // pred_check_branch
          %296 = sbr.rel (%p294) target = $region28
        $region27: #{tpu_custom_call.1} parent=11 // pred_region
          _
        $region28: #{tpu_custom_call.1} parent=11 // pred_fallthru
          _
        // Predicated region
        $region29: #{tpu_custom_call.1} parent=11 // pred_check
          %p297 = pneg %p128
        $region30: #{tpu_custom_call.1} parent=11 // pred_check_branch
          %299 = sbr.rel (%p297) target = $region32
        $region31: #{tpu_custom_call.1} parent=11 // pred_region
          _
        $region32: #{tpu_custom_call.1} parent=11 // pred_fallthru
          _
        // Predicated region
        $region33: #{tpu_custom_call.1} parent=11 // pred_check
          %p300 = pneg %p149
        $region34: #{tpu_custom_call.1} parent=11 // pred_check_branch
          %302 = sbr.rel (%p300) target = $region36
        $region35: #{tpu_custom_call.1} parent=11 // pred_region
          _
        $region36: #{tpu_custom_call.1} parent=11 // pred_fallthru
          _
        // Predicated region
        $region37: #{tpu_custom_call.1} parent=11 // pred_check
          %p303 = pneg %p170
        $region38: #{tpu_custom_call.1} parent=11 // pred_check_branch
          %305 = sbr.rel (%p303) target = $region40
        $region39: #{tpu_custom_call.1} parent=11 // pred_region
          _
        $region40: #{tpu_custom_call.1} parent=11 // pred_fallthru
          _
      $region12: #{tpu_custom_call.1} parent=5 // pred_fallthru
        _
      %p306 = scmp.lt.s32.totalorder %s23, 2
      // Predicated region
      $region41: #{tpu_custom_call.1} parent=5 // pred_check
        %p307 = pneg %p306
      $region42: #{tpu_custom_call.1} parent=5 // pred_check_branch
        %309 = sbr.rel (%p307) target = $region44
      $region43: #{tpu_custom_call.1} parent=5 // pred_region
        _
      $region44: #{tpu_custom_call.1} parent=5 // pred_fallthru
        _
      %p310 = scmp.le.s32.totalorder 1, %s23
      %p311 = scmp.lt.s32.totalorder %s23, 3
      %p312 = pnand %p310, %p311
      %p313 = pneg %p312
      // Predicated region
      $region45: #{tpu_custom_call.1} parent=5 // pred_check
        _
      $region46: #{tpu_custom_call.1} parent=5 // pred_check_branch
        %315 = sbr.rel (%p312) target = $region48
      $region47: #{tpu_custom_call.1} parent=5 // pred_region
        %s316 = ssub.s32 %s23, 1
        // Predicated region
        $region49: #{tpu_custom_call.1} parent=47 // pred_check
          %p317 = pneg %p86
        $region50: #{tpu_custom_call.1} parent=47 // pred_check_branch
          %319 = sbr.rel (%p317) target = $region52
        $region51: #{tpu_custom_call.1} parent=47 // pred_region
          %321 = dma.done [#allocation10], 32
        $region52: #{tpu_custom_call.1} parent=47 // pred_fallthru
          _
        %p322 = pneg %p44
        %p323 = pneg %p41
        %p324 = pneg %p65
        %p325 = pneg %p62
        %p326 = pneg %p86
        %p327 = pneg %p83
        %p328 = pneg %p107
        %p329 = pneg %p104
        %p330 = pneg %p128
        %p331 = pneg %p125
        %p332 = pneg %p149
        %p333 = pneg %p146
        %p334 = pneg %p170
        %p335 = pneg %p167
        %p336 = pneg %p196
        %p337 = pneg %p193
        %s338 = sand.u32 %s183, 1
        %s339 = scalar_lea.sflag [#allocation11], %s338
        %s340 = sand.u32 %s183, 1
        %s341 = smul.addr %s340, 8
        %s342 = scalar_lea.vmem [#allocation12], %s341
        %p343 = pneg %p217
        %p344 = pneg %p214
        %p345 = pneg %p238
        %p346 = pneg %p235
        %p347 = pneg %p259
        %p348 = pneg %p256
        %v349 = vlaneseq
        %v350 = vand.u32 %v349, 127
        %p351 = scmp.eq.s32.totalorder %s28, 0
        // Predicated region
        $region53: #{tpu_custom_call.1} parent=47 // pred_check
          %p352 = pneg %p351
        $region54: #{tpu_custom_call.1} parent=47 // pred_check_branch
          %354 = sbr.rel (%p352) target = $region56
        $region55: #{tpu_custom_call.1} parent=47 // pred_region
          %v355 = vld [vmem:[%s5] sm:$0x1]
          %v356 = vld [vmem:[%s5 + $0x1] sm:$0x1]
          %vm357 = vcmask 253952
          %358 = vst.msk [vmem:[#allocation2] sm:$0x1] %vm357, %v355
          %359 = vst.msk [vmem:[#allocation2 + $0x1] sm:$0x1] %vm357, %v356
          %v360 = vld [vmem:[%s6] sm:$0x1]
          %v361 = vld [vmem:[%s6 + $0x1] sm:$0x1]
          %362 = vst.msk [vmem:[#allocation3] sm:$0x1] %vm357, %v360
          %363 = vst.msk [vmem:[#allocation3 + $0x1] sm:$0x1] %vm357, %v361
          %s364 = scalar_lea.smem [#allocation6], 0
          %365 = sst [smem:[%s364]] 0
          %s366 = scalar_lea.smem [#allocation7], 0
          %367 = sst [smem:[%s366]] 0
          %s368 = scalar_lea.smem [#allocation8], 0
          %369 = sst [smem:[%s368]] 0
        $region56: #{tpu_custom_call.1} parent=47 // pred_fallthru
          _
        %370 = vst [vmem:[#allocation4] sm:$0xff] 0.0
        %s371 = sld [smem:[#allocation7]]
        %p372 = scmp.eq.s32.totalorder %s371, 0
        // Predicated region
        $region57: #{tpu_custom_call.1} parent=47 // pred_check
          %p373 = pneg %p372
        $region58: #{tpu_custom_call.1} parent=47 // pred_check_branch
          %375 = sbr.rel (%p373) target = $region60
        $region59: #{tpu_custom_call.1} parent=47 // pred_region
          %s376 = sld [smem:[#allocation7]]
          %p377 = scmp.eq.s32.totalorder %s376, 0
          %s378 = smul.u32 %s28, 8
          %p379 = scmp.lt.s32.totalorder %s378, 16
          %p380 = pnand %p377, %p379
          %p381 = pneg %p380
          // Predicated region
          $region61: #{tpu_custom_call.1} parent=59 // pred_check
            _
          $region62: #{tpu_custom_call.1} parent=59 // pred_check_branch
            %383 = sbr.rel (%p380) target = $region64
          $region63: #{tpu_custom_call.1} parent=59 // pred_region
            %s384 = sld [smem:[#allocation6]]
            %s385 = scalar_lea.vmem %s0, %s384
            %v386 = vld [vmem:[%s385] sm:$0x1]
            %v387 = vld [vmem:[#allocation2] sm:$0x1]
            %v388 = vld [vmem:[#allocation3] sm:$0x1]
            %v390 = vperm.slane %v387, 0
            %391 = vrot.lane.b32.xlu0 %v390, 32
            %v392 = vpop.permute.xlu0 %391
            %vm394 = vcmask 261120
            %v395 = vsel %vm394, %v386, %v392
            %v396 = vld [vmem:[%s1] sm:$0xff]
            %v397 = vld [vmem:[%s1 + $0x8] sm:$0xff]
            %v398 = vld [vmem:[%s1 + $0x10] sm:$0xff]
            %v399 = vld [vmem:[%s1 + $0x18] sm:$0xff]
            %v400 = vld [vmem:[%s1 + $0x20] sm:$0xff]
            %v401 = vld [vmem:[%s1 + $0x28] sm:$0xff]
            %v402 = vld [vmem:[%s1 + $0x30] sm:$0xff]
            %v403 = vld [vmem:[%s1 + $0x38] sm:$0xff]
            %v404 = vld [vmem:[#allocation9] sm:$0x1]
            %vm405 = vcmask 523264
            %v407 = vsel %vm405, %v395, 0
            %409 = vmatpush.msra.mxu0 0.0
            %410 = vmatpush.msra.mxu0 0.0
            %411 = vmatpush.msra.mxu0 0.0
            %412 = vmatpush.msra.mxu0 0.0
            %413 = vmatpush.msra.mxu0 0.0
            %414 = vmatpush.msra.mxu0 0.0
            %415 = vmatpush.msra.mxu0 0.0
            %416 = vmatpush.msra.mxu0 0.0
            %417 = vmatpush.msra.mxu0 %v403
            %418 = vmatpush.msra.mxu0 %v402
            %419 = vmatpush.msra.mxu0 %v401
            %420 = vmatpush.msra.mxu0 %v400
            %421 = vmatpush.msra.mxu0 %v399
            %422 = vmatpush.msra.mxu0 %v398
            %423 = vmatpush.msra.mxu0 %v397
            %424 = vmatpush.msra.mxu0 %v396
            %425 = vmatmul.f32.gmra.mxu0 %v407
            %v426 = vpop.f32.mrf.mxu0
            %v427 = vadd.f32 %v404, %v426
            %428 = vdwg.mxu0
            %v429 = vxor.u32 %v427, 2147483648
            %v430 = vmul.f32 %v429, 1.442695
            %v431 = vpow.pop %v430
            %v432 = vadd.f32 %v431, 1.0
            %v433 = vrcp.pop %v432
            %v434 = vmul.f32 %v432, %v433
            %v435 = vsub.f32 1.0, %v434
            %v436 = vmul.f32 %v433, %v435
            %v437 = vadd.f32 %v433, %v436
            %vm438 = vweird.f32 %v432
            %vm439 = vweird.f32 %v433
            %vm440 = vmor %vm438, %vm439
            %v441 = vsel %vm440, %v433, %v437
            %v442 = vand.u32 2147483647, %v432
            %vm443 = vcmp.eq.f32.partialorder %v442, 8.507059e+37
            %v444 = vand.u32 %v432, 2147483648
            %v445 = vor.u32 1.1754944e-38, %v444
            %v446 = vsel %vm443, %v445, %v441
            %v447 = vmul.f32 1.0, %v446
            %v448 = vtanh.pop %v427
            %v450 = vperm.slane %v388, 0
            %451 = vrot.lane.b32.xlu0 %v450, 32
            %v452 = vpop.permute.xlu0 %451
            %v454 = vmul.f32 %v447, %v452
            %456 = vrot.lane.b32.xlu0 %v448, 64
            %v457 = vpop.permute.xlu0 %456
            %v459 = vmul.f32 %v447, %v457
            %461 = vrot.lane.b32.xlu0 %v459, 32
            %v462 = vpop.permute.xlu0 %461
            %v464 = vadd.f32 %v454, %v462
            %v465 = vtanh.pop %v464
            %467 = vrot.lane.b32.xlu0 %v465, 64
            %v468 = vpop.permute.xlu0 %467
            %v470 = vmul.f32 %v447, %v468
            %472 = vrot.lane.b32.xlu0 %v470, 32
            %v473 = vpop.permute.xlu0 %472
            %vm475 = vcmask 253952
            %476 = vst.msk [vmem:[#allocation2] sm:$0x1] %vm475, %v473
            %478 = vrot.lane.b32.xlu0 %v464, 96
            %v479 = vpop.permute.xlu0 %478
            %481 = vst.msk [vmem:[#allocation3] sm:$0x1] %vm475, %v479
            %s482 = scalar_lea.vmem [#allocation2], 1
            %v483 = vld [vmem:[%s482] sm:$0x1]
            %s484 = scalar_lea.vmem [#allocation3], 1
            %v485 = vld [vmem:[%s484] sm:$0x1]
            %v487 = vperm.slane %v483, 0
            %488 = vrot.lane.b32.xlu0 %v487, 32
            %v489 = vpop.permute.xlu0 %488
            %v491 = vsel %vm394, %v473, %v489
            %s492 = scalar_lea.vmem %s1, 64
            %v493 = vld [vmem:[%s492] sm:$0xff]
            %v494 = vld [vmem:[%s492 + $0x8] sm:$0xff]
            %v495 = vld [vmem:[%s492 + $0x10] sm:$0xff]
            %v496 = vld [vmem:[%s492 + $0x18] sm:$0xff]
            %v497 = vld [vmem:[%s492 + $0x20] sm:$0xff]
            %v498 = vld [vmem:[%s492 + $0x28] sm:$0xff]
            %v499 = vld [vmem:[%s492 + $0x30] sm:$0xff]
            %v500 = vld [vmem:[%s492 + $0x38] sm:$0xff]
            %s501 = scalar_lea.vmem [#allocation9], 1
            %v502 = vld [vmem:[%s501] sm:$0x1]
            %v504 = vsel %vm405, %v491, 0
            %506 = vmatpush.msra.mxu0 0.0
            %507 = vmatpush.msra.mxu0 0.0
            %508 = vmatpush.msra.mxu0 0.0
            %509 = vmatpush.msra.mxu0 0.0
            %510 = vmatpush.msra.mxu0 0.0
            %511 = vmatpush.msra.mxu0 0.0
            %512 = vmatpush.msra.mxu0 0.0
            %513 = vmatpush.msra.mxu0 0.0
            %514 = vmatpush.msra.mxu0 %v500
            %515 = vmatpush.msra.mxu0 %v499
            %516 = vmatpush.msra.mxu0 %v498
            %517 = vmatpush.msra.mxu0 %v497
            %518 = vmatpush.msra.mxu0 %v496
            %519 = vmatpush.msra.mxu0 %v495
            %520 = vmatpush.msra.mxu0 %v494
            %521 = vmatpush.msra.mxu0 %v493
            %522 = vmatmul.f32.gmra.mxu0 %v504
            %v523 = vpop.f32.mrf.mxu0
            %v524 = vadd.f32 %v502, %v523
            %525 = vdwg.mxu0
            %v526 = vxor.u32 %v524, 2147483648
            %v527 = vmul.f32 %v526, 1.442695
            %v528 = vpow.pop %v527
            %v529 = vadd.f32 %v528, 1.0
            %v530 = vrcp.pop %v529
            %v531 = vmul.f32 %v529, %v530
            %v532 = vsub.f32 1.0, %v531
            %v533 = vmul.f32 %v530, %v532
            %v534 = vadd.f32 %v530, %v533
            %vm535 = vweird.f32 %v529
            %vm536 = vweird.f32 %v530
            %vm537 = vmor %vm535, %vm536
            %v538 = vsel %vm537, %v530, %v534
            %v539 = vand.u32 2147483647, %v529
            %vm540 = vcmp.eq.f32.partialorder %v539, 8.507059e+37
            %v541 = vand.u32 %v529, 2147483648
            %v542 = vor.u32 1.1754944e-38, %v541
            %v543 = vsel %vm540, %v542, %v538
            %v544 = vmul.f32 1.0, %v543
            %v545 = vtanh.pop %v524
            %v547 = vperm.slane %v485, 0
            %548 = vrot.lane.b32.xlu0 %v547, 32
            %v549 = vpop.permute.xlu0 %548
            %v551 = vmul.f32 %v544, %v549
            %553 = vrot.lane.b32.xlu0 %v545, 64
            %v554 = vpop.permute.xlu0 %553
            %v556 = vmul.f32 %v544, %v554
            %558 = vrot.lane.b32.xlu0 %v556, 32
            %v559 = vpop.permute.xlu0 %558
            %v561 = vadd.f32 %v551, %v559
            %v562 = vtanh.pop %v561
            %564 = vrot.lane.b32.xlu0 %v562, 64
            %v565 = vpop.permute.xlu0 %564
            %v567 = vmul.f32 %v544, %v565
            %569 = vrot.lane.b32.xlu0 %v567, 32
            %v570 = vpop.permute.xlu0 %569
            %572 = vst.msk [vmem:[%s482] sm:$0x1] %vm475, %v570
            %574 = vrot.lane.b32.xlu0 %v561, 96
            %v575 = vpop.permute.xlu0 %574
            %577 = vst.msk [vmem:[%s484] sm:$0x1] %vm475, %v575
            %v578 = vld [vmem:[%s3] sm:$0xff]
            %v579 = vld [vmem:[%s3 + $0x8] sm:$0xff]
            %v580 = vld [vmem:[%s3 + $0x10] sm:$0xff]
            %v581 = vld [vmem:[%s3 + $0x18] sm:$0xff]
            %v582 = vld [vmem:[%s4] sm:$0x1]
            %v583 = vsel %vm394, %v570, 0
            %585 = vmatpush.msra.mxu0 0.0
            %586 = vmatpush.msra.mxu0 0.0
            %587 = vmatpush.msra.mxu0 0.0
            %588 = vmatpush.msra.mxu0 0.0
            %589 = vmatpush.msra.mxu0 0.0
            %590 = vmatpush.msra.mxu0 0.0
            %591 = vmatpush.msra.mxu0 0.0
            %592 = vmatpush.msra.mxu0 0.0
            %593 = vmatpush.msra.mxu0 0.0
            %594 = vmatpush.msra.mxu0 0.0
            %595 = vmatpush.msra.mxu0 0.0
            %596 = vmatpush.msra.mxu0 0.0
            %597 = vmatpush.msra.mxu0 %v581
            %598 = vmatpush.msra.mxu0 %v580
            %599 = vmatpush.msra.mxu0 %v579
            %600 = vmatpush.msra.mxu0 %v578
            %601 = vmatmul.f32.gmra.mxu0 %v583
            %v602 = vpop.f32.mrf.mxu0
            %v603 = vadd.f32 %v582, %v602
            %604 = vdwg.mxu0
            %vm605 = vcmask 1040384
            %v606 = vsel %vm605, %v603, -inf
            %607 = vmax.xlane.f32.xlu0 %v606
            %v608 = vpop.xlane.xlu0 %607
            %v609 = vsub.f32 %v603, %v608
            %v610 = vmul.f32 %v609, 1.442695
            %v611 = vpow.pop %v610
            %v612 = vsel %vm605, %v611, 0.0
            %613 = vadd.xlane.f32.xlu0 %v612
            %v614 = vpop.xlane.xlu0 %613
            %v615 = vlog2.pop %v614
            %v616 = vmul.f32 %v615, 0.6931472
            %v617 = vsub.f32 %v609, %v616
            %618 = vst [vmem:[#allocation4] sm:$0x1] %v617
            %v619 = vsel %vm605, %v617, -inf
            %620 = vmax.xlane.f32.xlu0 %v619
            %v621 = vpop.xlane.xlu0 %620
            %vm622 = vcmp.ge.f32.partialorder %v617, %v621
            %v623 = vsel %vm622, %v350, 128
            %v624 = vsel %vm605, %v623, 2147483647
            %v625 = vand.u32 %v624, 65535
            %v626 = vshra.s32 %v624, 16
            %v627 = vcvt.s32.f32 %v625
            %v628 = vcvt.s32.f32 %v626
            %629 = vmin.xlane.f32.xlu0 %v628
            %v630 = vpop.xlane.xlu0 %629
            %vm631 = vcmp.eq.f32.partialorder %v628, %v630
            %v632 = vsel %vm631, %v627, inf
            %633 = vmin.xlane.f32.xlu0 %v632
            %v634 = vpop.xlane.xlu0 %633
            %v635 = vcvt.f32.s32 %v634
            %v636 = vcvt.f32.s32 %v630
            %v637 = vshll.u32 %v636, 16
            %v638 = vadd.s32 %v637, %v635
            %vm639 = vcmask 0
            %640 = vst.msk [vmem:[#allocation5] sm:$0x1] %vm639, %v638
            %v641 = vld [vmem:[#allocation5] sm:$0x1]
            %s642 = vtos %v641
            %s643 = scalar_lea.smem [#allocation6], 0
            %644 = sst [smem:[%s643]] %s642
            %p645 = scmp.eq.s32.totalorder %s642, 5
            %s646 = scalar_select %p645, 1, 0
            %s647 = scalar_lea.smem [#allocation7], 0
            %648 = sst [smem:[%s647]] %s646
            %s649 = sld [smem:[#allocation8]]
            %s650 = sadd.s32 %s649, 1
            %s651 = scalar_lea.smem [#allocation8], 0
            %652 = sst [smem:[%s651]] %s650
          $region64: #{tpu_custom_call.1} parent=59 // pred_fallthru
            _
          %s653 = sld [smem:[#allocation7]]
          %p654 = scmp.eq.s32.totalorder %s653, 0
          %s655 = sadd.s32 %s378, 1
          %p656 = scmp.lt.s32.totalorder %s655, 16
          %p657 = pnand %p654, %p656
          %p658 = pneg %p657
          // Predicated region
          $region65: #{tpu_custom_call.1} parent=59 // pred_check
            _
          $region66: #{tpu_custom_call.1} parent=59 // pred_check_branch
            %660 = sbr.rel (%p657) target = $region68
          $region67: #{tpu_custom_call.1} parent=59 // pred_region
            %s661 = sld [smem:[#allocation6]]
            %s662 = scalar_lea.vmem %s0, %s661
            %v663 = vld [vmem:[%s662] sm:$0x1]
            %v664 = vld [vmem:[#allocation2] sm:$0x1]
            %v665 = vld [vmem:[#allocation3] sm:$0x1]
            %v667 = vperm.slane %v664, 0
            %668 = vrot.lane.b32.xlu0 %v667, 32
            %v669 = vpop.permute.xlu0 %668
            %vm671 = vcmask 261120
            %v672 = vsel %vm671, %v663, %v669
            %v673 = vld [vmem:[%s1] sm:$0xff]
            %v674 = vld [vmem:[%s1 + $0x8] sm:$0xff]
            %v675 = vld [vmem:[%s1 + $0x10] sm:$0xff]
            %v676 = vld [vmem:[%s1 + $0x18] sm:$0xff]
            %v677 = vld [vmem:[%s1 + $0x20] sm:$0xff]
            %v678 = vld [vmem:[%s1 + $0x28] sm:$0xff]
            %v679 = vld [vmem:[%s1 + $0x30] sm:$0xff]
            %v680 = vld [vmem:[%s1 + $0x38] sm:$0xff]
            %v681 = vld [vmem:[#allocation9] sm:$0x1]
            %vm682 = vcmask 523264
            %v684 = vsel %vm682, %v672, 0
            %686 = vmatpush.msra.mxu0 0.0
            %687 = vmatpush.msra.mxu0 0.0
            %688 = vmatpush.msra.mxu0 0.0
            %689 = vmatpush.msra.mxu0 0.0
            %690 = vmatpush.msra.mxu0 0.0
            %691 = vmatpush.msra.mxu0 0.0
            %692 = vmatpush.msra.mxu0 0.0
            %693 = vmatpush.msra.mxu0 0.0
            %694 = vmatpush.msra.mxu0 %v680
            %695 = vmatpush.msra.mxu0 %v679
            %696 = vmatpush.msra.mxu0 %v678
            %697 = vmatpush.msra.mxu0 %v677
            %698 = vmatpush.msra.mxu0 %v676
            %699 = vmatpush.msra.mxu0 %v675
            %700 = vmatpush.msra.mxu0 %v674
            %701 = vmatpush.msra.mxu0 %v673
            %702 = vmatmul.f32.gmra.mxu0 %v684
            %v703 = vpop.f32.mrf.mxu0
            %v704 = vadd.f32 %v681, %v703
            %705 = vdwg.mxu0
            %v706 = vxor.u32 %v704, 2147483648
            %v707 = vmul.f32 %v706, 1.442695
            %v708 = vpow.pop %v707
            %v709 = vadd.f32 %v708, 1.0
            %v710 = vrcp.pop %v709
            %v711 = vmul.f32 %v709, %v710
            %v712 = vsub.f32 1.0, %v711
            %v713 = vmul.f32 %v710, %v712
            %v714 = vadd.f32 %v710, %v713
            %vm715 = vweird.f32 %v709
            %vm716 = vweird.f32 %v710
            %vm717 = vmor %vm715, %vm716
            %v718 = vsel %vm717, %v710, %v714
            %v719 = vand.u32 2147483647, %v709
            %vm720 = vcmp.eq.f32.partialorder %v719, 8.507059e+37
            %v721 = vand.u32 %v709, 2147483648
            %v722 = vor.u32 1.1754944e-38, %v721
            %v723 = vsel %vm720, %v722, %v718
            %v724 = vmul.f32 1.0, %v723
            %v725 = vtanh.pop %v704
            %v727 = vperm.slane %v665, 0
            %728 = vrot.lane.b32.xlu0 %v727, 32
            %v729 = vpop.permute.xlu0 %728
            %v731 = vmul.f32 %v724, %v729
            %733 = vrot.lane.b32.xlu0 %v725, 64
            %v734 = vpop.permute.xlu0 %733
            %v736 = vmul.f32 %v724, %v734
            %738 = vrot.lane.b32.xlu0 %v736, 32
            %v739 = vpop.permute.xlu0 %738
            %v741 = vadd.f32 %v731, %v739
            %v742 = vtanh.pop %v741
            %744 = vrot.lane.b32.xlu0 %v742, 64
            %v745 = vpop.permute.xlu0 %744
            %v747 = vmul.f32 %v724, %v745
            %749 = vrot.lane.b32.xlu0 %v747, 32
            %v750 = vpop.permute.xlu0 %749
            %vm752 = vcmask 253952
            %753 = vst.msk [vmem:[#allocation2] sm:$0x1] %vm752, %v750
            %755 = vrot.lane.b32.xlu0 %v741, 96
            %v756 = vpop.permute.xlu0 %755
            %758 = vst.msk [vmem:[#allocation3] sm:$0x1] %vm752, %v756
            %s759 = scalar_lea.vmem [#allocation2], 1
            %v760 = vld [vmem:[%s759] sm:$0x1]
            %s761 = scalar_lea.vmem [#allocation3], 1
            %v762 = vld [vmem:[%s761] sm:$0x1]
            %v764 = vperm.slane %v760, 0
            %765 = vrot.lane.b32.xlu0 %v764, 32
            %v766 = vpop.permute.xlu0 %765
            %v768 = vsel %vm671, %v750, %v766
            %s769 = scalar_lea.vmem %s1, 64
            %v770 = vld [vmem:[%s769] sm:$0xff]
            %v771 = vld [vmem:[%s769 + $0x8] sm:$0xff]
            %v772 = vld [vmem:[%s769 + $0x10] sm:$0xff]
            %v773 = vld [vmem:[%s769 + $0x18] sm:$0xff]
            %v774 = vld [vmem:[%s769 + $0x20] sm:$0xff]
            %v775 = vld [vmem:[%s769 + $0x28] sm:$0xff]
            %v776 = vld [vmem:[%s769 + $0x30] sm:$0xff]
            %v777 = vld [vmem:[%s769 + $0x38] sm:$0xff]
            %s778 = scalar_lea.vmem [#allocation9], 1
            %v779 = vld [vmem:[%s778] sm:$0x1]
            %v781 = vsel %vm682, %v768, 0
            %783 = vmatpush.msra.mxu0 0.0
            %784 = vmatpush.msra.mxu0 0.0
            %785 = vmatpush.msra.mxu0 0.0
            %786 = vmatpush.msra.mxu0 0.0
            %787 = vmatpush.msra.mxu0 0.0
            %788 = vmatpush.msra.mxu0 0.0
            %789 = vmatpush.msra.mxu0 0.0
            %790 = vmatpush.msra.mxu0 0.0
            %791 = vmatpush.msra.mxu0 %v777
            %792 = vmatpush.msra.mxu0 %v776
            %793 = vmatpush.msra.mxu0 %v775
            %794 = vmatpush.msra.mxu0 %v774
            %795 = vmatpush.msra.mxu0 %v773
            %796 = vmatpush.msra.mxu0 %v772
            %797 = vmatpush.msra.mxu0 %v771
            %798 = vmatpush.msra.mxu0 %v770
            %799 = vmatmul.f32.gmra.mxu0 %v781
            %v800 = vpop.f32.mrf.mxu0
            %v801 = vadd.f32 %v779, %v800
            %802 = vdwg.mxu0
            %v803 = vxor.u32 %v801, 2147483648
            %v804 = vmul.f32 %v803, 1.442695
            %v805 = vpow.pop %v804
            %v806 = vadd.f32 %v805, 1.0
            %v807 = vrcp.pop %v806
            %v808 = vmul.f32 %v806, %v807
            %v809 = vsub.f32 1.0, %v808
            %v810 = vmul.f32 %v807, %v809
            %v811 = vadd.f32 %v807, %v810
            %vm812 = vweird.f32 %v806
            %vm813 = vweird.f32 %v807
            %vm814 = vmor %vm812, %vm813
            %v815 = vsel %vm814, %v807, %v811
            %v816 = vand.u32 2147483647, %v806
            %vm817 = vcmp.eq.f32.partialorder %v816, 8.507059e+37
            %v818 = vand.u32 %v806, 2147483648
            %v819 = vor.u32 1.1754944e-38, %v818
            %v820 = vsel %vm817, %v819, %v815
            %v821 = vmul.f32 1.0, %v820
            %v822 = vtanh.pop %v801
            %v824 = vperm.slane %v762, 0
            %825 = vrot.lane.b32.xlu0 %v824, 32
            %v826 = vpop.permute.xlu0 %825
            %v828 = vmul.f32 %v821, %v826
            %830 = vrot.lane.b32.xlu0 %v822, 64
            %v831 = vpop.permute.xlu0 %830
            %v833 = vmul.f32 %v821, %v831
            %835 = vrot.lane.b32.xlu0 %v833, 32
            %v836 = vpop.permute.xlu0 %835
            %v838 = vadd.f32 %v828, %v836
            %v839 = vtanh.pop %v838
            %841 = vrot.lane.b32.xlu0 %v839, 64
            %v842 = vpop.permute.xlu0 %841
            %v844 = vmul.f32 %v821, %v842
            %846 = vrot.lane.b32.xlu0 %v844, 32
            %v847 = vpop.permute.xlu0 %846
            %849 = vst.msk [vmem:[%s759] sm:$0x1] %vm752, %v847
            %851 = vrot.lane.b32.xlu0 %v838, 96
            %v852 = vpop.permute.xlu0 %851
            %854 = vst.msk [vmem:[%s761] sm:$0x1] %vm752, %v852
            %v855 = vld [vmem:[%s3] sm:$0xff]
            %v856 = vld [vmem:[%s3 + $0x8] sm:$0xff]
            %v857 = vld [vmem:[%s3 + $0x10] sm:$0xff]
            %v858 = vld [vmem:[%s3 + $0x18] sm:$0xff]
            %v859 = vld [vmem:[%s4] sm:$0x1]
            %v860 = vsel %vm671, %v847, 0
            %862 = vmatpush.msra.mxu0 0.0
            %863 = vmatpush.msra.mxu0 0.0
            %864 = vmatpush.msra.mxu0 0.0
            %865 = vmatpush.msra.mxu0 0.0
            %866 = vmatpush.msra.mxu0 0.0
            %867 = vmatpush.msra.mxu0 0.0
            %868 = vmatpush.msra.mxu0 0.0
            %869 = vmatpush.msra.mxu0 0.0
            %870 = vmatpush.msra.mxu0 0.0
            %871 = vmatpush.msra.mxu0 0.0
            %872 = vmatpush.msra.mxu0 0.0
            %873 = vmatpush.msra.mxu0 0.0
            %874 = vmatpush.msra.mxu0 %v858
            %875 = vmatpush.msra.mxu0 %v857
            %876 = vmatpush.msra.mxu0 %v856
            %877 = vmatpush.msra.mxu0 %v855
            %878 = vmatmul.f32.gmra.mxu0 %v860
            %v879 = vpop.f32.mrf.mxu0
            %v880 = vadd.f32 %v859, %v879
            %881 = vdwg.mxu0
            %vm882 = vcmask 1040384
            %v883 = vsel %vm882, %v880, -inf
            %884 = vmax.xlane.f32.xlu0 %v883
            %v885 = vpop.xlane.xlu0 %884
            %v886 = vsub.f32 %v880, %v885
            %v887 = vmul.f32 %v886, 1.442695
            %v888 = vpow.pop %v887
            %v889 = vsel %vm882, %v888, 0.0
            %890 = vadd.xlane.f32.xlu0 %v889
            %v891 = vpop.xlane.xlu0 %890
            %v892 = vlog2.pop %v891
            %v893 = vmul.f32 %v892, 0.6931472
            %v894 = vsub.f32 %v886, %v893
            %895 = vst [vmem:[#allocation4 + $0x1] sm:$0x1] %v894
            %v896 = vsel %vm882, %v894, -inf
            %897 = vmax.xlane.f32.xlu0 %v896
            %v898 = vpop.xlane.xlu0 %897
            %vm899 = vcmp.ge.f32.partialorder %v894, %v898
            %v900 = vsel %vm899, %v350, 128
            %v901 = vsel %vm882, %v900, 2147483647
            %v902 = vand.u32 %v901, 65535
            %v903 = vshra.s32 %v901, 16
            %v904 = vcvt.s32.f32 %v902
            %v905 = vcvt.s32.f32 %v903
            %906 = vmin.xlane.f32.xlu0 %v905
            %v907 = vpop.xlane.xlu0 %906
            %vm908 = vcmp.eq.f32.partialorder %v905, %v907
            %v909 = vsel %vm908, %v904, inf
            %910 = vmin.xlane.f32.xlu0 %v909
            %v911 = vpop.xlane.xlu0 %910
            %v912 = vcvt.f32.s32 %v911
            %v913 = vcvt.f32.s32 %v907
            %v914 = vshll.u32 %v913, 16
            %v915 = vadd.s32 %v914, %v912
            %vm916 = vcmask 0
            %917 = vst.msk [vmem:[#allocation5] sm:$0x1] %vm916, %v915
            %v918 = vld [vmem:[#allocation5] sm:$0x1]
            %s919 = vtos %v918
            %s920 = scalar_lea.smem [#allocation6], 0
            %921 = sst [smem:[%s920]] %s919
            %p922 = scmp.eq.s32.totalorder %s919, 5
            %s923 = scalar_select %p922, 1, 0
            %s924 = scalar_lea.smem [#allocation7], 0
            %925 = sst [smem:[%s924]] %s923
            %s926 = sld [smem:[#allocation8]]
            %s927 = sadd.s32 %s926, 1
            %s928 = scalar_lea.smem [#allocation8], 0
            %929 = sst [smem:[%s928]] %s927
          $region68: #{tpu_custom_call.1} parent=59 // pred_fallthru
            _
          %s930 = sld [smem:[#allocation7]]
          %p931 = scmp.eq.s32.totalorder %s930, 0
          %s932 = sadd.s32 %s378, 2
          %p933 = scmp.lt.s32.totalorder %s932, 16
          %p934 = pnand %p931, %p933
          %p935 = pneg %p934
          // Predicated region
          $region69: #{tpu_custom_call.1} parent=59 // pred_check
            _
          $region70: #{tpu_custom_call.1} parent=59 // pred_check_branch
            %937 = sbr.rel (%p934) target = $region72
          $region71: #{tpu_custom_call.1} parent=59 // pred_region
            %s938 = sld [smem:[#allocation6]]
            %s939 = scalar_lea.vmem %s0, %s938
            %v940 = vld [vmem:[%s939] sm:$0x1]
            %v941 = vld [vmem:[#allocation2] sm:$0x1]
            %v942 = vld [vmem:[#allocation3] sm:$0x1]
            %v944 = vperm.slane %v941, 0
            %945 = vrot.lane.b32.xlu0 %v944, 32
            %v946 = vpop.permute.xlu0 %945
            %vm948 = vcmask 261120
            %v949 = vsel %vm948, %v940, %v946
            %v950 = vld [vmem:[%s1] sm:$0xff]
            %v951 = vld [vmem:[%s1 + $0x8] sm:$0xff]
            %v952 = vld [vmem:[%s1 + $0x10] sm:$0xff]
            %v953 = vld [vmem:[%s1 + $0x18] sm:$0xff]
            %v954 = vld [vmem:[%s1 + $0x20] sm:$0xff]
            %v955 = vld [vmem:[%s1 + $0x28] sm:$0xff]
            %v956 = vld [vmem:[%s1 + $0x30] sm:$0xff]
            %v957 = vld [vmem:[%s1 + $0x38] sm:$0xff]
            %v958 = vld [vmem:[#allocation9] sm:$0x1]
            %vm959 = vcmask 523264
            %v961 = vsel %vm959, %v949, 0
            %963 = vmatpush.msra.mxu0 0.0
            %964 = vmatpush.msra.mxu0 0.0
            %965 = vmatpush.msra.mxu0 0.0
            %966 = vmatpush.msra.mxu0 0.0
            %967 = vmatpush.msra.mxu0 0.0
            %968 = vmatpush.msra.mxu0 0.0
            %969 = vmatpush.msra.mxu0 0.0
            %970 = vmatpush.msra.mxu0 0.0
            %971 = vmatpush.msra.mxu0 %v957
            %972 = vmatpush.msra.mxu0 %v956
            %973 = vmatpush.msra.mxu0 %v955
            %974 = vmatpush.msra.mxu0 %v954
            %975 = vmatpush.msra.mxu0 %v953
            %976 = vmatpush.msra.mxu0 %v952
            %977 = vmatpush.msra.mxu0 %v951
            %978 = vmatpush.msra.mxu0 %v950
            %979 = vmatmul.f32.gmra.mxu0 %v961
            %v980 = vpop.f32.mrf.mxu0
            %v981 = vadd.f32 %v958, %v980
            %982 = vdwg.mxu0
            %v983 = vxor.u32 %v981, 2147483648
            %v984 = vmul.f32 %v983, 1.442695
            %v985 = vpow.pop %v984
            %v986 = vadd.f32 %v985, 1.0
            %v987 = vrcp.pop %v986
            %v988 = vmul.f32 %v986, %v987
            %v989 = vsub.f32 1.0, %v988
            %v990 = vmul.f32 %v987, %v989
            %v991 = vadd.f32 %v987, %v990
            %vm992 = vweird.f32 %v986
            %vm993 = vweird.f32 %v987
            %vm994 = vmor %vm992, %vm993
            %v995 = vsel %vm994, %v987, %v991
            %v996 = vand.u32 2147483647, %v986
            %vm997 = vcmp.eq.f32.partialorder %v996, 8.507059e+37
            %v998 = vand.u32 %v986, 2147483648
            %v999 = vor.u32 1.1754944e-38, %v998
            %v1000 = vsel %vm997, %v999, %v995
            %v1001 = vmul.f32 1.0, %v1000
            %v1002 = vtanh.pop %v981
            %v1004 = vperm.slane %v942, 0
            %1005 = vrot.lane.b32.xlu0 %v1004, 32
            %v1006 = vpop.permute.xlu0 %1005
            %v1008 = vmul.f32 %v1001, %v1006
            %1010 = vrot.lane.b32.xlu0 %v1002, 64
            %v1011 = vpop.permute.xlu0 %1010
            %v1013 = vmul.f32 %v1001, %v1011
            %1015 = vrot.lane.b32.xlu0 %v1013, 32
            %v1016 = vpop.permute.xlu0 %1015
            %v1018 = vadd.f32 %v1008, %v1016
            %v1019 = vtanh.pop %v1018
            %1021 = vrot.lane.b32.xlu0 %v1019, 64
            %v1022 = vpop.permute.xlu0 %1021
            %v1024 = vmul.f32 %v1001, %v1022
            %1026 = vrot.lane.b32.xlu0 %v1024, 32
            %v1027 = vpop.permute.xlu0 %1026
            %vm1029 = vcmask 253952
            %1030 = vst.msk [vmem:[#allocation2] sm:$0x1] %vm1029, %v1027
            %1032 = vrot.lane.b32.xlu0 %v1018, 96
            %v1033 = vpop.permute.xlu0 %1032
            %1035 = vst.msk [vmem:[#allocation3] sm:$0x1] %vm1029, %v1033
            %s1036 = scalar_lea.vmem [#allocation2], 1
            %v1037 = vld [vmem:[%s1036] sm:$0x1]
            %s1038 = scalar_lea.vmem [#allocation3], 1
            %v1039 = vld [vmem:[%s1038] sm:$0x1]
            %v1041 = vperm.slane %v1037, 0
            %1042 = vrot.lane.b32.xlu0 %v1041, 32
            %v1043 = vpop.permute.xlu0 %1042
            %v1045 = vsel %vm948, %v1027, %v1043
            %s1046 = scalar_lea.vmem %s1, 64
            %v1047 = vld [vmem:[%s1046] sm:$0xff]
            %v1048 = vld [vmem:[%s1046 + $0x8] sm:$0xff]
            %v1049 = vld [vmem:[%s1046 + $0x10] sm:$0xff]
            %v1050 = vld [vmem:[%s1046 + $0x18] sm:$0xff]
            %v1051 = vld [vmem:[%s1046 + $0x20] sm:$0xff]
            %v1052 = vld [vmem:[%s1046 + $0x28] sm:$0xff]
            %v1053 = vld [vmem:[%s1046 + $0x30] sm:$0xff]
            %v1054 = vld [vmem:[%s1046 + $0x38] sm:$0xff]
            %s1055 = scalar_lea.vmem [#allocation9], 1
            %v1056 = vld [vmem:[%s1055] sm:$0x1]
            %v1058 = vsel %vm959, %v1045, 0
            %1060 = vmatpush.msra.mxu0 0.0
            %1061 = vmatpush.msra.mxu0 0.0
            %1062 = vmatpush.msra.mxu0 0.0
            %1063 = vmatpush.msra.mxu0 0.0
            %1064 = vmatpush.msra.mxu0 0.0
            %1065 = vmatpush.msra.mxu0 0.0
            %1066 = vmatpush.msra.mxu0 0.0
            %1067 = vmatpush.msra.mxu0 0.0
            %1068 = vmatpush.msra.mxu0 %v1054
            %1069 = vmatpush.msra.mxu0 %v1053
            %1070 = vmatpush.msra.mxu0 %v1052
            %1071 = vmatpush.msra.mxu0 %v1051
            %1072 = vmatpush.msra.mxu0 %v1050
            %1073 = vmatpush.msra.mxu0 %v1049
            %1074 = vmatpush.msra.mxu0 %v1048
            %1075 = vmatpush.msra.mxu0 %v1047
            %1076 = vmatmul.f32.gmra.mxu0 %v1058
            %v1077 = vpop.f32.mrf.mxu0
            %v1078 = vadd.f32 %v1056, %v1077
            %1079 = vdwg.mxu0
            %v1080 = vxor.u32 %v1078, 2147483648
            %v1081 = vmul.f32 %v1080, 1.442695
            %v1082 = vpow.pop %v1081
            %v1083 = vadd.f32 %v1082, 1.0
            %v1084 = vrcp.pop %v1083
            %v1085 = vmul.f32 %v1083, %v1084
            %v1086 = vsub.f32 1.0, %v1085
            %v1087 = vmul.f32 %v1084, %v1086
            %v1088 = vadd.f32 %v1084, %v1087
            %vm1089 = vweird.f32 %v1083
            %vm1090 = vweird.f32 %v1084
            %vm1091 = vmor %vm1089, %vm1090
            %v1092 = vsel %vm1091, %v1084, %v1088
            %v1093 = vand.u32 2147483647, %v1083
            %vm1094 = vcmp.eq.f32.partialorder %v1093, 8.507059e+37
            %v1095 = vand.u32 %v1083, 2147483648
            %v1096 = vor.u32 1.1754944e-38, %v1095
            %v1097 = vsel %vm1094, %v1096, %v1092
            %v1098 = vmul.f32 1.0, %v1097
            %v1099 = vtanh.pop %v1078
            %v1101 = vperm.slane %v1039, 0
            %1102 = vrot.lane.b32.xlu0 %v1101, 32
            %v1103 = vpop.permute.xlu0 %1102
            %v1105 = vmul.f32 %v1098, %v1103
            %1107 = vrot.lane.b32.xlu0 %v1099, 64
            %v1108 = vpop.permute.xlu0 %1107
            %v1110 = vmul.f32 %v1098, %v1108
            %1112 = vrot.lane.b32.xlu0 %v1110, 32
            %v1113 = vpop.permute.xlu0 %1112
            %v1115 = vadd.f32 %v1105, %v1113
            %v1116 = vtanh.pop %v1115
            %1118 = vrot.lane.b32.xlu0 %v1116, 64
            %v1119 = vpop.permute.xlu0 %1118
            %v1121 = vmul.f32 %v1098, %v1119
            %1123 = vrot.lane.b32.xlu0 %v1121, 32
            %v1124 = vpop.permute.xlu0 %1123
            %1126 = vst.msk [vmem:[%s1036] sm:$0x1] %vm1029, %v1124
            %1128 = vrot.lane.b32.xlu0 %v1115, 96
            %v1129 = vpop.permute.xlu0 %1128
            %1131 = vst.msk [vmem:[%s1038] sm:$0x1] %vm1029, %v1129
            %v1132 = vld [vmem:[%s3] sm:$0xff]
            %v1133 = vld [vmem:[%s3 + $0x8] sm:$0xff]
            %v1134 = vld [vmem:[%s3 + $0x10] sm:$0xff]
            %v1135 = vld [vmem:[%s3 + $0x18] sm:$0xff]
            %v1136 = vld [vmem:[%s4] sm:$0x1]
            %v1137 = vsel %vm948, %v1124, 0
            %1139 = vmatpush.msra.mxu0 0.0
            %1140 = vmatpush.msra.mxu0 0.0
            %1141 = vmatpush.msra.mxu0 0.0
            %1142 = vmatpush.msra.mxu0 0.0
            %1143 = vmatpush.msra.mxu0 0.0
            %1144 = vmatpush.msra.mxu0 0.0
            %1145 = vmatpush.msra.mxu0 0.0
            %1146 = vmatpush.msra.mxu0 0.0
            %1147 = vmatpush.msra.mxu0 0.0
            %1148 = vmatpush.msra.mxu0 0.0
            %1149 = vmatpush.msra.mxu0 0.0
            %1150 = vmatpush.msra.mxu0 0.0
            %1151 = vmatpush.msra.mxu0 %v1135
            %1152 = vmatpush.msra.mxu0 %v1134
            %1153 = vmatpush.msra.mxu0 %v1133
            %1154 = vmatpush.msra.mxu0 %v1132
            %1155 = vmatmul.f32.gmra.mxu0 %v1137
            %v1156 = vpop.f32.mrf.mxu0
            %v1157 = vadd.f32 %v1136, %v1156
            %1158 = vdwg.mxu0
            %vm1159 = vcmask 1040384
            %v1160 = vsel %vm1159, %v1157, -inf
            %1161 = vmax.xlane.f32.xlu0 %v1160
            %v1162 = vpop.xlane.xlu0 %1161
            %v1163 = vsub.f32 %v1157, %v1162
            %v1164 = vmul.f32 %v1163, 1.442695
            %v1165 = vpow.pop %v1164
            %v1166 = vsel %vm1159, %v1165, 0.0
            %1167 = vadd.xlane.f32.xlu0 %v1166
            %v1168 = vpop.xlane.xlu0 %1167
            %v1169 = vlog2.pop %v1168
            %v1170 = vmul.f32 %v1169, 0.6931472
            %v1171 = vsub.f32 %v1163, %v1170
            %1172 = vst [vmem:[#allocation4 + $0x2] sm:$0x1] %v1171
            %v1173 = vsel %vm1159, %v1171, -inf
            %1174 = vmax.xlane.f32.xlu0 %v1173
            %v1175 = vpop.xlane.xlu0 %1174
            %vm1176 = vcmp.ge.f32.partialorder %v1171, %v1175
            %v1177 = vsel %vm1176, %v350, 128
            %v1178 = vsel %vm1159, %v1177, 2147483647
            %v1179 = vand.u32 %v1178, 65535
            %v1180 = vshra.s32 %v1178, 16
            %v1181 = vcvt.s32.f32 %v1179
            %v1182 = vcvt.s32.f32 %v1180
            %1183 = vmin.xlane.f32.xlu0 %v1182
            %v1184 = vpop.xlane.xlu0 %1183
            %vm1185 = vcmp.eq.f32.partialorder %v1182, %v1184
            %v1186 = vsel %vm1185, %v1181, inf
            %1187 = vmin.xlane.f32.xlu0 %v1186
            %v1188 = vpop.xlane.xlu0 %1187
            %v1189 = vcvt.f32.s32 %v1188
            %v1190 = vcvt.f32.s32 %v1184
            %v1191 = vshll.u32 %v1190, 16
            %v1192 = vadd.s32 %v1191, %v1189
            %vm1193 = vcmask 0
            %1194 = vst.msk [vmem:[#allocation5] sm:$0x1] %vm1193, %v1192
            %v1195 = vld [vmem:[#allocation5] sm:$0x1]
            %s1196 = vtos %v1195
            %s1197 = scalar_lea.smem [#allocation6], 0
            %1198 = sst [smem:[%s1197]] %s1196
            %p1199 = scmp.eq.s32.totalorder %s1196, 5
            %s1200 = scalar_select %p1199, 1, 0
            %s1201 = scalar_lea.smem [#allocation7], 0
            %1202 = sst [smem:[%s1201]] %s1200
            %s1203 = sld [smem:[#allocation8]]
            %s1204 = sadd.s32 %s1203, 1
            %s1205 = scalar_lea.smem [#allocation8], 0
            %1206 = sst [smem:[%s1205]] %s1204
          $region72: #{tpu_custom_call.1} parent=59 // pred_fallthru
            _
          %s1207 = sld [smem:[#allocation7]]
          %p1208 = scmp.eq.s32.totalorder %s1207, 0
          %s1209 = sadd.s32 %s378, 3
          %p1210 = scmp.lt.s32.totalorder %s1209, 16
          %p1211 = pnand %p1208, %p1210
          %p1212 = pneg %p1211
          // Predicated region
          $region73: #{tpu_custom_call.1} parent=59 // pred_check
            _
          $region74: #{tpu_custom_call.1} parent=59 // pred_check_branch
            %1214 = sbr.rel (%p1211) target = $region76
          $region75: #{tpu_custom_call.1} parent=59 // pred_region
            %s1215 = sld [smem:[#allocation6]]
            %s1216 = scalar_lea.vmem %s0, %s1215
            %v1217 = vld [vmem:[%s1216] sm:$0x1]
            %v1218 = vld [vmem:[#allocation2] sm:$0x1]
            %v1219 = vld [vmem:[#allocation3] sm:$0x1]
            %v1221 = vperm.slane %v1218, 0
            %1222 = vrot.lane.b32.xlu0 %v1221, 32
            %v1223 = vpop.permute.xlu0 %1222
            %vm1225 = vcmask 261120
            %v1226 = vsel %vm1225, %v1217, %v1223
            %v1227 = vld [vmem:[%s1] sm:$0xff]
            %v1228 = vld [vmem:[%s1 + $0x8] sm:$0xff]
            %v1229 = vld [vmem:[%s1 + $0x10] sm:$0xff]
            %v1230 = vld [vmem:[%s1 + $0x18] sm:$0xff]
            %v1231 = vld [vmem:[%s1 + $0x20] sm:$0xff]
            %v1232 = vld [vmem:[%s1 + $0x28] sm:$0xff]
            %v1233 = vld [vmem:[%s1 + $0x30] sm:$0xff]
            %v1234 = vld [vmem:[%s1 + $0x38] sm:$0xff]
            %v1235 = vld [vmem:[#allocation9] sm:$0x1]
            %vm1236 = vcmask 523264
            %v1238 = vsel %vm1236, %v1226, 0
            %1240 = vmatpush.msra.mxu0 0.0
            %1241 = vmatpush.msra.mxu0 0.0
            %1242 = vmatpush.msra.mxu0 0.0
            %1243 = vmatpush.msra.mxu0 0.0
            %1244 = vmatpush.msra.mxu0 0.0
            %1245 = vmatpush.msra.mxu0 0.0
            %1246 = vmatpush.msra.mxu0 0.0
            %1247 = vmatpush.msra.mxu0 0.0
            %1248 = vmatpush.msra.mxu0 %v1234
            %1249 = vmatpush.msra.mxu0 %v1233
            %1250 = vmatpush.msra.mxu0 %v1232
            %1251 = vmatpush.msra.mxu0 %v1231
            %1252 = vmatpush.msra.mxu0 %v1230
            %1253 = vmatpush.msra.mxu0 %v1229
            %1254 = vmatpush.msra.mxu0 %v1228
            %1255 = vmatpush.msra.mxu0 %v1227
            %1256 = vmatmul.f32.gmra.mxu0 %v1238
            %v1257 = vpop.f32.mrf.mxu0
            %v1258 = vadd.f32 %v1235, %v1257
            %1259 = vdwg.mxu0
            %v1260 = vxor.u32 %v1258, 2147483648
            %v1261 = vmul.f32 %v1260, 1.442695
            %v1262 = vpow.pop %v1261
            %v1263 = vadd.f32 %v1262, 1.0
            %v1264 = vrcp.pop %v1263
            %v1265 = vmul.f32 %v1263, %v1264
            %v1266 = vsub.f32 1.0, %v1265
            %v1267 = vmul.f32 %v1264, %v1266
            %v1268 = vadd.f32 %v1264, %v1267
            %vm1269 = vweird.f32 %v1263
            %vm1270 = vweird.f32 %v1264
            %vm1271 = vmor %vm1269, %vm1270
            %v1272 = vsel %vm1271, %v1264, %v1268
            %v1273 = vand.u32 2147483647, %v1263
            %vm1274 = vcmp.eq.f32.partialorder %v1273, 8.507059e+37
            %v1275 = vand.u32 %v1263, 2147483648
            %v1276 = vor.u32 1.1754944e-38, %v1275
            %v1277 = vsel %vm1274, %v1276, %v1272
            %v1278 = vmul.f32 1.0, %v1277
            %v1279 = vtanh.pop %v1258
            %v1281 = vperm.slane %v1219, 0
            %1282 = vrot.lane.b32.xlu0 %v1281, 32
            %v1283 = vpop.permute.xlu0 %1282
            %v1285 = vmul.f32 %v1278, %v1283
            %1287 = vrot.lane.b32.xlu0 %v1279, 64
            %v1288 = vpop.permute.xlu0 %1287
            %v1290 = vmul.f32 %v1278, %v1288
            %1292 = vrot.lane.b32.xlu0 %v1290, 32
            %v1293 = vpop.permute.xlu0 %1292
            %v1295 = vadd.f32 %v1285, %v1293
            %v1296 = vtanh.pop %v1295
            %1298 = vrot.lane.b32.xlu0 %v1296, 64
            %v1299 = vpop.permute.xlu0 %1298
            %v1301 = vmul.f32 %v1278, %v1299
            %1303 = vrot.lane.b32.xlu0 %v1301, 32
            %v1304 = vpop.permute.xlu0 %1303
            %vm1306 = vcmask 253952
            %1307 = vst.msk [vmem:[#allocation2] sm:$0x1] %vm1306, %v1304
            %1309 = vrot.lane.b32.xlu0 %v1295, 96
            %v1310 = vpop.permute.xlu0 %1309
            %1312 = vst.msk [vmem:[#allocation3] sm:$0x1] %vm1306, %v1310
            %s1313 = scalar_lea.vmem [#allocation2], 1
            %v1314 = vld [vmem:[%s1313] sm:$0x1]
            %s1315 = scalar_lea.vmem [#allocation3], 1
            %v1316 = vld [vmem:[%s1315] sm:$0x1]
            %v1318 = vperm.slane %v1314, 0
            %1319 = vrot.lane.b32.xlu0 %v1318, 32
            %v1320 = vpop.permute.xlu0 %1319
            %v1322 = vsel %vm1225, %v1304, %v1320
            %s1323 = scalar_lea.vmem %s1, 64
            %v1324 = vld [vmem:[%s1323] sm:$0xff]
            %v1325 = vld [vmem:[%s1323 + $0x8] sm:$0xff]
            %v1326 = vld [vmem:[%s1323 + $0x10] sm:$0xff]
            %v1327 = vld [vmem:[%s1323 + $0x18] sm:$0xff]
            %v1328 = vld [vmem:[%s1323 + $0x20] sm:$0xff]
            %v1329 = vld [vmem:[%s1323 + $0x28] sm:$0xff]
            %v1330 = vld [vmem:[%s1323 + $0x30] sm:$0xff]
            %v1331 = vld [vmem:[%s1323 + $0x38] sm:$0xff]
            %s1332 = scalar_lea.vmem [#allocation9], 1
            %v1333 = vld [vmem:[%s1332] sm:$0x1]
            %v1335 = vsel %vm1236, %v1322, 0
            %1337 = vmatpush.msra.mxu0 0.0
            %1338 = vmatpush.msra.mxu0 0.0
            %1339 = vmatpush.msra.mxu0 0.0
            %1340 = vmatpush.msra.mxu0 0.0
            %1341 = vmatpush.msra.mxu0 0.0
            %1342 = vmatpush.msra.mxu0 0.0
            %1343 = vmatpush.msra.mxu0 0.0
            %1344 = vmatpush.msra.mxu0 0.0
            %1345 = vmatpush.msra.mxu0 %v1331
            %1346 = vmatpush.msra.mxu0 %v1330
            %1347 = vmatpush.msra.mxu0 %v1329
            %1348 = vmatpush.msra.mxu0 %v1328
            %1349 = vmatpush.msra.mxu0 %v1327
            %1350 = vmatpush.msra.mxu0 %v1326
            %1351 = vmatpush.msra.mxu0 %v1325
            %1352 = vmatpush.msra.mxu0 %v1324
            %1353 = vmatmul.f32.gmra.mxu0 %v1335
            %v1354 = vpop.f32.mrf.mxu0
            %v1355 = vadd.f32 %v1333, %v1354
            %1356 = vdwg.mxu0
            %v1357 = vxor.u32 %v1355, 2147483648
            %v1358 = vmul.f32 %v1357, 1.442695
            %v1359 = vpow.pop %v1358
            %v1360 = vadd.f32 %v1359, 1.0
            %v1361 = vrcp.pop %v1360
            %v1362 = vmul.f32 %v1360, %v1361
            %v1363 = vsub.f32 1.0, %v1362
            %v1364 = vmul.f32 %v1361, %v1363
            %v1365 = vadd.f32 %v1361, %v1364
            %vm1366 = vweird.f32 %v1360
            %vm1367 = vweird.f32 %v1361
            %vm1368 = vmor %vm1366, %vm1367
            %v1369 = vsel %vm1368, %v1361, %v1365
            %v1370 = vand.u32 2147483647, %v1360
            %vm1371 = vcmp.eq.f32.partialorder %v1370, 8.507059e+37
            %v1372 = vand.u32 %v1360, 2147483648
            %v1373 = vor.u32 1.1754944e-38, %v1372
            %v1374 = vsel %vm1371, %v1373, %v1369
            %v1375 = vmul.f32 1.0, %v1374
            %v1376 = vtanh.pop %v1355
            %v1378 = vperm.slane %v1316, 0
            %1379 = vrot.lane.b32.xlu0 %v1378, 32
            %v1380 = vpop.permute.xlu0 %1379
            %v1382 = vmul.f32 %v1375, %v1380
            %1384 = vrot.lane.b32.xlu0 %v1376, 64
            %v1385 = vpop.permute.xlu0 %1384
            %v1387 = vmul.f32 %v1375, %v1385
            %1389 = vrot.lane.b32.xlu0 %v1387, 32
            %v1390 = vpop.permute.xlu0 %1389
            %v1392 = vadd.f32 %v1382, %v1390
            %v1393 = vtanh.pop %v1392
            %1395 = vrot.lane.b32.xlu0 %v1393, 64
            %v1396 = vpop.permute.xlu0 %1395
            %v1398 = vmul.f32 %v1375, %v1396
            %1400 = vrot.lane.b32.xlu0 %v1398, 32
            %v1401 = vpop.permute.xlu0 %1400
            %1403 = vst.msk [vmem:[%s1313] sm:$0x1] %vm1306, %v1401
            %1405 = vrot.lane.b32.xlu0 %v1392, 96
            %v1406 = vpop.permute.xlu0 %1405
            %1408 = vst.msk [vmem:[%s1315] sm:$0x1] %vm1306, %v1406
            %v1409 = vld [vmem:[%s3] sm:$0xff]
            %v1410 = vld [vmem:[%s3 + $0x8] sm:$0xff]
            %v1411 = vld [vmem:[%s3 + $0x10] sm:$0xff]
            %v1412 = vld [vmem:[%s3 + $0x18] sm:$0xff]
            %v1413 = vld [vmem:[%s4] sm:$0x1]
            %v1414 = vsel %vm1225, %v1401, 0
            %1416 = vmatpush.msra.mxu0 0.0
            %1417 = vmatpush.msra.mxu0 0.0
            %1418 = vmatpush.msra.mxu0 0.0
            %1419 = vmatpush.msra.mxu0 0.0
            %1420 = vmatpush.msra.mxu0 0.0
            %1421 = vmatpush.msra.mxu0 0.0
            %1422 = vmatpush.msra.mxu0 0.0
            %1423 = vmatpush.msra.mxu0 0.0
            %1424 = vmatpush.msra.mxu0 0.0
            %1425 = vmatpush.msra.mxu0 0.0
            %1426 = vmatpush.msra.mxu0 0.0
            %1427 = vmatpush.msra.mxu0 0.0
            %1428 = vmatpush.msra.mxu0 %v1412
            %1429 = vmatpush.msra.mxu0 %v1411
            %1430 = vmatpush.msra.mxu0 %v1410
            %1431 = vmatpush.msra.mxu0 %v1409
            %1432 = vmatmul.f32.gmra.mxu0 %v1414
            %v1433 = vpop.f32.mrf.mxu0
            %v1434 = vadd.f32 %v1413, %v1433
            %1435 = vdwg.mxu0
            %vm1436 = vcmask 1040384
            %v1437 = vsel %vm1436, %v1434, -inf
            %1438 = vmax.xlane.f32.xlu0 %v1437
            %v1439 = vpop.xlane.xlu0 %1438
            %v1440 = vsub.f32 %v1434, %v1439
            %v1441 = vmul.f32 %v1440, 1.442695
            %v1442 = vpow.pop %v1441
            %v1443 = vsel %vm1436, %v1442, 0.0
            %1444 = vadd.xlane.f32.xlu0 %v1443
            %v1445 = vpop.xlane.xlu0 %1444
            %v1446 = vlog2.pop %v1445
            %v1447 = vmul.f32 %v1446, 0.6931472
            %v1448 = vsub.f32 %v1440, %v1447
            %1449 = vst [vmem:[#allocation4 + $0x3] sm:$0x1] %v1448
            %v1450 = vsel %vm1436, %v1448, -inf
            %1451 = vmax.xlane.f32.xlu0 %v1450
            %v1452 = vpop.xlane.xlu0 %1451
            %vm1453 = vcmp.ge.f32.partialorder %v1448, %v1452
            %v1454 = vsel %vm1453, %v350, 128
            %v1455 = vsel %vm1436, %v1454, 2147483647
            %v1456 = vand.u32 %v1455, 65535
            %v1457 = vshra.s32 %v1455, 16
            %v1458 = vcvt.s32.f32 %v1456
            %v1459 = vcvt.s32.f32 %v1457
            %1460 = vmin.xlane.f32.xlu0 %v1459
            %v1461 = vpop.xlane.xlu0 %1460
            %vm1462 = vcmp.eq.f32.partialorder %v1459, %v1461
            %v1463 = vsel %vm1462, %v1458, inf
            %1464 = vmin.xlane.f32.xlu0 %v1463
            %v1465 = vpop.xlane.xlu0 %1464
            %v1466 = vcvt.f32.s32 %v1465
            %v1467 = vcvt.f32.s32 %v1461
            %v1468 = vshll.u32 %v1467, 16
            %v1469 = vadd.s32 %v1468, %v1466
            %vm1470 = vcmask 0
            %1471 = vst.msk [vmem:[#allocation5] sm:$0x1] %vm1470, %v1469
            %v1472 = vld [vmem:[#allocation5] sm:$0x1]
            %s1473 = vtos %v1472
            %s1474 = scalar_lea.smem [#allocation6], 0
            %1475 = sst [smem:[%s1474]] %s1473
            %p1476 = scmp.eq.s32.totalorder %s1473, 5
            %s1477 = scalar_select %p1476, 1, 0
            %s1478 = scalar_lea.smem [#allocation7], 0
            %1479 = sst [smem:[%s1478]] %s1477
            %s1480 = sld [smem:[#allocation8]]
            %s1481 = sadd.s32 %s1480, 1
            %s1482 = scalar_lea.smem [#allocation8], 0
            %1483 = sst [smem:[%s1482]] %s1481
          $region76: #{tpu_custom_call.1} parent=59 // pred_fallthru
            _
          %s1484 = sld [smem:[#allocation7]]
          %p1485 = scmp.eq.s32.totalorder %s1484, 0
          %s1486 = sadd.s32 %s378, 4
          %p1487 = scmp.lt.s32.totalorder %s1486, 16
          %p1488 = pnand %p1485, %p1487
          %p1489 = pneg %p1488
          // Predicated region
          $region77: #{tpu_custom_call.1} parent=59 // pred_check
            _
          $region78: #{tpu_custom_call.1} parent=59 // pred_check_branch
            %1491 = sbr.rel (%p1488) target = $region80
          $region79: #{tpu_custom_call.1} parent=59 // pred_region
            %s1492 = sld [smem:[#allocation6]]
            %s1493 = scalar_lea.vmem %s0, %s1492
            %v1494 = vld [vmem:[%s1493] sm:$0x1]
            %v1495 = vld [vmem:[#allocation2] sm:$0x1]
            %v1496 = vld [vmem:[#allocation3] sm:$0x1]
            %v1498 = vperm.slane %v1495, 0
            %1499 = vrot.lane.b32.xlu0 %v1498, 32
            %v1500 = vpop.permute.xlu0 %1499
            %vm1502 = vcmask 261120
            %v1503 = vsel %vm1502, %v1494, %v1500
            %v1504 = vld [vmem:[%s1] sm:$0xff]
            %v1505 = vld [vmem:[%s1 + $0x8] sm:$0xff]
            %v1506 = vld [vmem:[%s1 + $0x10] sm:$0xff]
            %v1507 = vld [vmem:[%s1 + $0x18] sm:$0xff]
            %v1508 = vld [vmem:[%s1 + $0x20] sm:$0xff]
            %v1509 = vld [vmem:[%s1 + $0x28] sm:$0xff]
            %v1510 = vld [vmem:[%s1 + $0x30] sm:$0xff]
            %v1511 = vld [vmem:[%s1 + $0x38] sm:$0xff]
            %v1512 = vld [vmem:[#allocation9] sm:$0x1]
            %vm1513 = vcmask 523264
            %v1515 = vsel %vm1513, %v1503, 0
            %1517 = vmatpush.msra.mxu0 0.0
            %1518 = vmatpush.msra.mxu0 0.0
            %1519 = vmatpush.msra.mxu0 0.0
            %1520 = vmatpush.msra.mxu0 0.0
            %1521 = vmatpush.msra.mxu0 0.0
            %1522 = vmatpush.msra.mxu0 0.0
            %1523 = vmatpush.msra.mxu0 0.0
            %1524 = vmatpush.msra.mxu0 0.0
            %1525 = vmatpush.msra.mxu0 %v1511
            %1526 = vmatpush.msra.mxu0 %v1510
            %1527 = vmatpush.msra.mxu0 %v1509
            %1528 = vmatpush.msra.mxu0 %v1508
            %1529 = vmatpush.msra.mxu0 %v1507
            %1530 = vmatpush.msra.mxu0 %v1506
            %1531 = vmatpush.msra.mxu0 %v1505
            %1532 = vmatpush.msra.mxu0 %v1504
            %1533 = vmatmul.f32.gmra.mxu0 %v1515
            %v1534 = vpop.f32.mrf.mxu0
            %v1535 = vadd.f32 %v1512, %v1534
            %1536 = vdwg.mxu0
            %v1537 = vxor.u32 %v1535, 2147483648
            %v1538 = vmul.f32 %v1537, 1.442695
            %v1539 = vpow.pop %v1538
            %v1540 = vadd.f32 %v1539, 1.0
            %v1541 = vrcp.pop %v1540
            %v1542 = vmul.f32 %v1540, %v1541
            %v1543 = vsub.f32 1.0, %v1542
            %v1544 = vmul.f32 %v1541, %v1543
            %v1545 = vadd.f32 %v1541, %v1544
            %vm1546 = vweird.f32 %v1540
            %vm1547 = vweird.f32 %v1541
            %vm1548 = vmor %vm1546, %vm1547
            %v1549 = vsel %vm1548, %v1541, %v1545
            %v1550 = vand.u32 2147483647, %v1540
            %vm1551 = vcmp.eq.f32.partialorder %v1550, 8.507059e+37
            %v1552 = vand.u32 %v1540, 2147483648
            %v1553 = vor.u32 1.1754944e-38, %v1552
            %v1554 = vsel %vm1551, %v1553, %v1549
            %v1555 = vmul.f32 1.0, %v1554
            %v1556 = vtanh.pop %v1535
            %v1558 = vperm.slane %v1496, 0
            %1559 = vrot.lane.b32.xlu0 %v1558, 32
            %v1560 = vpop.permute.xlu0 %1559
            %v1562 = vmul.f32 %v1555, %v1560
            %1564 = vrot.lane.b32.xlu0 %v1556, 64
            %v1565 = vpop.permute.xlu0 %1564
            %v1567 = vmul.f32 %v1555, %v1565
            %1569 = vrot.lane.b32.xlu0 %v1567, 32
            %v1570 = vpop.permute.xlu0 %1569
            %v1572 = vadd.f32 %v1562, %v1570
            %v1573 = vtanh.pop %v1572
            %1575 = vrot.lane.b32.xlu0 %v1573, 64
            %v1576 = vpop.permute.xlu0 %1575
            %v1578 = vmul.f32 %v1555, %v1576
            %1580 = vrot.lane.b32.xlu0 %v1578, 32
            %v1581 = vpop.permute.xlu0 %1580
            %vm1583 = vcmask 253952
            %1584 = vst.msk [vmem:[#allocation2] sm:$0x1] %vm1583, %v1581
            %1586 = vrot.lane.b32.xlu0 %v1572, 96
            %v1587 = vpop.permute.xlu0 %1586
            %1589 = vst.msk [vmem:[#allocation3] sm:$0x1] %vm1583, %v1587
            %s1590 = scalar_lea.vmem [#allocation2], 1
            %v1591 = vld [vmem:[%s1590] sm:$0x1]
            %s1592 = scalar_lea.vmem [#allocation3], 1
            %v1593 = vld [vmem:[%s1592] sm:$0x1]
            %v1595 = vperm.slane %v1591, 0
            %1596 = vrot.lane.b32.xlu0 %v1595, 32
            %v1597 = vpop.permute.xlu0 %1596
            %v1599 = vsel %vm1502, %v1581, %v1597
            %s1600 = scalar_lea.vmem %s1, 64
            %v1601 = vld [vmem:[%s1600] sm:$0xff]
            %v1602 = vld [vmem:[%s1600 + $0x8] sm:$0xff]
            %v1603 = vld [vmem:[%s1600 + $0x10] sm:$0xff]
            %v1604 = vld [vmem:[%s1600 + $0x18] sm:$0xff]
            %v1605 = vld [vmem:[%s1600 + $0x20] sm:$0xff]
            %v1606 = vld [vmem:[%s1600 + $0x28] sm:$0xff]
            %v1607 = vld [vmem:[%s1600 + $0x30] sm:$0xff]
            %v1608 = vld [vmem:[%s1600 + $0x38] sm:$0xff]
            %s1609 = scalar_lea.vmem [#allocation9], 1
            %v1610 = vld [vmem:[%s1609] sm:$0x1]
            %v1612 = vsel %vm1513, %v1599, 0
            %1614 = vmatpush.msra.mxu0 0.0
            %1615 = vmatpush.msra.mxu0 0.0
            %1616 = vmatpush.msra.mxu0 0.0
            %1617 = vmatpush.msra.mxu0 0.0
            %1618 = vmatpush.msra.mxu0 0.0
            %1619 = vmatpush.msra.mxu0 0.0
            %1620 = vmatpush.msra.mxu0 0.0
            %1621 = vmatpush.msra.mxu0 0.0
            %1622 = vmatpush.msra.mxu0 %v1608
            %1623 = vmatpush.msra.mxu0 %v1607
            %1624 = vmatpush.msra.mxu0 %v1606
            %1625 = vmatpush.msra.mxu0 %v1605
            %1626 = vmatpush.msra.mxu0 %v1604
            %1627 = vmatpush.msra.mxu0 %v1603
            %1628 = vmatpush.msra.mxu0 %v1602
            %1629 = vmatpush.msra.mxu0 %v1601
            %1630 = vmatmul.f32.gmra.mxu0 %v1612
            %v1631 = vpop.f32.mrf.mxu0
            %v1632 = vadd.f32 %v1610, %v1631
            %1633 = vdwg.mxu0
            %v1634 = vxor.u32 %v1632, 2147483648
            %v1635 = vmul.f32 %v1634, 1.442695
            %v1636 = vpow.pop %v1635
            %v1637 = vadd.f32 %v1636, 1.0
            %v1638 = vrcp.pop %v1637
            %v1639 = vmul.f32 %v1637, %v1638
            %v1640 = vsub.f32 1.0, %v1639
            %v1641 = vmul.f32 %v1638, %v1640
            %v1642 = vadd.f32 %v1638, %v1641
            %vm1643 = vweird.f32 %v1637
            %vm1644 = vweird.f32 %v1638
            %vm1645 = vmor %vm1643, %vm1644
            %v1646 = vsel %vm1645, %v1638, %v1642
            %v1647 = vand.u32 2147483647, %v1637
            %vm1648 = vcmp.eq.f32.partialorder %v1647, 8.507059e+37
            %v1649 = vand.u32 %v1637, 2147483648
            %v1650 = vor.u32 1.1754944e-38, %v1649
            %v1651 = vsel %vm1648, %v1650, %v1646
            %v1652 = vmul.f32 1.0, %v1651
            %v1653 = vtanh.pop %v1632
            %v1655 = vperm.slane %v1593, 0
            %1656 = vrot.lane.b32.xlu0 %v1655, 32
            %v1657 = vpop.permute.xlu0 %1656
            %v1659 = vmul.f32 %v1652, %v1657
            %1661 = vrot.lane.b32.xlu0 %v1653, 64
            %v1662 = vpop.permute.xlu0 %1661
            %v1664 = vmul.f32 %v1652, %v1662
            %1666 = vrot.lane.b32.xlu0 %v1664, 32
            %v1667 = vpop.permute.xlu0 %1666
            %v1669 = vadd.f32 %v1659, %v1667
            %v1670 = vtanh.pop %v1669
            %1672 = vrot.lane.b32.xlu0 %v1670, 64
            %v1673 = vpop.permute.xlu0 %1672
            %v1675 = vmul.f32 %v1652, %v1673
            %1677 = vrot.lane.b32.xlu0 %v1675, 32
            %v1678 = vpop.permute.xlu0 %1677
            %1680 = vst.msk [vmem:[%s1590] sm:$0x1] %vm1583, %v1678
            %1682 = vrot.lane.b32.xlu0 %v1669, 96
            %v1683 = vpop.permute.xlu0 %1682
            %1685 = vst.msk [vmem:[%s1592] sm:$0x1] %vm1583, %v1683
            %v1686 = vld [vmem:[%s3] sm:$0xff]
            %v1687 = vld [vmem:[%s3 + $0x8] sm:$0xff]
            %v1688 = vld [vmem:[%s3 + $0x10] sm:$0xff]
            %v1689 = vld [vmem:[%s3 + $0x18] sm:$0xff]
            %v1690 = vld [vmem:[%s4] sm:$0x1]
            %v1691 = vsel %vm1502, %v1678, 0
            %1693 = vmatpush.msra.mxu0 0.0
            %1694 = vmatpush.msra.mxu0 0.0
            %1695 = vmatpush.msra.mxu0 0.0
            %1696 = vmatpush.msra.mxu0 0.0
            %1697 = vmatpush.msra.mxu0 0.0
            %1698 = vmatpush.msra.mxu0 0.0
            %1699 = vmatpush.msra.mxu0 0.0
            %1700 = vmatpush.msra.mxu0 0.0
            %1701 = vmatpush.msra.mxu0 0.0
            %1702 = vmatpush.msra.mxu0 0.0
            %1703 = vmatpush.msra.mxu0 0.0
            %1704 = vmatpush.msra.mxu0 0.0
            %1705 = vmatpush.msra.mxu0 %v1689
            %1706 = vmatpush.msra.mxu0 %v1688
            %1707 = vmatpush.msra.mxu0 %v1687
            %1708 = vmatpush.msra.mxu0 %v1686
            %1709 = vmatmul.f32.gmra.mxu0 %v1691
            %v1710 = vpop.f32.mrf.mxu0
            %v1711 = vadd.f32 %v1690, %v1710
            %1712 = vdwg.mxu0
            %vm1713 = vcmask 1040384
            %v1714 = vsel %vm1713, %v1711, -inf
            %1715 = vmax.xlane.f32.xlu0 %v1714
            %v1716 = vpop.xlane.xlu0 %1715
            %v1717 = vsub.f32 %v1711, %v1716
            %v1718 = vmul.f32 %v1717, 1.442695
            %v1719 = vpow.pop %v1718
            %v1720 = vsel %vm1713, %v1719, 0.0
            %1721 = vadd.xlane.f32.xlu0 %v1720
            %v1722 = vpop.xlane.xlu0 %1721
            %v1723 = vlog2.pop %v1722
            %v1724 = vmul.f32 %v1723, 0.6931472
            %v1725 = vsub.f32 %v1717, %v1724
            %1726 = vst [vmem:[#allocation4 + $0x4] sm:$0x1] %v1725
            %v1727 = vsel %vm1713, %v1725, -inf
            %1728 = vmax.xlane.f32.xlu0 %v1727
            %v1729 = vpop.xlane.xlu0 %1728
            %vm1730 = vcmp.ge.f32.partialorder %v1725, %v1729
            %v1731 = vsel %vm1730, %v350, 128
            %v1732 = vsel %vm1713, %v1731, 2147483647
            %v1733 = vand.u32 %v1732, 65535
            %v1734 = vshra.s32 %v1732, 16
            %v1735 = vcvt.s32.f32 %v1733
            %v1736 = vcvt.s32.f32 %v1734
            %1737 = vmin.xlane.f32.xlu0 %v1736
            %v1738 = vpop.xlane.xlu0 %1737
            %vm1739 = vcmp.eq.f32.partialorder %v1736, %v1738
            %v1740 = vsel %vm1739, %v1735, inf
            %1741 = vmin.xlane.f32.xlu0 %v1740
            %v1742 = vpop.xlane.xlu0 %1741
            %v1743 = vcvt.f32.s32 %v1742
            %v1744 = vcvt.f32.s32 %v1738
            %v1745 = vshll.u32 %v1744, 16
            %v1746 = vadd.s32 %v1745, %v1743
            %vm1747 = vcmask 0
            %1748 = vst.msk [vmem:[#allocation5] sm:$0x1] %vm1747, %v1746
            %v1749 = vld [vmem:[#allocation5] sm:$0x1]
            %s1750 = vtos %v1749
            %s1751 = scalar_lea.smem [#allocation6], 0
            %1752 = sst [smem:[%s1751]] %s1750
            %p1753 = scmp.eq.s32.totalorder %s1750, 5
            %s1754 = scalar_select %p1753, 1, 0
            %s1755 = scalar_lea.smem [#allocation7], 0
            %1756 = sst [smem:[%s1755]] %s1754
            %s1757 = sld [smem:[#allocation8]]
            %s1758 = sadd.s32 %s1757, 1
            %s1759 = scalar_lea.smem [#allocation8], 0
            %1760 = sst [smem:[%s1759]] %s1758
          $region80: #{tpu_custom_call.1} parent=59 // pred_fallthru
            _
          %s1761 = sld [smem:[#allocation7]]
          %p1762 = scmp.eq.s32.totalorder %s1761, 0
          %s1763 = sadd.s32 %s378, 5
          %p1764 = scmp.lt.s32.totalorder %s1763, 16
          %p1765 = pnand %p1762, %p1764
          %p1766 = pneg %p1765
          // Predicated region
          $region81: #{tpu_custom_call.1} parent=59 // pred_check
            _
          $region82: #{tpu_custom_call.1} parent=59 // pred_check_branch
            %1768 = sbr.rel (%p1765) target = $region84
          $region83: #{tpu_custom_call.1} parent=59 // pred_region
            %s1769 = sld [smem:[#allocation6]]
            %s1770 = scalar_lea.vmem %s0, %s1769
            %v1771 = vld [vmem:[%s1770] sm:$0x1]
            %v1772 = vld [vmem:[#allocation2] sm:$0x1]
            %v1773 = vld [vmem:[#allocation3] sm:$0x1]
            %v1775 = vperm.slane %v1772, 0
            %1776 = vrot.lane.b32.xlu0 %v1775, 32
            %v1777 = vpop.permute.xlu0 %1776
            %vm1779 = vcmask 261120
            %v1780 = vsel %vm1779, %v1771, %v1777
            %v1781 = vld [vmem:[%s1] sm:$0xff]
            %v1782 = vld [vmem:[%s1 + $0x8] sm:$0xff]
            %v1783 = vld [vmem:[%s1 + $0x10] sm:$0xff]
            %v1784 = vld [vmem:[%s1 + $0x18] sm:$0xff]
            %v1785 = vld [vmem:[%s1 + $0x20] sm:$0xff]
            %v1786 = vld [vmem:[%s1 + $0x28] sm:$0xff]
            %v1787 = vld [vmem:[%s1 + $0x30] sm:$0xff]
            %v1788 = vld [vmem:[%s1 + $0x38] sm:$0xff]
            %v1789 = vld [vmem:[#allocation9] sm:$0x1]
            %vm1790 = vcmask 523264
            %v1792 = vsel %vm1790, %v1780, 0
            %1794 = vmatpush.msra.mxu0 0.0
            %1795 = vmatpush.msra.mxu0 0.0
            %1796 = vmatpush.msra.mxu0 0.0
            %1797 = vmatpush.msra.mxu0 0.0
            %1798 = vmatpush.msra.mxu0 0.0
            %1799 = vmatpush.msra.mxu0 0.0
            %1800 = vmatpush.msra.mxu0 0.0
            %1801 = vmatpush.msra.mxu0 0.0
            %1802 = vmatpush.msra.mxu0 %v1788
            %1803 = vmatpush.msra.mxu0 %v1787
            %1804 = vmatpush.msra.mxu0 %v1786
            %1805 = vmatpush.msra.mxu0 %v1785
            %1806 = vmatpush.msra.mxu0 %v1784
            %1807 = vmatpush.msra.mxu0 %v1783
            %1808 = vmatpush.msra.mxu0 %v1782
            %1809 = vmatpush.msra.mxu0 %v1781
            %1810 = vmatmul.f32.gmra.mxu0 %v1792
            %v1811 = vpop.f32.mrf.mxu0
            %v1812 = vadd.f32 %v1789, %v1811
            %1813 = vdwg.mxu0
            %v1814 = vxor.u32 %v1812, 2147483648
            %v1815 = vmul.f32 %v1814, 1.442695
            %v1816 = vpow.pop %v1815
            %v1817 = vadd.f32 %v1816, 1.0
            %v1818 = vrcp.pop %v1817
            %v1819 = vmul.f32 %v1817, %v1818
            %v1820 = vsub.f32 1.0, %v1819
            %v1821 = vmul.f32 %v1818, %v1820
            %v1822 = vadd.f32 %v1818, %v1821
            %vm1823 = vweird.f32 %v1817
            %vm1824 = vweird.f32 %v1818
            %vm1825 = vmor %vm1823, %vm1824
            %v1826 = vsel %vm1825, %v1818, %v1822
            %v1827 = vand.u32 2147483647, %v1817
            %vm1828 = vcmp.eq.f32.partialorder %v1827, 8.507059e+37
            %v1829 = vand.u32 %v1817, 2147483648
            %v1830 = vor.u32 1.1754944e-38, %v1829
            %v1831 = vsel %vm1828, %v1830, %v1826
            %v1832 = vmul.f32 1.0, %v1831
            %v1833 = vtanh.pop %v1812
            %v1835 = vperm.slane %v1773, 0
            %1836 = vrot.lane.b32.xlu0 %v1835, 32
            %v1837 = vpop.permute.xlu0 %1836
            %v1839 = vmul.f32 %v1832, %v1837
            %1841 = vrot.lane.b32.xlu0 %v1833, 64
            %v1842 = vpop.permute.xlu0 %1841
            %v1844 = vmul.f32 %v1832, %v1842
            %1846 = vrot.lane.b32.xlu0 %v1844, 32
            %v1847 = vpop.permute.xlu0 %1846
            %v1849 = vadd.f32 %v1839, %v1847
            %v1850 = vtanh.pop %v1849
            %1852 = vrot.lane.b32.xlu0 %v1850, 64
            %v1853 = vpop.permute.xlu0 %1852
            %v1855 = vmul.f32 %v1832, %v1853
            %1857 = vrot.lane.b32.xlu0 %v1855, 32
            %v1858 = vpop.permute.xlu0 %1857
            %vm1860 = vcmask 253952
            %1861 = vst.msk [vmem:[#allocation2] sm:$0x1] %vm1860, %v1858
            %1863 = vrot.lane.b32.xlu0 %v1849, 96
            %v1864 = vpop.permute.xlu0 %1863
            %1866 = vst.msk [vmem:[#allocation3] sm:$0x1] %vm1860, %v1864
            %s1867 = scalar_lea.vmem [#allocation2], 1
            %v1868 = vld [vmem:[%s1867] sm:$0x1]
            %s1869 = scalar_lea.vmem [#allocation3], 1
            %v1870 = vld [vmem:[%s1869] sm:$0x1]
            %v1872 = vperm.slane %v1868, 0
            %1873 = vrot.lane.b32.xlu0 %v1872, 32
            %v1874 = vpop.permute.xlu0 %1873
            %v1876 = vsel %vm1779, %v1858, %v1874
            %s1877 = scalar_lea.vmem %s1, 64
            %v1878 = vld [vmem:[%s1877] sm:$0xff]
            %v1879 = vld [vmem:[%s1877 + $0x8] sm:$0xff]
            %v1880 = vld [vmem:[%s1877 + $0x10] sm:$0xff]
            %v1881 = vld [vmem:[%s1877 + $0x18] sm:$0xff]
            %v1882 = vld [vmem:[%s1877 + $0x20] sm:$0xff]
            %v1883 = vld [vmem:[%s1877 + $0x28] sm:$0xff]
            %v1884 = vld [vmem:[%s1877 + $0x30] sm:$0xff]
            %v1885 = vld [vmem:[%s1877 + $0x38] sm:$0xff]
            %s1886 = scalar_lea.vmem [#allocation9], 1
            %v1887 = vld [vmem:[%s1886] sm:$0x1]
            %v1889 = vsel %vm1790, %v1876, 0
            %1891 = vmatpush.msra.mxu0 0.0
            %1892 = vmatpush.msra.mxu0 0.0
            %1893 = vmatpush.msra.mxu0 0.0
            %1894 = vmatpush.msra.mxu0 0.0
            %1895 = vmatpush.msra.mxu0 0.0
            %1896 = vmatpush.msra.mxu0 0.0
            %1897 = vmatpush.msra.mxu0 0.0
            %1898 = vmatpush.msra.mxu0 0.0
            %1899 = vmatpush.msra.mxu0 %v1885
            %1900 = vmatpush.msra.mxu0 %v1884
            %1901 = vmatpush.msra.mxu0 %v1883
            %1902 = vmatpush.msra.mxu0 %v1882
            %1903 = vmatpush.msra.mxu0 %v1881
            %1904 = vmatpush.msra.mxu0 %v1880
            %1905 = vmatpush.msra.mxu0 %v1879
            %1906 = vmatpush.msra.mxu0 %v1878
            %1907 = vmatmul.f32.gmra.mxu0 %v1889
            %v1908 = vpop.f32.mrf.mxu0
            %v1909 = vadd.f32 %v1887, %v1908
            %1910 = vdwg.mxu0
            %v1911 = vxor.u32 %v1909, 2147483648
            %v1912 = vmul.f32 %v1911, 1.442695
            %v1913 = vpow.pop %v1912
            %v1914 = vadd.f32 %v1913, 1.0
            %v1915 = vrcp.pop %v1914
            %v1916 = vmul.f32 %v1914, %v1915
            %v1917 = vsub.f32 1.0, %v1916
            %v1918 = vmul.f32 %v1915, %v1917
            %v1919 = vadd.f32 %v1915, %v1918
            %vm1920 = vweird.f32 %v1914
            %vm1921 = vweird.f32 %v1915
            %vm1922 = vmor %vm1920, %vm1921
            %v1923 = vsel %vm1922, %v1915, %v1919
            %v1924 = vand.u32 2147483647, %v1914
            %vm1925 = vcmp.eq.f32.partialorder %v1924, 8.507059e+37
            %v1926 = vand.u32 %v1914, 2147483648
            %v1927 = vor.u32 1.1754944e-38, %v1926
            %v1928 = vsel %vm1925, %v1927, %v1923
            %v1929 = vmul.f32 1.0, %v1928
            %v1930 = vtanh.pop %v1909
            %v1932 = vperm.slane %v1870, 0
            %1933 = vrot.lane.b32.xlu0 %v1932, 32
            %v1934 = vpop.permute.xlu0 %1933
            %v1936 = vmul.f32 %v1929, %v1934
            %1938 = vrot.lane.b32.xlu0 %v1930, 64
            %v1939 = vpop.permute.xlu0 %1938
            %v1941 = vmul.f32 %v1929, %v1939
            %1943 = vrot.lane.b32.xlu0 %v1941, 32
            %v1944 = vpop.permute.xlu0 %1943
            %v1946 = vadd.f32 %v1936, %v1944
            %v1947 = vtanh.pop %v1946
            %1949 = vrot.lane.b32.xlu0 %v1947, 64
            %v1950 = vpop.permute.xlu0 %1949
            %v1952 = vmul.f32 %v1929, %v1950
            %1954 = vrot.lane.b32.xlu0 %v1952, 32
            %v1955 = vpop.permute.xlu0 %1954
            %1957 = vst.msk [vmem:[%s1867] sm:$0x1] %vm1860, %v1955
            %1959 = vrot.lane.b32.xlu0 %v1946, 96
            %v1960 = vpop.permute.xlu0 %1959
            %1962 = vst.msk [vmem:[%s1869] sm:$0x1] %vm1860, %v1960
            %v1963 = vld [vmem:[%s3] sm:$0xff]
            %v1964 = vld [vmem:[%s3 + $0x8] sm:$0xff]
            %v1965 = vld [vmem:[%s3 + $0x10] sm:$0xff]
            %v1966 = vld [vmem:[%s3 + $0x18] sm:$0xff]
            %v1967 = vld [vmem:[%s4] sm:$0x1]
            %v1968 = vsel %vm1779, %v1955, 0
            %1970 = vmatpush.msra.mxu0 0.0
            %1971 = vmatpush.msra.mxu0 0.0
            %1972 = vmatpush.msra.mxu0 0.0
            %1973 = vmatpush.msra.mxu0 0.0
            %1974 = vmatpush.msra.mxu0 0.0
            %1975 = vmatpush.msra.mxu0 0.0
            %1976 = vmatpush.msra.mxu0 0.0
            %1977 = vmatpush.msra.mxu0 0.0
            %1978 = vmatpush.msra.mxu0 0.0
            %1979 = vmatpush.msra.mxu0 0.0
            %1980 = vmatpush.msra.mxu0 0.0
            %1981 = vmatpush.msra.mxu0 0.0
            %1982 = vmatpush.msra.mxu0 %v1966
            %1983 = vmatpush.msra.mxu0 %v1965
            %1984 = vmatpush.msra.mxu0 %v1964
            %1985 = vmatpush.msra.mxu0 %v1963
            %1986 = vmatmul.f32.gmra.mxu0 %v1968
            %v1987 = vpop.f32.mrf.mxu0
            %v1988 = vadd.f32 %v1967, %v1987
            %1989 = vdwg.mxu0
            %vm1990 = vcmask 1040384
            %v1991 = vsel %vm1990, %v1988, -inf
            %1992 = vmax.xlane.f32.xlu0 %v1991
            %v1993 = vpop.xlane.xlu0 %1992
            %v1994 = vsub.f32 %v1988, %v1993
            %v1995 = vmul.f32 %v1994, 1.442695
            %v1996 = vpow.pop %v1995
            %v1997 = vsel %vm1990, %v1996, 0.0
            %1998 = vadd.xlane.f32.xlu0 %v1997
            %v1999 = vpop.xlane.xlu0 %1998
            %v2000 = vlog2.pop %v1999
            %v2001 = vmul.f32 %v2000, 0.6931472
            %v2002 = vsub.f32 %v1994, %v2001
            %2003 = vst [vmem:[#allocation4 + $0x5] sm:$0x1] %v2002
            %v2004 = vsel %vm1990, %v2002, -inf
            %2005 = vmax.xlane.f32.xlu0 %v2004
            %v2006 = vpop.xlane.xlu0 %2005
            %vm2007 = vcmp.ge.f32.partialorder %v2002, %v2006
            %v2008 = vsel %vm2007, %v350, 128
            %v2009 = vsel %vm1990, %v2008, 2147483647
            %v2010 = vand.u32 %v2009, 65535
            %v2011 = vshra.s32 %v2009, 16
            %v2012 = vcvt.s32.f32 %v2010
            %v2013 = vcvt.s32.f32 %v2011
            %2014 = vmin.xlane.f32.xlu0 %v2013
            %v2015 = vpop.xlane.xlu0 %2014
            %vm2016 = vcmp.eq.f32.partialorder %v2013, %v2015
            %v2017 = vsel %vm2016, %v2012, inf
            %2018 = vmin.xlane.f32.xlu0 %v2017
            %v2019 = vpop.xlane.xlu0 %2018
            %v2020 = vcvt.f32.s32 %v2019
            %v2021 = vcvt.f32.s32 %v2015
            %v2022 = vshll.u32 %v2021, 16
            %v2023 = vadd.s32 %v2022, %v2020
            %vm2024 = vcmask 0
            %2025 = vst.msk [vmem:[#allocation5] sm:$0x1] %vm2024, %v2023
            %v2026 = vld [vmem:[#allocation5] sm:$0x1]
            %s2027 = vtos %v2026
            %s2028 = scalar_lea.smem [#allocation6], 0
            %2029 = sst [smem:[%s2028]] %s2027
            %p2030 = scmp.eq.s32.totalorder %s2027, 5
            %s2031 = scalar_select %p2030, 1, 0
            %s2032 = scalar_lea.smem [#allocation7], 0
            %2033 = sst [smem:[%s2032]] %s2031
            %s2034 = sld [smem:[#allocation8]]
            %s2035 = sadd.s32 %s2034, 1
            %s2036 = scalar_lea.smem [#allocation8], 0
            %2037 = sst [smem:[%s2036]] %s2035
          $region84: #{tpu_custom_call.1} parent=59 // pred_fallthru
            _
          %s2038 = sld [smem:[#allocation7]]
          %p2039 = scmp.eq.s32.totalorder %s2038, 0
          %s2040 = sadd.s32 %s378, 6
          %p2041 = scmp.lt.s32.totalorder %s2040, 16
          %p2042 = pnand %p2039, %p2041
          %p2043 = pneg %p2042
          // Predicated region
          $region85: #{tpu_custom_call.1} parent=59 // pred_check
            _
          $region86: #{tpu_custom_call.1} parent=59 // pred_check_branch
            %2045 = sbr.rel (%p2042) target = $region88
          $region87: #{tpu_custom_call.1} parent=59 // pred_region
            %s2046 = sld [smem:[#allocation6]]
            %s2047 = scalar_lea.vmem %s0, %s2046
            %v2048 = vld [vmem:[%s2047] sm:$0x1]
            %v2049 = vld [vmem:[#allocation2] sm:$0x1]
            %v2050 = vld [vmem:[#allocation3] sm:$0x1]
            %v2052 = vperm.slane %v2049, 0
            %2053 = vrot.lane.b32.xlu0 %v2052, 32
            %v2054 = vpop.permute.xlu0 %2053
            %vm2056 = vcmask 261120
            %v2057 = vsel %vm2056, %v2048, %v2054
            %v2058 = vld [vmem:[%s1] sm:$0xff]
            %v2059 = vld [vmem:[%s1 + $0x8] sm:$0xff]
            %v2060 = vld [vmem:[%s1 + $0x10] sm:$0xff]
            %v2061 = vld [vmem:[%s1 + $0x18] sm:$0xff]
            %v2062 = vld [vmem:[%s1 + $0x20] sm:$0xff]
            %v2063 = vld [vmem:[%s1 + $0x28] sm:$0xff]
            %v2064 = vld [vmem:[%s1 + $0x30] sm:$0xff]
            %v2065 = vld [vmem:[%s1 + $0x38] sm:$0xff]
            %v2066 = vld [vmem:[#allocation9] sm:$0x1]
            %vm2067 = vcmask 523264
            %v2069 = vsel %vm2067, %v2057, 0
            %2071 = vmatpush.msra.mxu0 0.0
            %2072 = vmatpush.msra.mxu0 0.0
            %2073 = vmatpush.msra.mxu0 0.0
            %2074 = vmatpush.msra.mxu0 0.0
            %2075 = vmatpush.msra.mxu0 0.0
            %2076 = vmatpush.msra.mxu0 0.0
            %2077 = vmatpush.msra.mxu0 0.0
            %2078 = vmatpush.msra.mxu0 0.0
            %2079 = vmatpush.msra.mxu0 %v2065
            %2080 = vmatpush.msra.mxu0 %v2064
            %2081 = vmatpush.msra.mxu0 %v2063
            %2082 = vmatpush.msra.mxu0 %v2062
            %2083 = vmatpush.msra.mxu0 %v2061
            %2084 = vmatpush.msra.mxu0 %v2060
            %2085 = vmatpush.msra.mxu0 %v2059
            %2086 = vmatpush.msra.mxu0 %v2058
            %2087 = vmatmul.f32.gmra.mxu0 %v2069
            %v2088 = vpop.f32.mrf.mxu0
            %v2089 = vadd.f32 %v2066, %v2088
            %2090 = vdwg.mxu0
            %v2091 = vxor.u32 %v2089, 2147483648
            %v2092 = vmul.f32 %v2091, 1.442695
            %v2093 = vpow.pop %v2092
            %v2094 = vadd.f32 %v2093, 1.0
            %v2095 = vrcp.pop %v2094
            %v2096 = vmul.f32 %v2094, %v2095
            %v2097 = vsub.f32 1.0, %v2096
            %v2098 = vmul.f32 %v2095, %v2097
            %v2099 = vadd.f32 %v2095, %v2098
            %vm2100 = vweird.f32 %v2094
            %vm2101 = vweird.f32 %v2095
            %vm2102 = vmor %vm2100, %vm2101
            %v2103 = vsel %vm2102, %v2095, %v2099
            %v2104 = vand.u32 2147483647, %v2094
            %vm2105 = vcmp.eq.f32.partialorder %v2104, 8.507059e+37
            %v2106 = vand.u32 %v2094, 2147483648
            %v2107 = vor.u32 1.1754944e-38, %v2106
            %v2108 = vsel %vm2105, %v2107, %v2103
            %v2109 = vmul.f32 1.0, %v2108
            %v2110 = vtanh.pop %v2089
            %v2112 = vperm.slane %v2050, 0
            %2113 = vrot.lane.b32.xlu0 %v2112, 32
            %v2114 = vpop.permute.xlu0 %2113
            %v2116 = vmul.f32 %v2109, %v2114
            %2118 = vrot.lane.b32.xlu0 %v2110, 64
            %v2119 = vpop.permute.xlu0 %2118
            %v2121 = vmul.f32 %v2109, %v2119
            %2123 = vrot.lane.b32.xlu0 %v2121, 32
            %v2124 = vpop.permute.xlu0 %2123
            %v2126 = vadd.f32 %v2116, %v2124
            %v2127 = vtanh.pop %v2126
            %2129 = vrot.lane.b32.xlu0 %v2127, 64
            %v2130 = vpop.permute.xlu0 %2129
            %v2132 = vmul.f32 %v2109, %v2130
            %2134 = vrot.lane.b32.xlu0 %v2132, 32
            %v2135 = vpop.permute.xlu0 %2134
            %vm2137 = vcmask 253952
            %2138 = vst.msk [vmem:[#allocation2] sm:$0x1] %vm2137, %v2135
            %2140 = vrot.lane.b32.xlu0 %v2126, 96
            %v2141 = vpop.permute.xlu0 %2140
            %2143 = vst.msk [vmem:[#allocation3] sm:$0x1] %vm2137, %v2141
            %s2144 = scalar_lea.vmem [#allocation2], 1
            %v2145 = vld [vmem:[%s2144] sm:$0x1]
            %s2146 = scalar_lea.vmem [#allocation3], 1
            %v2147 = vld [vmem:[%s2146] sm:$0x1]
            %v2149 = vperm.slane %v2145, 0
            %2150 = vrot.lane.b32.xlu0 %v2149, 32
            %v2151 = vpop.permute.xlu0 %2150
            %v2153 = vsel %vm2056, %v2135, %v2151
            %s2154 = scalar_lea.vmem %s1, 64
            %v2155 = vld [vmem:[%s2154] sm:$0xff]
            %v2156 = vld [vmem:[%s2154 + $0x8] sm:$0xff]
            %v2157 = vld [vmem:[%s2154 + $0x10] sm:$0xff]
            %v2158 = vld [vmem:[%s2154 + $0x18] sm:$0xff]
            %v2159 = vld [vmem:[%s2154 + $0x20] sm:$0xff]
            %v2160 = vld [vmem:[%s2154 + $0x28] sm:$0xff]
            %v2161 = vld [vmem:[%s2154 + $0x30] sm:$0xff]
            %v2162 = vld [vmem:[%s2154 + $0x38] sm:$0xff]
            %s2163 = scalar_lea.vmem [#allocation9], 1
            %v2164 = vld [vmem:[%s2163] sm:$0x1]
            %v2166 = vsel %vm2067, %v2153, 0
            %2168 = vmatpush.msra.mxu0 0.0
            %2169 = vmatpush.msra.mxu0 0.0
            %2170 = vmatpush.msra.mxu0 0.0
            %2171 = vmatpush.msra.mxu0 0.0
            %2172 = vmatpush.msra.mxu0 0.0
            %2173 = vmatpush.msra.mxu0 0.0
            %2174 = vmatpush.msra.mxu0 0.0
            %2175 = vmatpush.msra.mxu0 0.0
            %2176 = vmatpush.msra.mxu0 %v2162
            %2177 = vmatpush.msra.mxu0 %v2161
            %2178 = vmatpush.msra.mxu0 %v2160
            %2179 = vmatpush.msra.mxu0 %v2159
            %2180 = vmatpush.msra.mxu0 %v2158
            %2181 = vmatpush.msra.mxu0 %v2157
            %2182 = vmatpush.msra.mxu0 %v2156
            %2183 = vmatpush.msra.mxu0 %v2155
            %2184 = vmatmul.f32.gmra.mxu0 %v2166
            %v2185 = vpop.f32.mrf.mxu0
            %v2186 = vadd.f32 %v2164, %v2185
            %2187 = vdwg.mxu0
            %v2188 = vxor.u32 %v2186, 2147483648
            %v2189 = vmul.f32 %v2188, 1.442695
            %v2190 = vpow.pop %v2189
            %v2191 = vadd.f32 %v2190, 1.0
            %v2192 = vrcp.pop %v2191
            %v2193 = vmul.f32 %v2191, %v2192
            %v2194 = vsub.f32 1.0, %v2193
            %v2195 = vmul.f32 %v2192, %v2194
            %v2196 = vadd.f32 %v2192, %v2195
            %vm2197 = vweird.f32 %v2191
            %vm2198 = vweird.f32 %v2192
            %vm2199 = vmor %vm2197, %vm2198
            %v2200 = vsel %vm2199, %v2192, %v2196
            %v2201 = vand.u32 2147483647, %v2191
            %vm2202 = vcmp.eq.f32.partialorder %v2201, 8.507059e+37
            %v2203 = vand.u32 %v2191, 2147483648
            %v2204 = vor.u32 1.1754944e-38, %v2203
            %v2205 = vsel %vm2202, %v2204, %v2200
            %v2206 = vmul.f32 1.0, %v2205
            %v2207 = vtanh.pop %v2186
            %v2209 = vperm.slane %v2147, 0
            %2210 = vrot.lane.b32.xlu0 %v2209, 32
            %v2211 = vpop.permute.xlu0 %2210
            %v2213 = vmul.f32 %v2206, %v2211
            %2215 = vrot.lane.b32.xlu0 %v2207, 64
            %v2216 = vpop.permute.xlu0 %2215
            %v2218 = vmul.f32 %v2206, %v2216
            %2220 = vrot.lane.b32.xlu0 %v2218, 32
            %v2221 = vpop.permute.xlu0 %2220
            %v2223 = vadd.f32 %v2213, %v2221
            %v2224 = vtanh.pop %v2223
            %2226 = vrot.lane.b32.xlu0 %v2224, 64
            %v2227 = vpop.permute.xlu0 %2226
            %v2229 = vmul.f32 %v2206, %v2227
            %2231 = vrot.lane.b32.xlu0 %v2229, 32
            %v2232 = vpop.permute.xlu0 %2231
            %2234 = vst.msk [vmem:[%s2144] sm:$0x1] %vm2137, %v2232
            %2236 = vrot.lane.b32.xlu0 %v2223, 96
            %v2237 = vpop.permute.xlu0 %2236
            %2239 = vst.msk [vmem:[%s2146] sm:$0x1] %vm2137, %v2237
            %v2240 = vld [vmem:[%s3] sm:$0xff]
            %v2241 = vld [vmem:[%s3 + $0x8] sm:$0xff]
            %v2242 = vld [vmem:[%s3 + $0x10] sm:$0xff]
            %v2243 = vld [vmem:[%s3 + $0x18] sm:$0xff]
            %v2244 = vld [vmem:[%s4] sm:$0x1]
            %v2245 = vsel %vm2056, %v2232, 0
            %2247 = vmatpush.msra.mxu0 0.0
            %2248 = vmatpush.msra.mxu0 0.0
            %2249 = vmatpush.msra.mxu0 0.0
            %2250 = vmatpush.msra.mxu0 0.0
            %2251 = vmatpush.msra.mxu0 0.0
            %2252 = vmatpush.msra.mxu0 0.0
            %2253 = vmatpush.msra.mxu0 0.0
            %2254 = vmatpush.msra.mxu0 0.0
            %2255 = vmatpush.msra.mxu0 0.0
            %2256 = vmatpush.msra.mxu0 0.0
            %2257 = vmatpush.msra.mxu0 0.0
            %2258 = vmatpush.msra.mxu0 0.0
            %2259 = vmatpush.msra.mxu0 %v2243
            %2260 = vmatpush.msra.mxu0 %v2242
            %2261 = vmatpush.msra.mxu0 %v2241
            %2262 = vmatpush.msra.mxu0 %v2240
            %2263 = vmatmul.f32.gmra.mxu0 %v2245
            %v2264 = vpop.f32.mrf.mxu0
            %v2265 = vadd.f32 %v2244, %v2264
            %2266 = vdwg.mxu0
            %vm2267 = vcmask 1040384
            %v2268 = vsel %vm2267, %v2265, -inf
            %2269 = vmax.xlane.f32.xlu0 %v2268
            %v2270 = vpop.xlane.xlu0 %2269
            %v2271 = vsub.f32 %v2265, %v2270
            %v2272 = vmul.f32 %v2271, 1.442695
            %v2273 = vpow.pop %v2272
            %v2274 = vsel %vm2267, %v2273, 0.0
            %2275 = vadd.xlane.f32.xlu0 %v2274
            %v2276 = vpop.xlane.xlu0 %2275
            %v2277 = vlog2.pop %v2276
            %v2278 = vmul.f32 %v2277, 0.6931472
            %v2279 = vsub.f32 %v2271, %v2278
            %2280 = vst [vmem:[#allocation4 + $0x6] sm:$0x1] %v2279
            %v2281 = vsel %vm2267, %v2279, -inf
            %2282 = vmax.xlane.f32.xlu0 %v2281
            %v2283 = vpop.xlane.xlu0 %2282
            %vm2284 = vcmp.ge.f32.partialorder %v2279, %v2283
            %v2285 = vsel %vm2284, %v350, 128
            %v2286 = vsel %vm2267, %v2285, 2147483647
            %v2287 = vand.u32 %v2286, 65535
            %v2288 = vshra.s32 %v2286, 16
            %v2289 = vcvt.s32.f32 %v2287
            %v2290 = vcvt.s32.f32 %v2288
            %2291 = vmin.xlane.f32.xlu0 %v2290
            %v2292 = vpop.xlane.xlu0 %2291
            %vm2293 = vcmp.eq.f32.partialorder %v2290, %v2292
            %v2294 = vsel %vm2293, %v2289, inf
            %2295 = vmin.xlane.f32.xlu0 %v2294
            %v2296 = vpop.xlane.xlu0 %2295
            %v2297 = vcvt.f32.s32 %v2296
            %v2298 = vcvt.f32.s32 %v2292
            %v2299 = vshll.u32 %v2298, 16
            %v2300 = vadd.s32 %v2299, %v2297
            %vm2301 = vcmask 0
            %2302 = vst.msk [vmem:[#allocation5] sm:$0x1] %vm2301, %v2300
            %v2303 = vld [vmem:[#allocation5] sm:$0x1]
            %s2304 = vtos %v2303
            %s2305 = scalar_lea.smem [#allocation6], 0
            %2306 = sst [smem:[%s2305]] %s2304
            %p2307 = scmp.eq.s32.totalorder %s2304, 5
            %s2308 = scalar_select %p2307, 1, 0
            %s2309 = scalar_lea.smem [#allocation7], 0
            %2310 = sst [smem:[%s2309]] %s2308
            %s2311 = sld [smem:[#allocation8]]
            %s2312 = sadd.s32 %s2311, 1
            %s2313 = scalar_lea.smem [#allocation8], 0
            %2314 = sst [smem:[%s2313]] %s2312
          $region88: #{tpu_custom_call.1} parent=59 // pred_fallthru
            _
          %s2315 = sld [smem:[#allocation7]]
          %p2316 = scmp.eq.s32.totalorder %s2315, 0
          %s2317 = sadd.s32 %s378, 7
          %p2318 = scmp.lt.s32.totalorder %s2317, 16
          %p2319 = pnand %p2316, %p2318
          %p2320 = pneg %p2319
          // Predicated region
          $region89: #{tpu_custom_call.1} parent=59 // pred_check
            _
          $region90: #{tpu_custom_call.1} parent=59 // pred_check_branch
            %2322 = sbr.rel (%p2319) target = $region92
          $region91: #{tpu_custom_call.1} parent=59 // pred_region
            %s2323 = sld [smem:[#allocation6]]
            %s2324 = scalar_lea.vmem %s0, %s2323
            %v2325 = vld [vmem:[%s2324] sm:$0x1]
            %v2326 = vld [vmem:[#allocation2] sm:$0x1]
            %v2327 = vld [vmem:[#allocation3] sm:$0x1]
            %v2329 = vperm.slane %v2326, 0
            %2330 = vrot.lane.b32.xlu0 %v2329, 32
            %v2331 = vpop.permute.xlu0 %2330
            %vm2333 = vcmask 261120
            %v2334 = vsel %vm2333, %v2325, %v2331
            %v2335 = vld [vmem:[%s1] sm:$0xff]
            %v2336 = vld [vmem:[%s1 + $0x8] sm:$0xff]
            %v2337 = vld [vmem:[%s1 + $0x10] sm:$0xff]
            %v2338 = vld [vmem:[%s1 + $0x18] sm:$0xff]
            %v2339 = vld [vmem:[%s1 + $0x20] sm:$0xff]
            %v2340 = vld [vmem:[%s1 + $0x28] sm:$0xff]
            %v2341 = vld [vmem:[%s1 + $0x30] sm:$0xff]
            %v2342 = vld [vmem:[%s1 + $0x38] sm:$0xff]
            %v2343 = vld [vmem:[#allocation9] sm:$0x1]
            %vm2344 = vcmask 523264
            %v2346 = vsel %vm2344, %v2334, 0
            %2348 = vmatpush.msra.mxu0 0.0
            %2349 = vmatpush.msra.mxu0 0.0
            %2350 = vmatpush.msra.mxu0 0.0
            %2351 = vmatpush.msra.mxu0 0.0
            %2352 = vmatpush.msra.mxu0 0.0
            %2353 = vmatpush.msra.mxu0 0.0
            %2354 = vmatpush.msra.mxu0 0.0
            %2355 = vmatpush.msra.mxu0 0.0
            %2356 = vmatpush.msra.mxu0 %v2342
            %2357 = vmatpush.msra.mxu0 %v2341
            %2358 = vmatpush.msra.mxu0 %v2340
            %2359 = vmatpush.msra.mxu0 %v2339
            %2360 = vmatpush.msra.mxu0 %v2338
            %2361 = vmatpush.msra.mxu0 %v2337
            %2362 = vmatpush.msra.mxu0 %v2336
            %2363 = vmatpush.msra.mxu0 %v2335
            %2364 = vmatmul.f32.gmra.mxu0 %v2346
            %v2365 = vpop.f32.mrf.mxu0
            %v2366 = vadd.f32 %v2343, %v2365
            %2367 = vdwg.mxu0
            %v2368 = vxor.u32 %v2366, 2147483648
            %v2369 = vmul.f32 %v2368, 1.442695
            %v2370 = vpow.pop %v2369
            %v2371 = vadd.f32 %v2370, 1.0
            %v2372 = vrcp.pop %v2371
            %v2373 = vmul.f32 %v2371, %v2372
            %v2374 = vsub.f32 1.0, %v2373
            %v2375 = vmul.f32 %v2372, %v2374
            %v2376 = vadd.f32 %v2372, %v2375
            %vm2377 = vweird.f32 %v2371
            %vm2378 = vweird.f32 %v2372
            %vm2379 = vmor %vm2377, %vm2378
            %v2380 = vsel %vm2379, %v2372, %v2376
            %v2381 = vand.u32 2147483647, %v2371
            %vm2382 = vcmp.eq.f32.partialorder %v2381, 8.507059e+37
            %v2383 = vand.u32 %v2371, 2147483648
            %v2384 = vor.u32 1.1754944e-38, %v2383
            %v2385 = vsel %vm2382, %v2384, %v2380
            %v2386 = vmul.f32 1.0, %v2385
            %v2387 = vtanh.pop %v2366
            %v2389 = vperm.slane %v2327, 0
            %2390 = vrot.lane.b32.xlu0 %v2389, 32
            %v2391 = vpop.permute.xlu0 %2390
            %v2393 = vmul.f32 %v2386, %v2391
            %2395 = vrot.lane.b32.xlu0 %v2387, 64
            %v2396 = vpop.permute.xlu0 %2395
            %v2398 = vmul.f32 %v2386, %v2396
            %2400 = vrot.lane.b32.xlu0 %v2398, 32
            %v2401 = vpop.permute.xlu0 %2400
            %v2403 = vadd.f32 %v2393, %v2401
            %v2404 = vtanh.pop %v2403
            %2406 = vrot.lane.b32.xlu0 %v2404, 64
            %v2407 = vpop.permute.xlu0 %2406
            %v2409 = vmul.f32 %v2386, %v2407
            %2411 = vrot.lane.b32.xlu0 %v2409, 32
            %v2412 = vpop.permute.xlu0 %2411
            %vm2414 = vcmask 253952
            %2415 = vst.msk [vmem:[#allocation2] sm:$0x1] %vm2414, %v2412
            %2417 = vrot.lane.b32.xlu0 %v2403, 96
            %v2418 = vpop.permute.xlu0 %2417
            %2420 = vst.msk [vmem:[#allocation3] sm:$0x1] %vm2414, %v2418
            %s2421 = scalar_lea.vmem [#allocation2], 1
            %v2422 = vld [vmem:[%s2421] sm:$0x1]
            %s2423 = scalar_lea.vmem [#allocation3], 1
            %v2424 = vld [vmem:[%s2423] sm:$0x1]
            %v2426 = vperm.slane %v2422, 0
            %2427 = vrot.lane.b32.xlu0 %v2426, 32
            %v2428 = vpop.permute.xlu0 %2427
            %v2430 = vsel %vm2333, %v2412, %v2428
            %s2431 = scalar_lea.vmem %s1, 64
            %v2432 = vld [vmem:[%s2431] sm:$0xff]
            %v2433 = vld [vmem:[%s2431 + $0x8] sm:$0xff]
            %v2434 = vld [vmem:[%s2431 + $0x10] sm:$0xff]
            %v2435 = vld [vmem:[%s2431 + $0x18] sm:$0xff]
            %v2436 = vld [vmem:[%s2431 + $0x20] sm:$0xff]
            %v2437 = vld [vmem:[%s2431 + $0x28] sm:$0xff]
            %v2438 = vld [vmem:[%s2431 + $0x30] sm:$0xff]
            %v2439 = vld [vmem:[%s2431 + $0x38] sm:$0xff]
            %s2440 = scalar_lea.vmem [#allocation9], 1
            %v2441 = vld [vmem:[%s2440] sm:$0x1]
            %v2443 = vsel %vm2344, %v2430, 0
            %2445 = vmatpush.msra.mxu0 0.0
            %2446 = vmatpush.msra.mxu0 0.0
            %2447 = vmatpush.msra.mxu0 0.0
            %2448 = vmatpush.msra.mxu0 0.0
            %2449 = vmatpush.msra.mxu0 0.0
            %2450 = vmatpush.msra.mxu0 0.0
            %2451 = vmatpush.msra.mxu0 0.0
            %2452 = vmatpush.msra.mxu0 0.0
            %2453 = vmatpush.msra.mxu0 %v2439
            %2454 = vmatpush.msra.mxu0 %v2438
            %2455 = vmatpush.msra.mxu0 %v2437
            %2456 = vmatpush.msra.mxu0 %v2436
            %2457 = vmatpush.msra.mxu0 %v2435
            %2458 = vmatpush.msra.mxu0 %v2434
            %2459 = vmatpush.msra.mxu0 %v2433
            %2460 = vmatpush.msra.mxu0 %v2432
            %2461 = vmatmul.f32.gmra.mxu0 %v2443
            %v2462 = vpop.f32.mrf.mxu0
            %v2463 = vadd.f32 %v2441, %v2462
            %2464 = vdwg.mxu0
            %v2465 = vxor.u32 %v2463, 2147483648
            %v2466 = vmul.f32 %v2465, 1.442695
            %v2467 = vpow.pop %v2466
            %v2468 = vadd.f32 %v2467, 1.0
            %v2469 = vrcp.pop %v2468
            %v2470 = vmul.f32 %v2468, %v2469
            %v2471 = vsub.f32 1.0, %v2470
            %v2472 = vmul.f32 %v2469, %v2471
            %v2473 = vadd.f32 %v2469, %v2472
            %vm2474 = vweird.f32 %v2468
            %vm2475 = vweird.f32 %v2469
            %vm2476 = vmor %vm2474, %vm2475
            %v2477 = vsel %vm2476, %v2469, %v2473
            %v2478 = vand.u32 2147483647, %v2468
            %vm2479 = vcmp.eq.f32.partialorder %v2478, 8.507059e+37
            %v2480 = vand.u32 %v2468, 2147483648
            %v2481 = vor.u32 1.1754944e-38, %v2480
            %v2482 = vsel %vm2479, %v2481, %v2477
            %v2483 = vmul.f32 1.0, %v2482
            %v2484 = vtanh.pop %v2463
            %v2486 = vperm.slane %v2424, 0
            %2487 = vrot.lane.b32.xlu0 %v2486, 32
            %v2488 = vpop.permute.xlu0 %2487
            %v2490 = vmul.f32 %v2483, %v2488
            %2492 = vrot.lane.b32.xlu0 %v2484, 64
            %v2493 = vpop.permute.xlu0 %2492
            %v2495 = vmul.f32 %v2483, %v2493
            %2497 = vrot.lane.b32.xlu0 %v2495, 32
            %v2498 = vpop.permute.xlu0 %2497
            %v2500 = vadd.f32 %v2490, %v2498
            %v2501 = vtanh.pop %v2500
            %2503 = vrot.lane.b32.xlu0 %v2501, 64
            %v2504 = vpop.permute.xlu0 %2503
            %v2506 = vmul.f32 %v2483, %v2504
            %2508 = vrot.lane.b32.xlu0 %v2506, 32
            %v2509 = vpop.permute.xlu0 %2508
            %2511 = vst.msk [vmem:[%s2421] sm:$0x1] %vm2414, %v2509
            %2513 = vrot.lane.b32.xlu0 %v2500, 96
            %v2514 = vpop.permute.xlu0 %2513
            %2516 = vst.msk [vmem:[%s2423] sm:$0x1] %vm2414, %v2514
            %v2517 = vld [vmem:[%s3] sm:$0xff]
            %v2518 = vld [vmem:[%s3 + $0x8] sm:$0xff]
            %v2519 = vld [vmem:[%s3 + $0x10] sm:$0xff]
            %v2520 = vld [vmem:[%s3 + $0x18] sm:$0xff]
            %v2521 = vld [vmem:[%s4] sm:$0x1]
            %v2522 = vsel %vm2333, %v2509, 0
            %2524 = vmatpush.msra.mxu0 0.0
            %2525 = vmatpush.msra.mxu0 0.0
            %2526 = vmatpush.msra.mxu0 0.0
            %2527 = vmatpush.msra.mxu0 0.0
            %2528 = vmatpush.msra.mxu0 0.0
            %2529 = vmatpush.msra.mxu0 0.0
            %2530 = vmatpush.msra.mxu0 0.0
            %2531 = vmatpush.msra.mxu0 0.0
            %2532 = vmatpush.msra.mxu0 0.0
            %2533 = vmatpush.msra.mxu0 0.0
            %2534 = vmatpush.msra.mxu0 0.0
            %2535 = vmatpush.msra.mxu0 0.0
            %2536 = vmatpush.msra.mxu0 %v2520
            %2537 = vmatpush.msra.mxu0 %v2519
            %2538 = vmatpush.msra.mxu0 %v2518
            %2539 = vmatpush.msra.mxu0 %v2517
            %2540 = vmatmul.f32.gmra.mxu0 %v2522
            %v2541 = vpop.f32.mrf.mxu0
            %v2542 = vadd.f32 %v2521, %v2541
            %2543 = vdwg.mxu0
            %vm2544 = vcmask 1040384
            %v2545 = vsel %vm2544, %v2542, -inf
            %2546 = vmax.xlane.f32.xlu0 %v2545
            %v2547 = vpop.xlane.xlu0 %2546
            %v2548 = vsub.f32 %v2542, %v2547
            %v2549 = vmul.f32 %v2548, 1.442695
            %v2550 = vpow.pop %v2549
            %v2551 = vsel %vm2544, %v2550, 0.0
            %2552 = vadd.xlane.f32.xlu0 %v2551
            %v2553 = vpop.xlane.xlu0 %2552
            %v2554 = vlog2.pop %v2553
            %v2555 = vmul.f32 %v2554, 0.6931472
            %v2556 = vsub.f32 %v2548, %v2555
            %2557 = vst [vmem:[#allocation4 + $0x7] sm:$0x1] %v2556
            %v2558 = vsel %vm2544, %v2556, -inf
            %2559 = vmax.xlane.f32.xlu0 %v2558
            %v2560 = vpop.xlane.xlu0 %2559
            %vm2561 = vcmp.ge.f32.partialorder %v2556, %v2560
            %v2562 = vsel %vm2561, %v350, 128
            %v2563 = vsel %vm2544, %v2562, 2147483647
            %v2564 = vand.u32 %v2563, 65535
            %v2565 = vshra.s32 %v2563, 16
            %v2566 = vcvt.s32.f32 %v2564
            %v2567 = vcvt.s32.f32 %v2565
            %2568 = vmin.xlane.f32.xlu0 %v2567
            %v2569 = vpop.xlane.xlu0 %2568
            %vm2570 = vcmp.eq.f32.partialorder %v2567, %v2569
            %v2571 = vsel %vm2570, %v2566, inf
            %2572 = vmin.xlane.f32.xlu0 %v2571
            %v2573 = vpop.xlane.xlu0 %2572
            %v2574 = vcvt.f32.s32 %v2573
            %v2575 = vcvt.f32.s32 %v2569
            %v2576 = vshll.u32 %v2575, 16
            %v2577 = vadd.s32 %v2576, %v2574
            %vm2578 = vcmask 0
            %2579 = vst.msk [vmem:[#allocation5] sm:$0x1] %vm2578, %v2577
            %v2580 = vld [vmem:[#allocation5] sm:$0x1]
            %s2581 = vtos %v2580
            %s2582 = scalar_lea.smem [#allocation6], 0
            %2583 = sst [smem:[%s2582]] %s2581
            %p2584 = scmp.eq.s32.totalorder %s2581, 5
            %s2585 = scalar_select %p2584, 1, 0
            %s2586 = scalar_lea.smem [#allocation7], 0
            %2587 = sst [smem:[%s2586]] %s2585
            %s2588 = sld [smem:[#allocation8]]
            %s2589 = sadd.s32 %s2588, 1
            %s2590 = scalar_lea.smem [#allocation8], 0
            %2591 = sst [smem:[%s2590]] %s2589
          $region92: #{tpu_custom_call.1} parent=59 // pred_fallthru
            _
        $region60: #{tpu_custom_call.1} parent=47 // pred_fallthru
          _
        %v2592 = vld [vmem:[#allocation4] sm:$0xff]
        %2593 = vst [vmem:[%s342] sm:$0xff] %v2592
        %s2594 = sld [smem:[#allocation8]]
        %v2595 = vstv %s2594
        %vm2596 = vcmask 0
        %2597 = vst.msk [vmem:[#allocation13] sm:$0x1] %vm2596, %v2595
        %v2598 = vld [vmem:[#allocation2] sm:$0x1]
        %v2599 = vld [vmem:[#allocation2 + $0x1] sm:$0x1]
        %vm2600 = vcmask 253952
        %2601 = vst.msk [vmem:[#allocation15] sm:$0x1] %vm2600, %v2598
        %2602 = vst.msk [vmem:[#allocation15 + $0x1] sm:$0x1] %vm2600, %v2599
        %v2603 = vld [vmem:[#allocation3] sm:$0x1]
        %v2604 = vld [vmem:[#allocation3 + $0x1] sm:$0x1]
        %2605 = vst.msk [vmem:[#allocation16] sm:$0x1] %vm2600, %v2603
        %2606 = vst.msk [vmem:[#allocation16 + $0x1] sm:$0x1] %vm2600, %v2604
        %s2607 = sand.u32 %s183, 1
        %s2608 = scalar_lea.sflag [#allocation11], %s2607
        %s2609 = sand.u32 %s183, 1
        %s2610 = smul.addr %s2609, 8
        %s2611 = scalar_lea.vmem [#allocation12], %s2610
        // Predicated region
        $region93: #{tpu_custom_call.1} parent=47 // pred_check
          %p2612 = pneg %p193
        $region94: #{tpu_custom_call.1} parent=47 // pred_check_branch
          %2614 = sbr.rel (%p2612) target = $region96
        $region95: #{tpu_custom_call.1} parent=47 // pred_region
          %2616 = vsyncadd %s2608, 0
          %s2617 = smul.addr %s28, 8
          %s2618 = scalar_lea.hbm %s7, %s2617
          %s2620 = sshll.u32 %s2611, 4
          %s2621 = int_to_ptr.vmem [resolvable:$true] %s2620
          %s2622 = sshll.u32 %s2618, 4
          %s2623 = int_to_ptr.hbm [resolvable:$true] %s2622
          %2625 = dma.vmem_to_hbm [thread:$0]  %s2621, 128, %s2623, %s2608
        $region96: #{tpu_custom_call.1} parent=47 // pred_fallthru
          _
        // Predicated region
        $region97: #{tpu_custom_call.1} parent=47 // pred_check
          %p2626 = pneg %p214
        $region98: #{tpu_custom_call.1} parent=47 // pred_check_branch
          %2628 = sbr.rel (%p2626) target = $region100
        $region99: #{tpu_custom_call.1} parent=47 // pred_region
          %2630 = vsyncadd [#allocation14], 0
          %s2632 = sshll.u32 [#allocation13], 4
          %s2633 = int_to_ptr.vmem [resolvable:$true] %s2632
          %s2634 = sshll.u32 %s8, 4
          %s2635 = int_to_ptr.hbm [resolvable:$true] %s2634
          %2637 = dma.vmem_to_hbm [thread:$0]  %s2633, 16, %s2635, [#allocation14]
        $region100: #{tpu_custom_call.1} parent=47 // pred_fallthru
          _
        // Predicated region
        $region101: #{tpu_custom_call.1} parent=47 // pred_check
          %p2638 = pneg %p235
        $region102: #{tpu_custom_call.1} parent=47 // pred_check_branch
          %2640 = sbr.rel (%p2638) target = $region104
        $region103: #{tpu_custom_call.1} parent=47 // pred_region
          %2642 = vsyncadd [#allocation14], 0
          %s2643 = sshll.u32 [#allocation15], 4
          %s2644 = int_to_ptr.vmem [resolvable:$true] %s2643
          %s2645 = sshll.u32 %s9, 4
          %s2646 = int_to_ptr.hbm [resolvable:$true] %s2645
          %2651 = dma.vmem_to_hbm [thread:$0]  %s2644, 32, %s2646, [#allocation14], 16, 16, 1
        $region104: #{tpu_custom_call.1} parent=47 // pred_fallthru
          _
        // Predicated region
        $region105: #{tpu_custom_call.1} parent=47 // pred_check
          %p2652 = pneg %p256
        $region106: #{tpu_custom_call.1} parent=47 // pred_check_branch
          %2654 = sbr.rel (%p2652) target = $region108
        $region107: #{tpu_custom_call.1} parent=47 // pred_region
          %2656 = vsyncadd [#allocation17], 0
          %s2657 = sshll.u32 [#allocation16], 4
          %s2658 = int_to_ptr.vmem [resolvable:$true] %s2657
          %s2659 = sshll.u32 %s10, 4
          %s2660 = int_to_ptr.hbm [resolvable:$true] %s2659
          %2665 = dma.vmem_to_hbm [thread:$0]  %s2658, 32, %s2660, [#allocation17], 16, 16, 1
        $region108: #{tpu_custom_call.1} parent=47 // pred_fallthru
          _
        // Predicated region
        $region109: #{tpu_custom_call.1} parent=47 // pred_check
          %p2666 = pneg %p214
        $region110: #{tpu_custom_call.1} parent=47 // pred_check_branch
          %2668 = sbr.rel (%p2666) target = $region112
        $region111: #{tpu_custom_call.1} parent=47 // pred_region
          %2670 = dma.done [#allocation14], 16
        $region112: #{tpu_custom_call.1} parent=47 // pred_fallthru
          _
        // Predicated region
        $region113: #{tpu_custom_call.1} parent=47 // pred_check
          %p2671 = pneg %p235
        $region114: #{tpu_custom_call.1} parent=47 // pred_check_branch
          %2673 = sbr.rel (%p2671) target = $region116
        $region115: #{tpu_custom_call.1} parent=47 // pred_region
          %2675 = dma.done [#allocation14], 32
        $region116: #{tpu_custom_call.1} parent=47 // pred_fallthru
          _
        // Predicated region
        $region117: #{tpu_custom_call.1} parent=47 // pred_check
          %p2676 = pneg %p256
        $region118: #{tpu_custom_call.1} parent=47 // pred_check_branch
          %2678 = sbr.rel (%p2676) target = $region120
        $region119: #{tpu_custom_call.1} parent=47 // pred_region
          %2680 = dma.done [#allocation17], 32
        $region120: #{tpu_custom_call.1} parent=47 // pred_fallthru
          _
      $region48: #{tpu_custom_call.1} parent=5 // pred_fallthru
        _
      %p2681 = scmp.le.s32.totalorder 2, %s23
      // Predicated region
      $region121: #{tpu_custom_call.1} parent=5 // pred_check
        %p2682 = pneg %p2681
      $region122: #{tpu_custom_call.1} parent=5 // pred_check_branch
        %2684 = sbr.rel (%p2682) target = $region124
      $region123: #{tpu_custom_call.1} parent=5 // pred_region
        %s2685 = ssub.s32 %s23, 2
        // Predicated region
        $region125: #{tpu_custom_call.1} parent=123 // pred_check
          %p2686 = pneg %p199
        $region126: #{tpu_custom_call.1} parent=123 // pred_check_branch
          %2688 = sbr.rel (%p2686) target = $region128
        $region127: #{tpu_custom_call.1} parent=123 // pred_region
          %s2689 = sand.u32 %s184, 1
          %s2690 = scalar_lea.sflag [#allocation11], %s2689
          %s2691 = sand.u32 %s184, 1
          %s2692 = smul.addr %s2691, 8
          %s2693 = scalar_lea.vmem [#allocation12], %s2692
          %2695 = dma.done %s2690, 128
        $region128: #{tpu_custom_call.1} parent=123 // pred_fallthru
          _
      $region124: #{tpu_custom_call.1} parent=5 // pred_fallthru
        _
    $region6: #{tpu_custom_call.1} parent=1 // loop_footer
      %s27 = sadd.s32 1, %s23
    $region7: #{tpu_custom_call.1} parent=1 // loop_footer_branch
      %22 = sbr.rel target = $region3
    $region8: #{tpu_custom_call.1} parent=1 // loop_exit
      _
    %2696 = vsyncpa [#allocation10], 1
    %s2697 = scalar_lea.sflag [#allocation10], 1
    %2698 = vsyncpa %s2697, 1
    %2699 = vsyncpa [#allocation11], 1
    %s2700 = scalar_lea.sflag [#allocation11], 1
    %2701 = vsyncpa %s2700, 1
    %2702 = vsyncpa [#allocation14], 1
    %2703 = vsyncpa [#allocation17], 1

</llo_original>
